<compile_context>
chip_gen: v7x
topology: tpu7x:2x2x1
jax: 0.10.0
libtpu: 0.0.40
codegen_flags: <defaults>
</compile_context>

<pallas_src>
import functools

import jax
import jax.numpy as jnp
from jax.experimental import pallas as pl
from jax.experimental.pallas import tpu as pltpu

LANE = 128


def _round_up(x, m):
    return ((x + m - 1) // m) * m


# --------------------------- Pallas kernels ---------------------------------

def _conv_stats_kernel(x_ref, w_ref, mask_ref, y_ref, stats_ref, *,
                       ksize, Wp, stride, R2):
    """Direct conv (k*k shifted matmuls) + fused per-channel sum / sumsq.

    x_ref:     (Lpad, Cin)       bf16  flattened, padded NHWC image (one batch element)
    w_ref:     (k*k, Cin, Cpad)  bf16  weights per tap, channels lane-padded
    mask_ref:  (R2, 1)           f32   1.0 for real output positions, 0.0 for junk cols
    y_ref:     (R2, Cpad)        f32   conv output (junk columns included, no bias)
    stats_ref: (8, Cpad)         f32   row0 = sum, row1 = sumsq over real positions
    """
    @pl.when(pl.program_id(0) == 0)
    def _():
        stats_ref[...] = jnp.zeros_like(stats_ref)

    idx = 0
    for kh in range(ksize):
        for kw in range(ksize):
            start = kh * Wp + kw
            if stride == 1:
                lhs = x_ref[pl.ds(start, R2), :]
            else:
                lhs = x_ref[pl.ds(start, R2, stride), :]
            contrib = jnp.dot(lhs, w_ref[idx],
                              preferred_element_type=jnp.float32)
            if idx == 0:
                y_ref[...] = contrib
            else:
                y_ref[...] += contrib
            idx += 1

    # Fused batch-norm statistics (single pass, junk columns masked out).
    ym = y_ref[...] * mask_ref[...]
    stats_ref[0:1, :] += jnp.sum(ym, axis=0, keepdims=True)
    stats_ref[1:2, :] += jnp.sum(ym * ym, axis=0, keepdims=True)


def _bn_relu_kernel(y_ref, scale_ref, shift_ref, o_ref):
    # Fused affine batch-norm apply + ReLU (elementwise, lane-dense blocks).
    o_ref[...] = jnp.maximum(y_ref[...] * scale_ref[...] + shift_ref[...], 0.0)


# --------------------------- pallas_call wrappers ----------------------------

def conv_with_stats(x_flat, w_taps, mask, *, ksize, Wp, stride, R2, Cpad):
    N, Lpad, Cin = x_flat.shape
    kernel = functools.partial(_conv_stats_kernel, ksize=ksize, Wp=Wp,
                               stride=stride, R2=R2)
    # TODO(synk): for very large images (per-image activation >> a few MB) add an
    # output-row (OH) tile axis so the per-step VMEM working set stays bounded.
    return pl.pallas_call(
        kernel,
        out_shape=(jax.ShapeDtypeStruct((N, R2, Cpad), jnp.float32),
                   jax.ShapeDtypeStruct((8, Cpad), jnp.float32)),
        grid=(N,),
        in_specs=[pl.BlockSpec((None, Lpad, Cin), lambda n: (n, 0, 0)),
                  pl.BlockSpec((ksize * ksize, Cin, Cpad), lambda n: (0, 0, 0)),
                  pl.BlockSpec((R2, 1), lambda n: (0, 0))],
        out_specs=(pl.BlockSpec((None, R2, Cpad), lambda n: (n, 0, 0)),
                   pl.BlockSpec((8, Cpad), lambda n: (0, 0))),
        compiler_params=pltpu.CompilerParams(
            dimension_semantics=("arbitrary",),   # stats accumulate across the grid
            vmem_limit_bytes=48 * 1024 * 1024),
    )(x_flat, w_taps, mask)


def bn_relu(y, scale, shift, *, max_block_bytes=4 * 1024 * 1024):
    N, R2, Cpad = y.shape
    per_img = R2 * Cpad * 4
    nb = max(1, min(N, max_block_bytes // max(per_img, 1)))
    while N % nb:
        nb -= 1
    return pl.pallas_call(
        _bn_relu_kernel,
        out_shape=jax.ShapeDtypeStruct((N, R2, Cpad), jnp.float32),
        grid=(N // nb,),
        in_specs=[pl.BlockSpec((nb, R2, Cpad), lambda i: (i, 0, 0)),
                  pl.BlockSpec((1, 1, Cpad), lambda i: (0, 0, 0)),
                  pl.BlockSpec((1, 1, Cpad), lambda i: (0, 0, 0))],
        out_specs=pl.BlockSpec((nb, R2, Cpad), lambda i: (i, 0, 0)),
        input_output_aliases={0: 0},              # overwrite y in place
        compiler_params=pltpu.CompilerParams(
            dimension_semantics=("parallel",),
            vmem_limit_bytes=48 * 1024 * 1024),
    )(y, scale, shift)


# --------------------------- module -----------------------------------------

class BasicConv2dPallas:
    """Conv2d(ksize, inCH, outCh, stride, padding) + BatchNorm2d(outCh) + ReLU."""

    def __init__(self, ksize, inCH, outCh, padding=0, stride=1, *, key):
        self.ksize, self.inCH, self.outCh = ksize, inCH, outCh
        self.padding, self.stride = padding, stride
        self.eps = 1e-5
        k1, k2 = jax.random.split(key)
        fan_in = inCH * ksize * ksize
        bound = 1.0 / (fan_in ** 0.5)
        # Deterministic synthetic init (shapes match nn.Conv2d / nn.BatchNorm2d defaults).
        self.weight = jax.random.uniform(k1, (outCh, inCH, ksize, ksize),
                                         jnp.float32, -bound, bound)
        self.bias = jax.random.uniform(k2, (outCh,), jnp.float32, -bound, bound)
        self.gamma = jnp.ones((outCh,), jnp.float32)   # BN weight init
        self.beta = jnp.zeros((outCh,), jnp.float32)   # BN bias init

    def __call__(self, x):
        N, Cin, H, W = x.shape
        k, s, p = self.ksize, self.stride, self.padding
        Cout = self.outCh
        OH = (H + 2 * p - k) // s + 1
        OW = (W + 2 * p - k) // s + 1
        Hp, Wp = H + 2 * p, W + 2 * p
        R2 = OH * Wp                       # per-image output rows incl. junk columns
        Cpad = _round_up(Cout, LANE)       # lane-dense channel axis
        # flat input must cover the last tap of the last (junk) output position
        L_req = s * (R2 - 1) + (k - 1) * Wp + (k - 1) + 1
        Lpad = _round_up(max(L_req, Hp * Wp), 8)

        # ---- layout plumbing (cheap XLA ops; no k^2 im2col expansion in HBM) ----
        x_nhwc = jnp.transpose(x, (0, 2, 3, 1))
        x_pad = jnp.pad(x_nhwc, ((0, 0), (p, p), (p, p), (0, 0)))
        x_flat = x_pad.reshape(N, Hp * Wp, Cin)
        x_flat = jnp.pad(x_flat, ((0, 0), (0, Lpad - Hp * Wp), (0, 0)))
        x_flat = x_flat.astype(jnp.bfloat16)

        w_taps = jnp.transpose(self.weight, (2, 3, 1, 0)).reshape(k * k, Cin, Cout)
        w_taps = jnp.pad(w_taps, ((0, 0), (0, 0), (0, Cpad - Cout))).astype(jnp.bfloat16)

        # 1.0 on real output positions (flat row r is real iff r % Wp < OW)
        mask = ((jnp.arange(R2) % Wp) < OW).astype(jnp.float32).reshape(R2, 1)

        # ---- fused conv + batch statistics (single pass over the activation) ----
        y, stats = conv_with_stats(x_flat, w_taps, mask, ksize=k, Wp=Wp,
                                   stride=s, R2=R2, Cpad=Cpad)

        # ---- fold training-mode BN into one per-channel affine (tiny JAX math) ----
        cnt = jnp.float32(N * OH * OW)
        gamma = jnp.pad(self.gamma, (0, Cpad - Cout))
        beta = jnp.pad(self.beta, (0, Cpad - Cout))
        mean_nb = stats[0] / cnt                                     # mean of conv (no bias)
        var = jnp.maximum(stats[1] / cnt - mean_nb * mean_nb, 0.0)   # biased var (training BN)
        scale = gamma / jnp.sqrt(var + self.eps)
        # conv bias cancels exactly under batch-norm with batch statistics
        shift = beta - mean_nb * scale

        out = bn_relu(y, scale.reshape(1, 1, Cpad), shift.reshape(1, 1, Cpad))

        # ---- drop junk columns / channel padding, back to NCHW at module boundary ----
        out = out.reshape(N, OH, Wp, Cpad)[:, :, :OW, :Cout]
        return jnp.transpose(out, (0, 3, 1, 2))


# --------------------------- reference & test --------------------------------

def reference_forward(x, mod):
    """Pure-JAX f32 reference for training-mode Conv2d + BatchNorm2d + ReLU."""
    y = jax.lax.conv_general_dilated(
        x, mod.weight, (mod.stride, mod.stride),
        [(mod.padding, mod.padding), (mod.padding, mod.padding)],
        dimension_numbers=("NCHW", "OIHW", "NCHW"),
        precision=jax.lax.Precision.HIGHEST)
    y = y + mod.bias[None, :, None, None]
    mean = jnp.mean(y, axis=(0, 2, 3), keepdims=True)
    var = jnp.var(y, axis=(0, 2, 3), keepdims=True)
    yn = (y - mean) / jnp.sqrt(var + mod.eps)
    yn = yn * mod.gamma[None, :, None, None] + mod.beta[None, :, None, None]
    return jnp.maximum(yn, 0.0)


if __name__ == "__main__":
    key = jax.random.PRNGKey(0)
    kx, kp = jax.random.split(key)

    # small shapes consistent with the module: batch=2, inCH=4, outCh=8, spatial=16, ksize=3
    x = jax.random.normal(kx, (2, 4, 16, 16), jnp.float32)
    mod = BasicConv2dPallas(ksize=3, inCH=4, outCh=8, padding=1, stride=1, key=kp)

    fwd = jax.jit(lambda inp: mod(inp))
    out = jax.block_until_ready(fwd(x))

    ref = jax.block_until_ready(reference_forward(x, mod))
    assert out.shape == (2, 8, 16, 16), out.shape
    err = float(jnp.max(jnp.abs(out - ref)))
    # bf16 MXU inputs with f32 accumulation vs. an f32 reference -> slightly looser tol
    assert jnp.allclose(out, ref, rtol=2e-2, atol=2e-2), err

    print("KERNEL_OK")
</pallas_src>

<mosaic_0001>
module attributes {stable_mosaic.version = 11 : i64} {
  func.func @_conv_stats_kernel(%arg0: i32, %arg1: memref<1x328x4xbf16, #tpu.memory_space<vmem>>, %arg2: memref<9x4x128xbf16, #tpu.memory_space<vmem>>, %arg3: memref<288x1xf32, #tpu.memory_space<vmem>>, %arg4: memref<1x288x128xf32, #tpu.memory_space<vmem>>, %arg5: memref<8x128xf32, #tpu.memory_space<vmem>>) attributes {dimension_semantics = [#tpu.dimension_semantics<arbitrary>], iteration_bounds = array<i64: 2>, scalar_prefetch = 0 : i64, scratch_operands = 0 : i64, tpu.core_type = #tpu.core_type<tc>, window_params = [{transform_indices = @transform_0, window_bounds = array<i64: 1, 328, 4>}, {pipeline_mode = #tpu.pipeline_mode<synchronous>, transform_indices = @transform_1, window_bounds = array<i64: 9, 4, 128>}, {pipeline_mode = #tpu.pipeline_mode<synchronous>, transform_indices = @transform_2, window_bounds = array<i64: 288, 1>}, {transform_indices = @transform_3, window_bounds = array<i64: 1, 288, 128>}, {pipeline_mode = #tpu.pipeline_mode<synchronous>, transform_indices = @transform_4, window_bounds = array<i64: 8, 128>}]} {
    %c0_i32 = arith.constant 0 : i32
    %0 = arith.cmpi eq, %arg0, %c0_i32 : i32
    %1 = arith.extui %0 : i1 to i32
    %c0_i32_0 = arith.constant 0 : i32
    %2 = arith.cmpi ne, %1, %c0_i32_0 : i32
    scf.if %2 {
      %cst_114 = arith.constant 0.000000e+00 : f32
      %115 = vector.broadcast %cst_114 : f32 to vector<8x128xf32>
      %c0_115 = arith.constant 0 : index
      %c0_116 = arith.constant 0 : index
      %116 = vector.load %arg5[%c0_115, %c0_116] : memref<8x128xf32, #tpu.memory_space<vmem>>, vector<8x128xf32>
      tpu.vector_store %arg5[%c0_115, %c0_116], %115 {strides = array<i32>} : memref<8x128xf32, #tpu.memory_space<vmem>>, vector<8x128xf32>,
    } else {
    }
    %c0 = arith.constant 0 : index
    %c0_1 = arith.constant 0 : index
    %c0_2 = arith.constant 0 : index
    %3 = vector.load %arg1[%c0, %c0_1, %c0_2] : memref<1x328x4xbf16, #tpu.memory_space<vmem>>, vector<1x288x4xbf16>
    %4 = vector.shape_cast %3 : vector<1x288x4xbf16> to vector<288x4xbf16>
    %c0_3 = arith.constant 0 : index
    %c0_4 = arith.constant 0 : index
    %c0_5 = arith.constant 0 : index
    %5 = vector.load %arg2[%c0_3, %c0_4, %c0_5] : memref<9x4x128xbf16, #tpu.memory_space<vmem>>, vector<1x4x128xbf16>
    %6 = vector.shape_cast %5 : vector<1x4x128xbf16> to vector<4x128xbf16>
    %cst = arith.constant dense<0.000000e+00> : vector<288x128xf32>
    %7 = tpu.matmul %4, %6, %cst {dimension_numbers = #tpu.dot_dimension_numbers<[1], [0], [0], [1], [0, 0, 1, 1], [], []>} : vector<288x4xbf16>, vector<4x128xbf16>, vector<288x128xf32> -> vector<288x128xf32>
    %c0_6 = arith.constant 0 : index
    %c0_7 = arith.constant 0 : index
    %c0_8 = arith.constant 0 : index
    %8 = vector.load %arg4[%c0_6, %c0_7, %c0_8] : memref<1x288x128xf32, #tpu.memory_space<vmem>>, vector<1x288x128xf32>
    %9 = vector.shape_cast %8 : vector<1x288x128xf32> to vector<288x128xf32>
    %10 = vector.shape_cast %7 : vector<288x128xf32> to vector<1x288x128xf32>
    tpu.vector_store %arg4[%c0_6, %c0_7, %c0_8], %10 {strides = array<i32>} : memref<1x288x128xf32, #tpu.memory_space<vmem>>, vector<1x288x128xf32>,
    %c0_9 = arith.constant 0 : index
    %c1 = arith.constant 1 : index
    %c0_10 = arith.constant 0 : index
    %11 = vector.load %arg1[%c0_9, %c1, %c0_10] : memref<1x328x4xbf16, #tpu.memory_space<vmem>>, vector<1x288x4xbf16>
    %12 = vector.shape_cast %11 : vector<1x288x4xbf16> to vector<288x4xbf16>
    %c1_11 = arith.constant 1 : index
    %c0_12 = arith.constant 0 : index
    %c0_13 = arith.constant 0 : index
    %13 = vector.load %arg2[%c1_11, %c0_12, %c0_13] : memref<9x4x128xbf16, #tpu.memory_space<vmem>>, vector<1x4x128xbf16>
    %14 = vector.shape_cast %13 : vector<1x4x128xbf16> to vector<4x128xbf16>
    %cst_14 = arith.constant dense<0.000000e+00> : vector<288x128xf32>
    %15 = tpu.matmul %12, %14, %cst_14 {dimension_numbers = #tpu.dot_dimension_numbers<[1], [0], [0], [1], [0, 0, 1, 1], [], []>} : vector<288x4xbf16>, vector<4x128xbf16>, vector<288x128xf32> -> vector<288x128xf32>
    %c0_15 = arith.constant 0 : index
    %c0_16 = arith.constant 0 : index
    %c0_17 = arith.constant 0 : index
    %16 = vector.load %arg4[%c0_15, %c0_16, %c0_17] : memref<1x288x128xf32, #tpu.memory_space<vmem>>, vector<1x288x128xf32>
    %17 = vector.shape_cast %16 : vector<1x288x128xf32> to vector<288x128xf32>
    %18 = arith.addf %17, %15 : vector<288x128xf32>
    %c0_18 = arith.constant 0 : index
    %c0_19 = arith.constant 0 : index
    %c0_20 = arith.constant 0 : index
    %19 = vector.load %arg4[%c0_18, %c0_19, %c0_20] : memref<1x288x128xf32, #tpu.memory_space<vmem>>, vector<1x288x128xf32>
    %20 = vector.shape_cast %19 : vector<1x288x128xf32> to vector<288x128xf32>
    %21 = vector.shape_cast %18 : vector<288x128xf32> to vector<1x288x128xf32>
    tpu.vector_store %arg4[%c0_18, %c0_19, %c0_20], %21 {strides = array<i32>} : memref<1x288x128xf32, #tpu.memory_space<vmem>>, vector<1x288x128xf32>,
    %c0_21 = arith.constant 0 : index
    %c2 = arith.constant 2 : index
    %c0_22 = arith.constant 0 : index
    %22 = vector.load %arg1[%c0_21, %c2, %c0_22] : memref<1x328x4xbf16, #tpu.memory_space<vmem>>, vector<1x288x4xbf16>
    %23 = vector.shape_cast %22 : vector<1x288x4xbf16> to vector<288x4xbf16>
    %c2_23 = arith.constant 2 : index
    %c0_24 = arith.constant 0 : index
    %c0_25 = arith.constant 0 : index
    %24 = vector.load %arg2[%c2_23, %c0_24, %c0_25] : memref<9x4x128xbf16, #tpu.memory_space<vmem>>, vector<1x4x128xbf16>
    %25 = vector.shape_cast %24 : vector<1x4x128xbf16> to vector<4x128xbf16>
    %cst_26 = arith.constant dense<0.000000e+00> : vector<288x128xf32>
    %26 = tpu.matmul %23, %25, %cst_26 {dimension_numbers = #tpu.dot_dimension_numbers<[1], [0], [0], [1], [0, 0, 1, 1], [], []>} : vector<288x4xbf16>, vector<4x128xbf16>, vector<288x128xf32> -> vector<288x128xf32>
    %c0_27 = arith.constant 0 : index
    %c0_28 = arith.constant 0 : index
    %c0_29 = arith.constant 0 : index
    %27 = vector.load %arg4[%c0_27, %c0_28, %c0_29] : memref<1x288x128xf32, #tpu.memory_space<vmem>>, vector<1x288x128xf32>
    %28 = vector.shape_cast %27 : vector<1x288x128xf32> to vector<288x128xf32>
    %29 = arith.addf %28, %26 : vector<288x128xf32>
    %c0_30 = arith.constant 0 : index
    %c0_31 = arith.constant 0 : index
    %c0_32 = arith.constant 0 : index
    %30 = vector.load %arg4[%c0_30, %c0_31, %c0_32] : memref<1x288x128xf32, #tpu.memory_space<vmem>>, vector<1x288x128xf32>
    %31 = vector.shape_cast %30 : vector<1x288x128xf32> to vector<288x128xf32>
    %32 = vector.shape_cast %29 : vector<288x128xf32> to vector<1x288x128xf32>
    tpu.vector_store %arg4[%c0_30, %c0_31, %c0_32], %32 {strides = array<i32>} : memref<1x288x128xf32, #tpu.memory_space<vmem>>, vector<1x288x128xf32>,
    %c0_33 = arith.constant 0 : index
    %c18 = arith.constant 18 : index
    %c0_34 = arith.constant 0 : index
    %33 = vector.load %arg1[%c0_33, %c18, %c0_34] : memref<1x328x4xbf16, #tpu.memory_space<vmem>>, vector<1x288x4xbf16>
    %34 = vector.shape_cast %33 : vector<1x288x4xbf16> to vector<288x4xbf16>
    %c3 = arith.constant 3 : index
    %c0_35 = arith.constant 0 : index
    %c0_36 = arith.constant 0 : index
    %35 = vector.load %arg2[%c3, %c0_35, %c0_36] : memref<9x4x128xbf16, #tpu.memory_space<vmem>>, vector<1x4x128xbf16>
    %36 = vector.shape_cast %35 : vector<1x4x128xbf16> to vector<4x128xbf16>
    %cst_37 = arith.constant dense<0.000000e+00> : vector<288x128xf32>
    %37 = tpu.matmul %34, %36, %cst_37 {dimension_numbers = #tpu.dot_dimension_numbers<[1], [0], [0], [1], [0, 0, 1, 1], [], []>} : vector<288x4xbf16>, vector<4x128xbf16>, vector<288x128xf32> -> vector<288x128xf32>
    %c0_38 = arith.constant 0 : index
    %c0_39 = arith.constant 0 : index
    %c0_40 = arith.constant 0 : index
    %38 = vector.load %arg4[%c0_38, %c0_39, %c0_40] : memref<1x288x128xf32, #tpu.memory_space<vmem>>, vector<1x288x128xf32>
    %39 = vector.shape_cast %38 : vector<1x288x128xf32> to vector<288x128xf32>
    %40 = arith.addf %39, %37 : vector<288x128xf32>
    %c0_41 = arith.constant 0 : index
    %c0_42 = arith.constant 0 : index
    %c0_43 = arith.constant 0 : index
    %41 = vector.load %arg4[%c0_41, %c0_42, %c0_43] : memref<1x288x128xf32, #tpu.memory_space<vmem>>, vector<1x288x128xf32>
    %42 = vector.shape_cast %41 : vector<1x288x128xf32> to vector<288x128xf32>
    %43 = vector.shape_cast %40 : vector<288x128xf32> to vector<1x288x128xf32>
    tpu.vector_store %arg4[%c0_41, %c0_42, %c0_43], %43 {strides = array<i32>} : memref<1x288x128xf32, #tpu.memory_space<vmem>>, vector<1x288x128xf32>,
    %c0_44 = arith.constant 0 : index
    %c19 = arith.constant 19 : index
    %c0_45 = arith.constant 0 : index
    %44 = vector.load %arg1[%c0_44, %c19, %c0_45] : memref<1x328x4xbf16, #tpu.memory_space<vmem>>, vector<1x288x4xbf16>
    %45 = vector.shape_cast %44 : vector<1x288x4xbf16> to vector<288x4xbf16>
    %c4 = arith.constant 4 : index
    %c0_46 = arith.constant 0 : index
    %c0_47 = arith.constant 0 : index
    %46 = vector.load %arg2[%c4, %c0_46, %c0_47] : memref<9x4x128xbf16, #tpu.memory_space<vmem>>, vector<1x4x128xbf16>
    %47 = vector.shape_cast %46 : vector<1x4x128xbf16> to vector<4x128xbf16>
    %cst_48 = arith.constant dense<0.000000e+00> : vector<288x128xf32>
    %48 = tpu.matmul %45, %47, %cst_48 {dimension_numbers = #tpu.dot_dimension_numbers<[1], [0], [0], [1], [0, 0, 1, 1], [], []>} : vector<288x4xbf16>, vector<4x128xbf16>, vector<288x128xf32> -> vector<288x128xf32>
    %c0_49 = arith.constant 0 : index
    %c0_50 = arith.constant 0 : index
    %c0_51 = arith.constant 0 : index
    %49 = vector.load %arg4[%c0_49, %c0_50, %c0_51] : memref<1x288x128xf32, #tpu.memory_space<vmem>>, vector<1x288x128xf32>
    %50 = vector.shape_cast %49 : vector<1x288x128xf32> to vector<288x128xf32>
    %51 = arith.addf %50, %48 : vector<288x128xf32>
    %c0_52 = arith.constant 0 : index
    %c0_53 = arith.constant 0 : index
    %c0_54 = arith.constant 0 : index
    %52 = vector.load %arg4[%c0_52, %c0_53, %c0_54] : memref<1x288x128xf32, #tpu.memory_space<vmem>>, vector<1x288x128xf32>
    %53 = vector.shape_cast %52 : vector<1x288x128xf32> to vector<288x128xf32>
    %54 = vector.shape_cast %51 : vector<288x128xf32> to vector<1x288x128xf32>
    tpu.vector_store %arg4[%c0_52, %c0_53, %c0_54], %54 {strides = array<i32>} : memref<1x288x128xf32, #tpu.memory_space<vmem>>, vector<1x288x128xf32>,
    %c0_55 = arith.constant 0 : index
    %c20 = arith.constant 20 : index
    %c0_56 = arith.constant 0 : index
    %55 = vector.load %arg1[%c0_55, %c20, %c0_56] : memref<1x328x4xbf16, #tpu.memory_space<vmem>>, vector<1x288x4xbf16>
    %56 = vector.shape_cast %55 : vector<1x288x4xbf16> to vector<288x4xbf16>
    %c5 = arith.constant 5 : index
    %c0_57 = arith.constant 0 : index
    %c0_58 = arith.constant 0 : index
    %57 = vector.load %arg2[%c5, %c0_57, %c0_58] : memref<9x4x128xbf16, #tpu.memory_space<vmem>>, vector<1x4x128xbf16>
    %58 = vector.shape_cast %57 : vector<1x4x128xbf16> to vector<4x128xbf16>
    %cst_59 = arith.constant dense<0.000000e+00> : vector<288x128xf32>
    %59 = tpu.matmul %56, %58, %cst_59 {dimension_numbers = #tpu.dot_dimension_numbers<[1], [0], [0], [1], [0, 0, 1, 1], [], []>} : vector<288x4xbf16>, vector<4x128xbf16>, vector<288x128xf32> -> vector<288x128xf32>
    %c0_60 = arith.constant 0 : index
    %c0_61 = arith.constant 0 : index
    %c0_62 = arith.constant 0 : index
    %60 = vector.load %arg4[%c0_60, %c0_61, %c0_62] : memref<1x288x128xf32, #tpu.memory_space<vmem>>, vector<1x288x128xf32>
    %61 = vector.shape_cast %60 : vector<1x288x128xf32> to vector<288x128xf32>
    %62 = arith.addf %61, %59 : vector<288x128xf32>
    %c0_63 = arith.constant 0 : index
    %c0_64 = arith.constant 0 : index
    %c0_65 = arith.constant 0 : index
    %63 = vector.load %arg4[%c0_63, %c0_64, %c0_65] : memref<1x288x128xf32, #tpu.memory_space<vmem>>, vector<1x288x128xf32>
    %64 = vector.shape_cast %63 : vector<1x288x128xf32> to vector<288x128xf32>
    %65 = vector.shape_cast %62 : vector<288x128xf32> to vector<1x288x128xf32>
    tpu.vector_store %arg4[%c0_63, %c0_64, %c0_65], %65 {strides = array<i32>} : memref<1x288x128xf32, #tpu.memory_space<vmem>>, vector<1x288x128xf32>,
    %c0_66 = arith.constant 0 : index
    %c36 = arith.constant 36 : index
    %c0_67 = arith.constant 0 : index
    %66 = vector.load %arg1[%c0_66, %c36, %c0_67] : memref<1x328x4xbf16, #tpu.memory_space<vmem>>, vector<1x288x4xbf16>
    %67 = vector.shape_cast %66 : vector<1x288x4xbf16> to vector<288x4xbf16>
    %c6 = arith.constant 6 : index
    %c0_68 = arith.constant 0 : index
    %c0_69 = arith.constant 0 : index
    %68 = vector.load %arg2[%c6, %c0_68, %c0_69] : memref<9x4x128xbf16, #tpu.memory_space<vmem>>, vector<1x4x128xbf16>
    %69 = vector.shape_cast %68 : vector<1x4x128xbf16> to vector<4x128xbf16>
    %cst_70 = arith.constant dense<0.000000e+00> : vector<288x128xf32>
    %70 = tpu.matmul %67, %69, %cst_70 {dimension_numbers = #tpu.dot_dimension_numbers<[1], [0], [0], [1], [0, 0, 1, 1], [], []>} : vector<288x4xbf16>, vector<4x128xbf16>, vector<288x128xf32> -> vector<288x128xf32>
    %c0_71 = arith.constant 0 : index
    %c0_72 = arith.constant 0 : index
    %c0_73 = arith.constant 0 : index
    %71 = vector.load %arg4[%c0_71, %c0_72, %c0_73] : memref<1x288x128xf32, #tpu.memory_space<vmem>>, vector<1x288x128xf32>
    %72 = vector.shape_cast %71 : vector<1x288x128xf32> to vector<288x128xf32>
    %73 = arith.addf %72, %70 : vector<288x128xf32>
    %c0_74 = arith.constant 0 : index
    %c0_75 = arith.constant 0 : index
    %c0_76 = arith.constant 0 : index
    %74 = vector.load %arg4[%c0_74, %c0_75, %c0_76] : memref<1x288x128xf32, #tpu.memory_space<vmem>>, vector<1x288x128xf32>
    %75 = vector.shape_cast %74 : vector<1x288x128xf32> to vector<288x128xf32>
    %76 = vector.shape_cast %73 : vector<288x128xf32> to vector<1x288x128xf32>
    tpu.vector_store %arg4[%c0_74, %c0_75, %c0_76], %76 {strides = array<i32>} : memref<1x288x128xf32, #tpu.memory_space<vmem>>, vector<1x288x128xf32>,
    %c0_77 = arith.constant 0 : index
    %c37 = arith.constant 37 : index
    %c0_78 = arith.constant 0 : index
    %77 = vector.load %arg1[%c0_77, %c37, %c0_78] : memref<1x328x4xbf16, #tpu.memory_space<vmem>>, vector<1x288x4xbf16>
    %78 = vector.shape_cast %77 : vector<1x288x4xbf16> to vector<288x4xbf16>
    %c7 = arith.constant 7 : index
    %c0_79 = arith.constant 0 : index
    %c0_80 = arith.constant 0 : index
    %79 = vector.load %arg2[%c7, %c0_79, %c0_80] : memref<9x4x128xbf16, #tpu.memory_space<vmem>>, vector<1x4x128xbf16>
    %80 = vector.shape_cast %79 : vector<1x4x128xbf16> to vector<4x128xbf16>
    %cst_81 = arith.constant dense<0.000000e+00> : vector<288x128xf32>
    %81 = tpu.matmul %78, %80, %cst_81 {dimension_numbers = #tpu.dot_dimension_numbers<[1], [0], [0], [1], [0, 0, 1, 1], [], []>} : vector<288x4xbf16>, vector<4x128xbf16>, vector<288x128xf32> -> vector<288x128xf32>
    %c0_82 = arith.constant 0 : index
    %c0_83 = arith.constant 0 : index
    %c0_84 = arith.constant 0 : index
    %82 = vector.load %arg4[%c0_82, %c0_83, %c0_84] : memref<1x288x128xf32, #tpu.memory_space<vmem>>, vector<1x288x128xf32>
    %83 = vector.shape_cast %82 : vector<1x288x128xf32> to vector<288x128xf32>
    %84 = arith.addf %83, %81 : vector<288x128xf32>
    %c0_85 = arith.constant 0 : index
    %c0_86 = arith.constant 0 : index
    %c0_87 = arith.constant 0 : index
    %85 = vector.load %arg4[%c0_85, %c0_86, %c0_87] : memref<1x288x128xf32, #tpu.memory_space<vmem>>, vector<1x288x128xf32>
    %86 = vector.shape_cast %85 : vector<1x288x128xf32> to vector<288x128xf32>
    %87 = vector.shape_cast %84 : vector<288x128xf32> to vector<1x288x128xf32>
    tpu.vector_store %arg4[%c0_85, %c0_86, %c0_87], %87 {strides = array<i32>} : memref<1x288x128xf32, #tpu.memory_space<vmem>>, vector<1x288x128xf32>,
    %c0_88 = arith.constant 0 : index
    %c38 = arith.constant 38 : index
    %c0_89 = arith.constant 0 : index
    %88 = vector.load %arg1[%c0_88, %c38, %c0_89] : memref<1x328x4xbf16, #tpu.memory_space<vmem>>, vector<1x288x4xbf16>
    %89 = vector.shape_cast %88 : vector<1x288x4xbf16> to vector<288x4xbf16>
    %c8 = arith.constant 8 : index
    %c0_90 = arith.constant 0 : index
    %c0_91 = arith.constant 0 : index
    %90 = vector.load %arg2[%c8, %c0_90, %c0_91] : memref<9x4x128xbf16, #tpu.memory_space<vmem>>, vector<1x4x128xbf16>
    %91 = vector.shape_cast %90 : vector<1x4x128xbf16> to vector<4x128xbf16>
    %cst_92 = arith.constant dense<0.000000e+00> : vector<288x128xf32>
    %92 = tpu.matmul %89, %91, %cst_92 {dimension_numbers = #tpu.dot_dimension_numbers<[1], [0], [0], [1], [0, 0, 1, 1], [], []>} : vector<288x4xbf16>, vector<4x128xbf16>, vector<288x128xf32> -> vector<288x128xf32>
    %c0_93 = arith.constant 0 : index
    %c0_94 = arith.constant 0 : index
    %c0_95 = arith.constant 0 : index
    %93 = vector.load %arg4[%c0_93, %c0_94, %c0_95] : memref<1x288x128xf32, #tpu.memory_space<vmem>>, vector<1x288x128xf32>
    %94 = vector.shape_cast %93 : vector<1x288x128xf32> to vector<288x128xf32>
    %95 = arith.addf %94, %92 : vector<288x128xf32>
    %c0_96 = arith.constant 0 : index
    %c0_97 = arith.constant 0 : index
    %c0_98 = arith.constant 0 : index
    %96 = vector.load %arg4[%c0_96, %c0_97, %c0_98] : memref<1x288x128xf32, #tpu.memory_space<vmem>>, vector<1x288x128xf32>
    %97 = vector.shape_cast %96 : vector<1x288x128xf32> to vector<288x128xf32>
    %98 = vector.shape_cast %95 : vector<288x128xf32> to vector<1x288x128xf32>
    tpu.vector_store %arg4[%c0_96, %c0_97, %c0_98], %98 {strides = array<i32>} : memref<1x288x128xf32, #tpu.memory_space<vmem>>, vector<1x288x128xf32>,
    %c0_99 = arith.constant 0 : index
    %c0_100 = arith.constant 0 : index
    %c0_101 = arith.constant 0 : index
    %99 = vector.load %arg4[%c0_99, %c0_100, %c0_101] : memref<1x288x128xf32, #tpu.memory_space<vmem>>, vector<1x288x128xf32>
    %100 = vector.shape_cast %99 : vector<1x288x128xf32> to vector<288x128xf32>
    %c0_102 = arith.constant 0 : index
    %c0_103 = arith.constant 0 : index
    %101 = vector.load %arg3[%c0_102, %c0_103] : memref<288x1xf32, #tpu.memory_space<vmem>>, vector<288x1xf32>
    %102 = vector.broadcast %101 : vector<288x1xf32> to vector<288x128xf32>
    %103 = arith.mulf %100, %102 : vector<288x128xf32>
    %c0_104 = arith.constant 0 : index
    %c0_105 = arith.constant 0 : index
    %104 = vector.load %arg5[%c0_104, %c0_105] : memref<8x128xf32, #tpu.memory_space<vmem>>, vector<1x128xf32>
    %cst_106 = arith.constant dense<0.000000e+00> : vector<128xf32>
    %105 = vector.multi_reduction <add>, %103, %cst_106 [0] : vector<288x128xf32> to vector<128xf32>
    %106 = vector.shape_cast %105 : vector<128xf32> to vector<1x128xf32>
    %107 = arith.addf %104, %106 : vector<1x128xf32>
    %c0_107 = arith.constant 0 : index
    %c0_108 = arith.constant 0 : index
    %108 = vector.load %arg5[%c0_107, %c0_108] : memref<8x128xf32, #tpu.memory_space<vmem>>, vector<1x128xf32>
    tpu.vector_store %arg5[%c0_107, %c0_108], %107 {strides = array<i32>} : memref<8x128xf32, #tpu.memory_space<vmem>>, vector<1x128xf32>,
    %c1_109 = arith.constant 1 : index
    %c0_110 = arith.constant 0 : index
    %109 = vector.load %arg5[%c1_109, %c0_110] : memref<8x128xf32, #tpu.memory_space<vmem>>, vector<1x128xf32>
    %110 = arith.mulf %103, %103 : vector<288x128xf32>
    %cst_111 = arith.constant dense<0.000000e+00> : vector<128xf32>
    %111 = vector.multi_reduction <add>, %110, %cst_111 [0] : vector<288x128xf32> to vector<128xf32>
    %112 = vector.shape_cast %111 : vector<128xf32> to vector<1x128xf32>
    %113 = arith.addf %109, %112 : vector<1x128xf32>
    %c1_112 = arith.constant 1 : index
    %c0_113 = arith.constant 0 : index
    %114 = vector.load %arg5[%c1_112, %c0_113] : memref<8x128xf32, #tpu.memory_space<vmem>>, vector<1x128xf32>
    tpu.vector_store %arg5[%c1_112, %c0_113], %113 {strides = array<i32>} : memref<8x128xf32, #tpu.memory_space<vmem>>, vector<1x128xf32>,
    return
  }
  func.func @transform_0(%arg0: i32) -> (i32, i32, i32) {
    %c0_i32 = arith.constant 0 : i32
    %c0_i32_0 = arith.constant 0 : i32
    %c0_i32_1 = arith.constant 0 : i32
    return %arg0, %c0_i32, %c0_i32_0 : i32, i32, i32
  }
  func.func @transform_1(%arg0: i32) -> (i32, i32, i32) {
    %c0_i32 = arith.constant 0 : i32
    %c0_i32_0 = arith.constant 0 : i32
    %c0_i32_1 = arith.constant 0 : i32
    %c0_i32_2 = arith.constant 0 : i32
    return %c0_i32, %c0_i32_0, %c0_i32_1 : i32, i32, i32
  }
  func.func @transform_2(%arg0: i32) -> (i32, i32) {
    %c0_i32 = arith.constant 0 : i32
    %c0_i32_0 = arith.constant 0 : i32
    %c0_i32_1 = arith.constant 0 : i32
    return %c0_i32, %c0_i32_0 : i32, i32
  }
  func.func @transform_3(%arg0: i32) -> (i32, i32, i32) {
    %c0_i32 = arith.constant 0 : i32
    %c0_i32_0 = arith.constant 0 : i32
    %c0_i32_1 = arith.constant 0 : i32
    return %arg0, %c0_i32, %c0_i32_0 : i32, i32, i32
  }
  func.func @transform_4(%arg0: i32) -> (i32, i32) {
    %c0_i32 = arith.constant 0 : i32
    %c0_i32_0 = arith.constant 0 : i32
    %c0_i32_1 = arith.constant 0 : i32
    return %c0_i32, %c0_i32_0 : i32, i32
  }
}

module attributes {stable_mosaic.version = 11 : i64} {
  func.func @_bn_relu_kernel(%arg0: i32, %arg1: memref<2x288x128xf32, #tpu.memory_space<vmem>>, %arg2: memref<1x1x128xf32, #tpu.memory_space<vmem>>, %arg3: memref<1x1x128xf32, #tpu.memory_space<vmem>>, %arg4: memref<2x288x128xf32, #tpu.memory_space<vmem>>) attributes {dimension_semantics = [#tpu.dimension_semantics<parallel>], iteration_bounds = array<i64: 1>, scalar_prefetch = 0 : i64, scratch_operands = 0 : i64, tpu.core_type = #tpu.core_type<tc>, window_params = [{transform_indices = @transform_0, window_bounds = array<i64: 2, 288, 128>}, {pipeline_mode = #tpu.pipeline_mode<synchronous>, transform_indices = @transform_1, window_bounds = array<i64: 1, 1, 128>}, {pipeline_mode = #tpu.pipeline_mode<synchronous>, transform_indices = @transform_2, window_bounds = array<i64: 1, 1, 128>}, {transform_indices = @transform_3, window_bounds = array<i64: 2, 288, 128>}]} {
    %c0 = arith.constant 0 : index
    %c0_0 = arith.constant 0 : index
    %c0_1 = arith.constant 0 : index
    %0 = vector.load %arg1[%c0, %c0_0, %c0_1] : memref<2x288x128xf32, #tpu.memory_space<vmem>>, vector<2x288x128xf32>
    %c0_2 = arith.constant 0 : index
    %c0_3 = arith.constant 0 : index
    %c0_4 = arith.constant 0 : index
    %1 = vector.load %arg2[%c0_2, %c0_3, %c0_4] : memref<1x1x128xf32, #tpu.memory_space<vmem>>, vector<1x1x128xf32>
    %2 = vector.broadcast %1 : vector<1x1x128xf32> to vector<2x288x128xf32>
    %3 = arith.mulf %0, %2 : vector<2x288x128xf32>
    %c0_5 = arith.constant 0 : index
    %c0_6 = arith.constant 0 : index
    %c0_7 = arith.constant 0 : index
    %4 = vector.load %arg3[%c0_5, %c0_6, %c0_7] : memref<1x1x128xf32, #tpu.memory_space<vmem>>, vector<1x1x128xf32>
    %5 = vector.broadcast %4 : vector<1x1x128xf32> to vector<2x288x128xf32>
    %6 = arith.addf %3, %5 : vector<2x288x128xf32>
    %cst = arith.constant 0.000000e+00 : f32
    %7 = vector.broadcast %cst : f32 to vector<2x288x128xf32>
    %8 = arith.maximumf %6, %7 : vector<2x288x128xf32>
    %c0_8 = arith.constant 0 : index
    %c0_9 = arith.constant 0 : index
    %c0_10 = arith.constant 0 : index
    %9 = vector.load %arg4[%c0_8, %c0_9, %c0_10] : memref<2x288x128xf32, #tpu.memory_space<vmem>>, vector<2x288x128xf32>
    tpu.vector_store %arg4[%c0_8, %c0_9, %c0_10], %8 {strides = array<i32>} : memref<2x288x128xf32, #tpu.memory_space<vmem>>, vector<2x288x128xf32>,
    return
  }
  func.func @transform_0(%arg0: i32) -> (i32, i32, i32) {
    %c0_i32 = arith.constant 0 : i32
    %c0_i32_0 = arith.constant 0 : i32
    %c0_i32_1 = arith.constant 0 : i32
    return %arg0, %c0_i32, %c0_i32_0 : i32, i32, i32
  }
  func.func @transform_1(%arg0: i32) -> (i32, i32, i32) {
    %c0_i32 = arith.constant 0 : i32
    %c0_i32_0 = arith.constant 0 : i32
    %c0_i32_1 = arith.constant 0 : i32
    %c0_i32_2 = arith.constant 0 : i32
    return %c0_i32, %c0_i32_0, %c0_i32_1 : i32, i32, i32
  }
  func.func @transform_2(%arg0: i32) -> (i32, i32, i32) {
    %c0_i32 = arith.constant 0 : i32
    %c0_i32_0 = arith.constant 0 : i32
    %c0_i32_1 = arith.constant 0 : i32
    %c0_i32_2 = arith.constant 0 : i32
    return %c0_i32, %c0_i32_0, %c0_i32_1 : i32, i32, i32
  }
  func.func @transform_3(%arg0: i32) -> (i32, i32, i32) {
    %c0_i32 = arith.constant 0 : i32
    %c0_i32_0 = arith.constant 0 : i32
    %c0_i32_1 = arith.constant 0 : i32
    return %arg0, %c0_i32, %c0_i32_0 : i32, i32, i32
  }
}

</mosaic_0001>

<llo_original>
// kernel: _lambda_.3
$region0: #{_lambda_.3}
  #allocation0 [shape = 'u32[]', space=smem, size = 0x4, offset = 0x4, fixed_abs, tag = 'smem constant byte address 0x4 - core index']
  #allocation1 [shape = 'u32[144,128]{1,0:T(1,128)}', space=vmem, size = 0x12000, scoped, tag = 'internal scratch']
  %s0 = inlined_call_operand.vmem [shape: f32[2,288,128], index: 0, kind: input, shape index: {}, may-alias: {0,3}]
  %s1 = inlined_call_operand.vmem [shape: f32[1,1,128], index: 1, kind: input, shape index: {}]
  %s2 = inlined_call_operand.vmem [shape: f32[1,1,128], index: 2, kind: input, shape index: {}]
  %s3 = inlined_call_operand.vmem [shape: f32[2,288,128], index: 3, kind: output, shape index: {}, may-alias: {0,3}]
  %s4 = sld [smem:[#allocation0]]
  $region22: #{_lambda_.3} parent=0
    _
  %s6 = ssub.s32 1, %s4
  %s7 = scalar_select 0, %s6, %s4
  // Predicated region
  $region2: #{_lambda_.3} parent=0 // pred_check
    _
  $region3: #{_lambda_.3} parent=0 // pred_check_branch
    %9 = sbr.rel (0) target = $region5
  $region4: #{_lambda_.3} parent=0 // pred_region
    _
  $region5: #{_lambda_.3} parent=0 // pred_fallthru
    _
  // Predicated region
  $region6: #{_lambda_.3} parent=0 // pred_check
    _
  $region7: #{_lambda_.3} parent=0 // pred_check_branch
    %11 = sbr.rel (0) target = $region9
  $region8: #{_lambda_.3} parent=0 // pred_region
    _
  $region9: #{_lambda_.3} parent=0 // pred_fallthru
    _
  // Predicated region
  $region10: #{_lambda_.3} parent=0 // pred_check
    _
  $region11: #{_lambda_.3} parent=0 // pred_check_branch
    %13 = sbr.rel (0) target = $region13
  $region12: #{_lambda_.3} parent=0 // pred_region
    _
  $region13: #{_lambda_.3} parent=0 // pred_fallthru
    _
  %v14 = vld [vmem:[%s0] sm:$0xff]
  %v15 = vld [vmem:[%s0 + $0x8] sm:$0xff]
  %v16 = vld [vmem:[%s0 + $0x10] sm:$0xff]
  %v17 = vld [vmem:[%s0 + $0x18] sm:$0xff]
  %v18 = vld [vmem:[%s0 + $0x20] sm:$0xff]
  %v19 = vld [vmem:[%s0 + $0x28] sm:$0xff]
  %v20 = vld [vmem:[%s0 + $0x30] sm:$0xff]
  %v21 = vld [vmem:[%s0 + $0x38] sm:$0xff]
  %v22 = vld [vmem:[%s0 + $0x40] sm:$0xff]
  %v23 = vld [vmem:[%s0 + $0x48] sm:$0xff]
  %v24 = vld [vmem:[%s0 + $0x50] sm:$0xff]
  %v25 = vld [vmem:[%s0 + $0x58] sm:$0xff]
  %v26 = vld [vmem:[%s0 + $0x60] sm:$0xff]
  %v27 = vld [vmem:[%s0 + $0x68] sm:$0xff]
  %v28 = vld [vmem:[%s0 + $0x70] sm:$0xff]
  %v29 = vld [vmem:[%s0 + $0x78] sm:$0xff]
  %v30 = vld [vmem:[%s0 + $0x80] sm:$0xff]
  %v31 = vld [vmem:[%s0 + $0x88] sm:$0xff]
  %v32 = vld [vmem:[%s0 + $0x90] sm:$0xff]
  %v33 = vld [vmem:[%s0 + $0x98] sm:$0xff]
  %v34 = vld [vmem:[%s0 + $0xa0] sm:$0xff]
  %v35 = vld [vmem:[%s0 + $0xa8] sm:$0xff]
  %v36 = vld [vmem:[%s0 + $0xb0] sm:$0xff]
  %v37 = vld [vmem:[%s0 + $0xb8] sm:$0xff]
  %v38 = vld [vmem:[%s0 + $0xc0] sm:$0xff]
  %v39 = vld [vmem:[%s0 + $0xc8] sm:$0xff]
  %v40 = vld [vmem:[%s0 + $0xd0] sm:$0xff]
  %v41 = vld [vmem:[%s0 + $0xd8] sm:$0xff]
  %v42 = vld [vmem:[%s0 + $0xe0] sm:$0xff]
  %v43 = vld [vmem:[%s0 + $0xe8] sm:$0xff]
  %v44 = vld [vmem:[%s0 + $0xf0] sm:$0xff]
  %v45 = vld [vmem:[%s0 + $0xf8] sm:$0xff]
  %v46 = vld [vmem:[%s0 + $0x100] sm:$0xff]
  %v47 = vld [vmem:[%s0 + $0x108] sm:$0xff]
  %v48 = vld [vmem:[%s0 + $0x110] sm:$0xff]
  %v49 = vld [vmem:[%s0 + $0x118] sm:$0xff]
  %v50 = vld [vmem:[%s0 + $0x120] sm:$0xff]
  %v51 = vld [vmem:[%s0 + $0x128] sm:$0xff]
  %v52 = vld [vmem:[%s0 + $0x130] sm:$0xff]
  %v53 = vld [vmem:[%s0 + $0x138] sm:$0xff]
  %v54 = vld [vmem:[%s0 + $0x140] sm:$0xff]
  %v55 = vld [vmem:[%s0 + $0x148] sm:$0xff]
  %v56 = vld [vmem:[%s0 + $0x150] sm:$0xff]
  %v57 = vld [vmem:[%s0 + $0x158] sm:$0xff]
  %v58 = vld [vmem:[%s0 + $0x160] sm:$0xff]
  %v59 = vld [vmem:[%s0 + $0x168] sm:$0xff]
  %v60 = vld [vmem:[%s0 + $0x170] sm:$0xff]
  %v61 = vld [vmem:[%s0 + $0x178] sm:$0xff]
  %v62 = vld [vmem:[%s0 + $0x180] sm:$0xff]
  %v63 = vld [vmem:[%s0 + $0x188] sm:$0xff]
  %v64 = vld [vmem:[%s0 + $0x190] sm:$0xff]
  %v65 = vld [vmem:[%s0 + $0x198] sm:$0xff]
  %v66 = vld [vmem:[%s0 + $0x1a0] sm:$0xff]
  %v67 = vld [vmem:[%s0 + $0x1a8] sm:$0xff]
  %v68 = vld [vmem:[%s0 + $0x1b0] sm:$0xff]
  %v69 = vld [vmem:[%s0 + $0x1b8] sm:$0xff]
  %v70 = vld [vmem:[%s0 + $0x1c0] sm:$0xff]
  %v71 = vld [vmem:[%s0 + $0x1c8] sm:$0xff]
  %v72 = vld [vmem:[%s0 + $0x1d0] sm:$0xff]
  %v73 = vld [vmem:[%s0 + $0x1d8] sm:$0xff]
  %v74 = vld [vmem:[%s0 + $0x1e0] sm:$0xff]
  %v75 = vld [vmem:[%s0 + $0x1e8] sm:$0xff]
  %v76 = vld [vmem:[%s0 + $0x1f0] sm:$0xff]
  %v77 = vld [vmem:[%s0 + $0x1f8] sm:$0xff]
  %v78 = vld [vmem:[%s0 + $0x200] sm:$0xff]
  %v79 = vld [vmem:[%s0 + $0x208] sm:$0xff]
  %v80 = vld [vmem:[%s0 + $0x210] sm:$0xff]
  %v81 = vld [vmem:[%s0 + $0x218] sm:$0xff]
  %v82 = vld [vmem:[%s0 + $0x220] sm:$0xff]
  %v83 = vld [vmem:[%s0 + $0x228] sm:$0xff]
  %v84 = vld [vmem:[%s0 + $0x230] sm:$0xff]
  %v85 = vld [vmem:[%s0 + $0x238] sm:$0xff]
  %v86 = vld [vmem:[%s1] sm:$0x1]
  %v88 = vlaneseq
  %v89 = vshrl.u32 %v88, 7
  %v90 = vsub.s32 0, %v89
  %v91 = vrot.slane %v86, %v90
  %v93 = vmul.f32 %v14, %v91
  %v94 = vmul.f32 %v15, %v91
  %v95 = vmul.f32 %v16, %v91
  %v96 = vmul.f32 %v17, %v91
  %v97 = vmul.f32 %v18, %v91
  %v98 = vmul.f32 %v19, %v91
  %v99 = vmul.f32 %v20, %v91
  %v100 = vmul.f32 %v21, %v91
  %v101 = vmul.f32 %v22, %v91
  %v102 = vmul.f32 %v23, %v91
  %v103 = vmul.f32 %v24, %v91
  %v104 = vmul.f32 %v25, %v91
  %v105 = vmul.f32 %v26, %v91
  %v106 = vmul.f32 %v27, %v91
  %v107 = vmul.f32 %v28, %v91
  %v108 = vmul.f32 %v29, %v91
  %v109 = vmul.f32 %v30, %v91
  %v110 = vmul.f32 %v31, %v91
  %v111 = vmul.f32 %v32, %v91
  %v112 = vmul.f32 %v33, %v91
  %v113 = vmul.f32 %v34, %v91
  %v114 = vmul.f32 %v35, %v91
  %v115 = vmul.f32 %v36, %v91
  %v116 = vmul.f32 %v37, %v91
  %v117 = vmul.f32 %v38, %v91
  %v118 = vmul.f32 %v39, %v91
  %v119 = vmul.f32 %v40, %v91
  %v120 = vmul.f32 %v41, %v91
  %v121 = vmul.f32 %v42, %v91
  %v122 = vmul.f32 %v43, %v91
  %v123 = vmul.f32 %v44, %v91
  %v124 = vmul.f32 %v45, %v91
  %v125 = vmul.f32 %v46, %v91
  %v126 = vmul.f32 %v47, %v91
  %v127 = vmul.f32 %v48, %v91
  %v128 = vmul.f32 %v49, %v91
  %v129 = vmul.f32 %v50, %v91
  %v130 = vmul.f32 %v51, %v91
  %v131 = vmul.f32 %v52, %v91
  %v132 = vmul.f32 %v53, %v91
  %v133 = vmul.f32 %v54, %v91
  %v134 = vmul.f32 %v55, %v91
  %v135 = vmul.f32 %v56, %v91
  %v136 = vmul.f32 %v57, %v91
  %v137 = vmul.f32 %v58, %v91
  %v138 = vmul.f32 %v59, %v91
  %v139 = vmul.f32 %v60, %v91
  %v140 = vmul.f32 %v61, %v91
  %v141 = vmul.f32 %v62, %v91
  %v142 = vmul.f32 %v63, %v91
  %v143 = vmul.f32 %v64, %v91
  %v144 = vmul.f32 %v65, %v91
  %v145 = vmul.f32 %v66, %v91
  %v146 = vmul.f32 %v67, %v91
  %v147 = vmul.f32 %v68, %v91
  %v148 = vmul.f32 %v69, %v91
  %v149 = vmul.f32 %v70, %v91
  %v150 = vmul.f32 %v71, %v91
  %v151 = vmul.f32 %v72, %v91
  %v152 = vmul.f32 %v73, %v91
  %v153 = vmul.f32 %v74, %v91
  %v154 = vmul.f32 %v75, %v91
  %v155 = vmul.f32 %v76, %v91
  %v156 = vmul.f32 %v77, %v91
  %v157 = vmul.f32 %v78, %v91
  %v158 = vmul.f32 %v79, %v91
  %v159 = vmul.f32 %v80, %v91
  %v160 = vmul.f32 %v81, %v91
  %v161 = vmul.f32 %v82, %v91
  %v162 = vmul.f32 %v83, %v91
  %v163 = vmul.f32 %v84, %v91
  %v164 = vmul.f32 %v85, %v91
  %v165 = vld [vmem:[%s2] sm:$0x1]
  %v167 = vlaneseq
  %v168 = vshrl.u32 %v167, 7
  %v169 = vsub.s32 0, %v168
  %v170 = vrot.slane %v165, %v169
  %v172 = vadd.f32 %v93, %v170
  %v173 = vadd.f32 %v94, %v170
  %v174 = vadd.f32 %v95, %v170
  %v175 = vadd.f32 %v96, %v170
  %v176 = vadd.f32 %v97, %v170
  %v177 = vadd.f32 %v98, %v170
  %v178 = vadd.f32 %v99, %v170
  %v179 = vadd.f32 %v100, %v170
  %v180 = vadd.f32 %v101, %v170
  %v181 = vadd.f32 %v102, %v170
  %v182 = vadd.f32 %v103, %v170
  %v183 = vadd.f32 %v104, %v170
  %v184 = vadd.f32 %v105, %v170
  %v185 = vadd.f32 %v106, %v170
  %v186 = vadd.f32 %v107, %v170
  %v187 = vadd.f32 %v108, %v170
  %v188 = vadd.f32 %v109, %v170
  %v189 = vadd.f32 %v110, %v170
  %v190 = vadd.f32 %v111, %v170
  %v191 = vadd.f32 %v112, %v170
  %v192 = vadd.f32 %v113, %v170
  %v193 = vadd.f32 %v114, %v170
  %v194 = vadd.f32 %v115, %v170
  %v195 = vadd.f32 %v116, %v170
  %v196 = vadd.f32 %v117, %v170
  %v197 = vadd.f32 %v118, %v170
  %v198 = vadd.f32 %v119, %v170
  %v199 = vadd.f32 %v120, %v170
  %v200 = vadd.f32 %v121, %v170
  %v201 = vadd.f32 %v122, %v170
  %v202 = vadd.f32 %v123, %v170
  %v203 = vadd.f32 %v124, %v170
  %v204 = vadd.f32 %v125, %v170
  %v205 = vadd.f32 %v126, %v170
  %v206 = vadd.f32 %v127, %v170
  %v207 = vadd.f32 %v128, %v170
  %v208 = vadd.f32 %v129, %v170
  %v209 = vadd.f32 %v130, %v170
  %v210 = vadd.f32 %v131, %v170
  %v211 = vadd.f32 %v132, %v170
  %v212 = vadd.f32 %v133, %v170
  %v213 = vadd.f32 %v134, %v170
  %v214 = vadd.f32 %v135, %v170
  %v215 = vadd.f32 %v136, %v170
  %v216 = vadd.f32 %v137, %v170
  %v217 = vadd.f32 %v138, %v170
  %v218 = vadd.f32 %v139, %v170
  %v219 = vadd.f32 %v140, %v170
  %v220 = vadd.f32 %v141, %v170
  %v221 = vadd.f32 %v142, %v170
  %v222 = vadd.f32 %v143, %v170
  %v223 = vadd.f32 %v144, %v170
  %v224 = vadd.f32 %v145, %v170
  %v225 = vadd.f32 %v146, %v170
  %v226 = vadd.f32 %v147, %v170
  %v227 = vadd.f32 %v148, %v170
  %v228 = vadd.f32 %v149, %v170
  %v229 = vadd.f32 %v150, %v170
  %v230 = vadd.f32 %v151, %v170
  %v231 = vadd.f32 %v152, %v170
  %v232 = vadd.f32 %v153, %v170
  %v233 = vadd.f32 %v154, %v170
  %v234 = vadd.f32 %v155, %v170
  %v235 = vadd.f32 %v156, %v170
  %v236 = vadd.f32 %v157, %v170
  %v237 = vadd.f32 %v158, %v170
  %v238 = vadd.f32 %v159, %v170
  %v239 = vadd.f32 %v160, %v170
  %v240 = vadd.f32 %v161, %v170
  %v241 = vadd.f32 %v162, %v170
  %v242 = vadd.f32 %v163, %v170
  %v243 = vadd.f32 %v164, %v170
  %v244 = vmax.f32 %v172, 0.0
  %v245 = vmax.f32 %v173, 0.0
  %v246 = vmax.f32 %v174, 0.0
  %v247 = vmax.f32 %v175, 0.0
  %v248 = vmax.f32 %v176, 0.0
  %v249 = vmax.f32 %v177, 0.0
  %v250 = vmax.f32 %v178, 0.0
  %v251 = vmax.f32 %v179, 0.0
  %v252 = vmax.f32 %v180, 0.0
  %v253 = vmax.f32 %v181, 0.0
  %v254 = vmax.f32 %v182, 0.0
  %v255 = vmax.f32 %v183, 0.0
  %v256 = vmax.f32 %v184, 0.0
  %v257 = vmax.f32 %v185, 0.0
  %v258 = vmax.f32 %v186, 0.0
  %v259 = vmax.f32 %v187, 0.0
  %v260 = vmax.f32 %v188, 0.0
  %v261 = vmax.f32 %v189, 0.0
  %v262 = vmax.f32 %v190, 0.0
  %v263 = vmax.f32 %v191, 0.0
  %v264 = vmax.f32 %v192, 0.0
  %v265 = vmax.f32 %v193, 0.0
  %v266 = vmax.f32 %v194, 0.0
  %v267 = vmax.f32 %v195, 0.0
  %v268 = vmax.f32 %v196, 0.0
  %v269 = vmax.f32 %v197, 0.0
  %v270 = vmax.f32 %v198, 0.0
  %v271 = vmax.f32 %v199, 0.0
  %v272 = vmax.f32 %v200, 0.0
  %v273 = vmax.f32 %v201, 0.0
  %v274 = vmax.f32 %v202, 0.0
  %v275 = vmax.f32 %v203, 0.0
  %v276 = vmax.f32 %v204, 0.0
  %v277 = vmax.f32 %v205, 0.0
  %v278 = vmax.f32 %v206, 0.0
  %v279 = vmax.f32 %v207, 0.0
  %v280 = vmax.f32 %v208, 0.0
  %v281 = vmax.f32 %v209, 0.0
  %v282 = vmax.f32 %v210, 0.0
  %v283 = vmax.f32 %v211, 0.0
  %v284 = vmax.f32 %v212, 0.0
  %v285 = vmax.f32 %v213, 0.0
  %v286 = vmax.f32 %v214, 0.0
  %v287 = vmax.f32 %v215, 0.0
  %v288 = vmax.f32 %v216, 0.0
  %v289 = vmax.f32 %v217, 0.0
  %v290 = vmax.f32 %v218, 0.0
  %v291 = vmax.f32 %v219, 0.0
  %v292 = vmax.f32 %v220, 0.0
  %v293 = vmax.f32 %v221, 0.0
  %v294 = vmax.f32 %v222, 0.0
  %v295 = vmax.f32 %v223, 0.0
  %v296 = vmax.f32 %v224, 0.0
  %v297 = vmax.f32 %v225, 0.0
  %v298 = vmax.f32 %v226, 0.0
  %v299 = vmax.f32 %v227, 0.0
  %v300 = vmax.f32 %v228, 0.0
  %v301 = vmax.f32 %v229, 0.0
  %v302 = vmax.f32 %v230, 0.0
  %v303 = vmax.f32 %v231, 0.0
  %v304 = vmax.f32 %v232, 0.0
  %v305 = vmax.f32 %v233, 0.0
  %v306 = vmax.f32 %v234, 0.0
  %v307 = vmax.f32 %v235, 0.0
  %v308 = vmax.f32 %v236, 0.0
  %v309 = vmax.f32 %v237, 0.0
  %v310 = vmax.f32 %v238, 0.0
  %v311 = vmax.f32 %v239, 0.0
  %v312 = vmax.f32 %v240, 0.0
  %v313 = vmax.f32 %v241, 0.0
  %v314 = vmax.f32 %v242, 0.0
  %v315 = vmax.f32 %v243, 0.0
  %316 = vst [vmem:[%s3] sm:$0xff] %v244
  %317 = vst [vmem:[%s3 + $0x8] sm:$0xff] %v245
  %318 = vst [vmem:[%s3 + $0x10] sm:$0xff] %v246
  %319 = vst [vmem:[%s3 + $0x18] sm:$0xff] %v247
  %320 = vst [vmem:[%s3 + $0x20] sm:$0xff] %v248
  %321 = vst [vmem:[%s3 + $0x28] sm:$0xff] %v249
  %322 = vst [vmem:[%s3 + $0x30] sm:$0xff] %v250
  %323 = vst [vmem:[%s3 + $0x38] sm:$0xff] %v251
  %324 = vst [vmem:[%s3 + $0x40] sm:$0xff] %v252
  %325 = vst [vmem:[%s3 + $0x48] sm:$0xff] %v253
  %326 = vst [vmem:[%s3 + $0x50] sm:$0xff] %v254
  %327 = vst [vmem:[%s3 + $0x58] sm:$0xff] %v255
  %328 = vst [vmem:[%s3 + $0x60] sm:$0xff] %v256
  %329 = vst [vmem:[%s3 + $0x68] sm:$0xff] %v257
  %330 = vst [vmem:[%s3 + $0x70] sm:$0xff] %v258
  %331 = vst [vmem:[%s3 + $0x78] sm:$0xff] %v259
  %332 = vst [vmem:[%s3 + $0x80] sm:$0xff] %v260
  %333 = vst [vmem:[%s3 + $0x88] sm:$0xff] %v261
  %334 = vst [vmem:[%s3 + $0x90] sm:$0xff] %v262
  %335 = vst [vmem:[%s3 + $0x98] sm:$0xff] %v263
  %336 = vst [vmem:[%s3 + $0xa0] sm:$0xff] %v264
  %337 = vst [vmem:[%s3 + $0xa8] sm:$0xff] %v265
  %338 = vst [vmem:[%s3 + $0xb0] sm:$0xff] %v266
  %339 = vst [vmem:[%s3 + $0xb8] sm:$0xff] %v267
  %340 = vst [vmem:[%s3 + $0xc0] sm:$0xff] %v268
  %341 = vst [vmem:[%s3 + $0xc8] sm:$0xff] %v269
  %342 = vst [vmem:[%s3 + $0xd0] sm:$0xff] %v270
  %343 = vst [vmem:[%s3 + $0xd8] sm:$0xff] %v271
  %344 = vst [vmem:[%s3 + $0xe0] sm:$0xff] %v272
  %345 = vst [vmem:[%s3 + $0xe8] sm:$0xff] %v273
  %346 = vst [vmem:[%s3 + $0xf0] sm:$0xff] %v274
  %347 = vst [vmem:[%s3 + $0xf8] sm:$0xff] %v275
  %348 = vst [vmem:[%s3 + $0x100] sm:$0xff] %v276
  %349 = vst [vmem:[%s3 + $0x108] sm:$0xff] %v277
  %350 = vst [vmem:[%s3 + $0x110] sm:$0xff] %v278
  %351 = vst [vmem:[%s3 + $0x118] sm:$0xff] %v279
  %352 = vst [vmem:[%s3 + $0x120] sm:$0xff] %v280
  %353 = vst [vmem:[%s3 + $0x128] sm:$0xff] %v281
  %354 = vst [vmem:[%s3 + $0x130] sm:$0xff] %v282
  %355 = vst [vmem:[%s3 + $0x138] sm:$0xff] %v283
  %356 = vst [vmem:[%s3 + $0x140] sm:$0xff] %v284
  %357 = vst [vmem:[%s3 + $0x148] sm:$0xff] %v285
  %358 = vst [vmem:[%s3 + $0x150] sm:$0xff] %v286
  %359 = vst [vmem:[%s3 + $0x158] sm:$0xff] %v287
  %360 = vst [vmem:[%s3 + $0x160] sm:$0xff] %v288
  %361 = vst [vmem:[%s3 + $0x168] sm:$0xff] %v289
  %362 = vst [vmem:[%s3 + $0x170] sm:$0xff] %v290
  %363 = vst [vmem:[%s3 + $0x178] sm:$0xff] %v291
  %364 = vst [vmem:[%s3 + $0x180] sm:$0xff] %v292
  %365 = vst [vmem:[%s3 + $0x188] sm:$0xff] %v293
  %366 = vst [vmem:[%s3 + $0x190] sm:$0xff] %v294
  %367 = vst [vmem:[%s3 + $0x198] sm:$0xff] %v295
  %368 = vst [vmem:[%s3 + $0x1a0] sm:$0xff] %v296
  %369 = vst [vmem:[%s3 + $0x1a8] sm:$0xff] %v297
  %370 = vst [vmem:[%s3 + $0x1b0] sm:$0xff] %v298
  %371 = vst [vmem:[%s3 + $0x1b8] sm:$0xff] %v299
  %372 = vst [vmem:[%s3 + $0x1c0] sm:$0xff] %v300
  %373 = vst [vmem:[%s3 + $0x1c8] sm:$0xff] %v301
  %374 = vst [vmem:[%s3 + $0x1d0] sm:$0xff] %v302
  %375 = vst [vmem:[%s3 + $0x1d8] sm:$0xff] %v303
  %376 = vst [vmem:[%s3 + $0x1e0] sm:$0xff] %v304
  %377 = vst [vmem:[%s3 + $0x1e8] sm:$0xff] %v305
  %378 = vst [vmem:[%s3 + $0x1f0] sm:$0xff] %v306
  %379 = vst [vmem:[%s3 + $0x1f8] sm:$0xff] %v307
  %380 = vst [vmem:[%s3 + $0x200] sm:$0xff] %v308
  %381 = vst [vmem:[%s3 + $0x208] sm:$0xff] %v309
  %382 = vst [vmem:[%s3 + $0x210] sm:$0xff] %v310
  %383 = vst [vmem:[%s3 + $0x218] sm:$0xff] %v311
  %384 = vst [vmem:[%s3 + $0x220] sm:$0xff] %v312
  %385 = vst [vmem:[%s3 + $0x228] sm:$0xff] %v313
  %386 = vst [vmem:[%s3 + $0x230] sm:$0xff] %v314
  %387 = vst [vmem:[%s3 + $0x238] sm:$0xff] %v315
  // Predicated region
  $region14: #{_lambda_.3} parent=0 // pred_check
    _
  $region15: #{_lambda_.3} parent=0 // pred_check_branch
    %389 = sbr.rel (0) target = $region17
  $region16: #{_lambda_.3} parent=0 // pred_region
    _
  $region17: #{_lambda_.3} parent=0 // pred_fallthru
    _
  // Predicated region
  $region18: #{_lambda_.3} parent=0 // pred_check
    _
  $region19: #{_lambda_.3} parent=0 // pred_check_branch
    %391 = sbr.rel (0) target = $region21
  $region20: #{_lambda_.3} parent=0 // pred_region
    _
  $region21: #{_lambda_.3} parent=0 // pred_fallthru
    _

// kernel: _lambda_.2
$region0: #{_lambda_.2}
  #allocation0 [shape = 'u32[]', space=smem, size = 0x4, offset = 0x4, fixed_abs, tag = 'smem constant byte address 0x4 - core index']
  #allocation1 [shape = 'u32[144,128]{1,0:T(1,128)}', space=vmem, size = 0x12000, scoped, tag = 'internal scratch']
  %s0 = inlined_call_operand.vmem [shape: bf16[2,328,4], index: 0, kind: input, shape index: {}]
  %s1 = inlined_call_operand.vmem [shape: bf16[9,4,128], index: 1, kind: input, shape index: {}]
  %s2 = inlined_call_operand.vmem [shape: f32[288,1], index: 2, kind: input, shape index: {}]
  %s3 = inlined_call_operand.vmem [shape: f32[2,288,128], index: 3, kind: output, shape index: {0}]
  %s4 = inlined_call_operand.vmem [shape: f32[8,128], index: 4, kind: output, shape index: {1}]
  %5 = xla_tuple %s3, %s4
  %s6 = sld [smem:[#allocation0]]
  $region57: #{_lambda_.2} parent=0
    _
  %s8 = ssub.s32 1, %s6
  %s9 = scalar_select 0, %s8, %s6
  loop: start=0, step=1, limit=4
  $region2: #{_lambda_.2} parent=0 // loop_pre_header
    _
  $region3: #{_lambda_.2} parent=0 // loop_header
    %s11 = sphi 0, %s15
    %p12 = scmp.ge.s32.totalorder %s11, 4
    %s21 = sphi 0, %s23
    %s24 = sphi 0, %s21
    %s25 = sphi 0, %s24
    %s41 = sphi 0, %s25
    %s45 = sphi 0, %s45
    %s47 = sphi 0, %s45
    %s48 = sphi 0, %s47
    %s62 = sphi 0, %s48
    %s66 = sphi 0, %s66
    %s68 = sphi 0, %s66
    %s69 = sphi 0, %s68
    %s83 = sphi 0, %s69
    %s89 = sphi 0, %s91
    %s92 = sphi 0, %s89
    %s93 = sphi 0, %s92
    %s109 = sphi 0, %s93
    %s113 = sphi 0, %s113
    %s115 = sphi 0, %s113
    %s116 = sphi 0, %s115
    %s130 = sphi 0, %s116
  $region4: #{_lambda_.2} parent=0 // loop_header_branch
    %14 = sbr.rel (%p12) target = $region8
  $region5: #{_lambda_.2} parent=0 // loop_body
    %s16 = ssub.s32 %s11, 1
    %s17 = ssub.s32 %s11, 2
    %s18 = sadd.s32 %s11, 1
    %s19 = ssub.s32 %s11, %s18
    %p20 = scmp.eq.s32.totalorder %s19, 0
    %s22 = sadd.s32 %s21, 1
    %s23 = scalar_select %p20, %s21, %s22
    %p26 = pneg %p20
    %p27 = scmp.eq.s32.totalorder %s11, 1
    %p28 = por %p26, %p27
    %p29 = scmp.ne.s32.totalorder %s21, %s24
    %p30 = scmp.eq.s32.totalorder %s11, 0
    %p31 = por %p29, %p30
    %p32 = scmp.ne.s32.totalorder %s21, %s24
    %p33 = scmp.eq.s32.totalorder %s16, 1
    %p34 = por %p32, %p33
    %p35 = scmp.ne.s32.totalorder %s24, %s25
    %p36 = scmp.eq.s32.totalorder %s16, 0
    %p37 = por %p35, %p36
    %p38 = scmp.ne.s32.totalorder %s24, %s25
    %p39 = scmp.eq.s32.totalorder %s17, 1
    %p40 = por %p38, %p39
    %p42 = scmp.ne.s32.totalorder %s25, %s41
    %p43 = scmp.eq.s32.totalorder %s17, 0
    %p44 = por %p42, %p43
    %s46 = sadd.s32 %s45, 1
    %p49 = scmp.eq.s32.totalorder %s11, 1
    %p50 = scmp.ne.s32.totalorder %s45, %s47
    %p51 = scmp.eq.s32.totalorder %s11, 0
    %p52 = por %p50, %p51
    %p53 = scmp.ne.s32.totalorder %s45, %s47
    %p54 = scmp.eq.s32.totalorder %s16, 1
    %p55 = por %p53, %p54
    %p56 = scmp.ne.s32.totalorder %s47, %s48
    %p57 = scmp.eq.s32.totalorder %s16, 0
    %p58 = por %p56, %p57
    %p59 = scmp.ne.s32.totalorder %s47, %s48
    %p60 = scmp.eq.s32.totalorder %s17, 1
    %p61 = por %p59, %p60
    %p63 = scmp.ne.s32.totalorder %s48, %s62
    %p64 = scmp.eq.s32.totalorder %s17, 0
    %p65 = por %p63, %p64
    %s67 = sadd.s32 %s66, 1
    %p70 = scmp.eq.s32.totalorder %s11, 1
    %p71 = scmp.ne.s32.totalorder %s66, %s68
    %p72 = scmp.eq.s32.totalorder %s11, 0
    %p73 = por %p71, %p72
    %p74 = scmp.ne.s32.totalorder %s66, %s68
    %p75 = scmp.eq.s32.totalorder %s16, 1
    %p76 = por %p74, %p75
    %p77 = scmp.ne.s32.totalorder %s68, %s69
    %p78 = scmp.eq.s32.totalorder %s16, 0
    %p79 = por %p77, %p78
    %p80 = scmp.ne.s32.totalorder %s68, %s69
    %p81 = scmp.eq.s32.totalorder %s17, 1
    %p82 = por %p80, %p81
    %p84 = scmp.ne.s32.totalorder %s69, %s83
    %p85 = scmp.eq.s32.totalorder %s17, 0
    %p86 = por %p84, %p85
    %s87 = ssub.s32 %s11, %s18
    %p88 = scmp.eq.s32.totalorder %s87, 0
    %s90 = sadd.s32 %s89, 1
    %s91 = scalar_select %p88, %s89, %s90
    %p94 = pneg %p88
    %p95 = scmp.eq.s32.totalorder %s11, 1
    %p96 = por %p94, %p95
    %p97 = scmp.ne.s32.totalorder %s89, %s92
    %p98 = scmp.eq.s32.totalorder %s11, 0
    %p99 = por %p97, %p98
    %p100 = scmp.ne.s32.totalorder %s89, %s92
    %p101 = scmp.eq.s32.totalorder %s16, 1
    %p102 = por %p100, %p101
    %p103 = scmp.ne.s32.totalorder %s92, %s93
    %p104 = scmp.eq.s32.totalorder %s16, 0
    %p105 = por %p103, %p104
    %p106 = scmp.ne.s32.totalorder %s92, %s93
    %p107 = scmp.eq.s32.totalorder %s17, 1
    %p108 = por %p106, %p107
    %p110 = scmp.ne.s32.totalorder %s93, %s109
    %p111 = scmp.eq.s32.totalorder %s17, 0
    %p112 = por %p110, %p111
    %s114 = sadd.s32 %s113, 1
    %p117 = scmp.eq.s32.totalorder %s11, 1
    %p118 = scmp.ne.s32.totalorder %s113, %s115
    %p119 = scmp.eq.s32.totalorder %s11, 0
    %p120 = por %p118, %p119
    %p121 = scmp.ne.s32.totalorder %s113, %s115
    %p122 = scmp.eq.s32.totalorder %s16, 1
    %p123 = por %p121, %p122
    %p124 = scmp.ne.s32.totalorder %s115, %s116
    %p125 = scmp.eq.s32.totalorder %s16, 0
    %p126 = por %p124, %p125
    %p127 = scmp.ne.s32.totalorder %s115, %s116
    %p128 = scmp.eq.s32.totalorder %s17, 1
    %p129 = por %p127, %p128
    %p131 = scmp.ne.s32.totalorder %s116, %s130
    %p132 = scmp.eq.s32.totalorder %s17, 0
    %p133 = por %p131, %p132
    %p134 = scmp.le.s32.totalorder 1, %s11
    %p135 = scmp.lt.s32.totalorder %s11, 3
    %p136 = pnand %p134, %p135
    %p137 = pneg %p136
    // Predicated region
    $region9: #{_lambda_.2} parent=5 // pred_check
      _
    $region10: #{_lambda_.2} parent=5 // pred_check_branch
      %139 = sbr.rel (%p136) target = $region12
    $region11: #{_lambda_.2} parent=5 // pred_region
      %s140 = ssub.s32 %s11, 1
      // Predicated region
      $region13: #{_lambda_.2} parent=11 // pred_check
        %p141 = pneg %p58
      $region14: #{_lambda_.2} parent=11 // pred_check_branch
        %143 = sbr.rel (%p141) target = $region16
      $region15: #{_lambda_.2} parent=11 // pred_region
        _
      $region16: #{_lambda_.2} parent=11 // pred_fallthru
        _
      // Predicated region
      $region17: #{_lambda_.2} parent=11 // pred_check
        %p144 = pneg %p79
      $region18: #{_lambda_.2} parent=11 // pred_check_branch
        %146 = sbr.rel (%p144) target = $region20
      $region19: #{_lambda_.2} parent=11 // pred_region
        _
      $region20: #{_lambda_.2} parent=11 // pred_fallthru
        _
    $region12: #{_lambda_.2} parent=5 // pred_fallthru
      _
    %p147 = scmp.lt.s32.totalorder %s11, 2
    // Predicated region
    $region21: #{_lambda_.2} parent=5 // pred_check
      %p148 = pneg %p147
    $region22: #{_lambda_.2} parent=5 // pred_check_branch
      %150 = sbr.rel (%p148) target = $region24
    $region23: #{_lambda_.2} parent=5 // pred_region
      // Predicated region
      $region25: #{_lambda_.2} parent=23 // pred_check
        %p151 = pneg %p31
      $region26: #{_lambda_.2} parent=23 // pred_check_branch
        %153 = sbr.rel (%p151) target = $region28
      $region27: #{_lambda_.2} parent=23 // pred_region
        %p154 = scmp.lt.s32.totalorder %s11, 1
        %s155 = scalar_select %p154, %s11, 1
        %s156 = smul.addr %s155, 41
        %s157 = smul.addr %s156, 4
        %s158 = scalar_lea.vmem %s0, %s157
      $region28: #{_lambda_.2} parent=23 // pred_fallthru
        _
    $region24: #{_lambda_.2} parent=5 // pred_fallthru
      _
    %p159 = scmp.le.s32.totalorder 1, %s11
    %p160 = scmp.lt.s32.totalorder %s11, 3
    %p161 = pnand %p159, %p160
    %p162 = pneg %p161
    // Predicated region
    $region29: #{_lambda_.2} parent=5 // pred_check
      _
    $region30: #{_lambda_.2} parent=5 // pred_check_branch
      %164 = sbr.rel (%p161) target = $region32
    $region31: #{_lambda_.2} parent=5 // pred_region
      %s165 = ssub.s32 %s11, 1
      %p166 = scmp.lt.s32.totalorder %s16, 1
      %s167 = scalar_select %p166, %s16, 1
      %s168 = smul.addr %s167, 41
      %s169 = smul.addr %s168, 4
      %s170 = scalar_lea.vmem %s0, %s169
      %p171 = pneg %p37
      %p172 = pneg %p34
      %p173 = pneg %p58
      %p174 = pneg %p55
      %p175 = pneg %p79
      %p176 = pneg %p76
      %p177 = pneg %p105
      %p178 = pneg %p102
      %p179 = scmp.lt.s32.totalorder %s16, 1
      %s180 = scalar_select %p179, %s16, 1
      %s181 = smul.addr %s180, 36
      %s182 = smul.addr %s181, 8
      %s183 = scalar_lea.vmem %s3, %s182
      %p184 = pneg %p126
      %p185 = pneg %p123
      %p186 = scmp.lt.s32.totalorder %s16, 1
      %s187 = scalar_select %p186, %s16, 1
      %s188 = smul.addr %s187, 41
      %s189 = smul.addr %s188, 4
      %s190 = scalar_lea.vmem %s0, %s189
      %p191 = scmp.lt.s32.totalorder %s16, 1
      %s192 = scalar_select %p191, %s16, 1
      %s193 = smul.addr %s192, 36
      %s194 = smul.addr %s193, 8
      %s195 = scalar_lea.vmem %s3, %s194
      %p197 = scmp.eq.s32.totalorder %s16, 0
      // Predicated region
      $region33: #{_lambda_.2} parent=31 // pred_check
        %p198 = pneg %p197
      $region34: #{_lambda_.2} parent=31 // pred_check_branch
        %200 = sbr.rel (%p198) target = $region36
      $region35: #{_lambda_.2} parent=31 // pred_region
        %201 = vst [vmem:[%s4] sm:$0xff] 0.0
      $region36: #{_lambda_.2} parent=31 // pred_fallthru
        _
      %v202 = vld [vmem:[%s190] sm:$0xf]
      %v203 = vld [vmem:[%s190 + $0x4] sm:$0xf]
      %v204 = vld [vmem:[%s190 + $0x8] sm:$0xf]
      %v205 = vld [vmem:[%s190 + $0xc] sm:$0xf]
      %v206 = vld [vmem:[%s190 + $0x10] sm:$0xf]
      %v207 = vld [vmem:[%s190 + $0x14] sm:$0xf]
      %v208 = vld [vmem:[%s190 + $0x18] sm:$0xf]
      %v209 = vld [vmem:[%s190 + $0x1c] sm:$0xf]
      %v210 = vld [vmem:[%s190 + $0x20] sm:$0xf]
      %v211 = vld [vmem:[%s190 + $0x24] sm:$0xf]
      %v212 = vld [vmem:[%s190 + $0x28] sm:$0xf]
      %v213 = vld [vmem:[%s190 + $0x2c] sm:$0xf]
      %v214 = vld [vmem:[%s190 + $0x30] sm:$0xf]
      %v215 = vld [vmem:[%s190 + $0x34] sm:$0xf]
      %v216 = vld [vmem:[%s190 + $0x38] sm:$0xf]
      %v217 = vld [vmem:[%s190 + $0x3c] sm:$0xf]
      %v218 = vld [vmem:[%s190 + $0x40] sm:$0xf]
      %v219 = vld [vmem:[%s190 + $0x44] sm:$0xf]
      %v220 = vld [vmem:[%s190 + $0x48] sm:$0xf]
      %v221 = vld [vmem:[%s190 + $0x4c] sm:$0xf]
      %v222 = vld [vmem:[%s190 + $0x50] sm:$0xf]
      %v223 = vld [vmem:[%s190 + $0x54] sm:$0xf]
      %v224 = vld [vmem:[%s190 + $0x58] sm:$0xf]
      %v225 = vld [vmem:[%s190 + $0x5c] sm:$0xf]
      %v226 = vld [vmem:[%s190 + $0x60] sm:$0xf]
      %v227 = vld [vmem:[%s190 + $0x64] sm:$0xf]
      %v228 = vld [vmem:[%s190 + $0x68] sm:$0xf]
      %v229 = vld [vmem:[%s190 + $0x6c] sm:$0xf]
      %v230 = vld [vmem:[%s190 + $0x70] sm:$0xf]
      %v231 = vld [vmem:[%s190 + $0x74] sm:$0xf]
      %v232 = vld [vmem:[%s190 + $0x78] sm:$0xf]
      %v233 = vld [vmem:[%s190 + $0x7c] sm:$0xf]
      %v234 = vld [vmem:[%s190 + $0x80] sm:$0xf]
      %v235 = vld [vmem:[%s190 + $0x84] sm:$0xf]
      %v236 = vld [vmem:[%s190 + $0x88] sm:$0xf]
      %v237 = vld [vmem:[%s190 + $0x8c] sm:$0xf]
      %v238 = vld [vmem:[%s1] sm:$0x3]
      %v275 = vunpack.c.l.b16 %v202
      %v276 = vunpack.c.l.b16 %v203
      %v277 = vunpack.c.l.b16 %v204
      %v278 = vunpack.c.l.b16 %v205
      %v279 = vunpack.c.l.b16 %v206
      %v280 = vunpack.c.l.b16 %v207
      %v281 = vunpack.c.l.b16 %v208
      %v282 = vunpack.c.l.b16 %v209
      %v283 = vunpack.c.l.b16 %v210
      %v284 = vunpack.c.l.b16 %v211
      %v285 = vunpack.c.l.b16 %v212
      %v286 = vunpack.c.l.b16 %v213
      %v287 = vunpack.c.l.b16 %v214
      %v288 = vunpack.c.l.b16 %v215
      %v289 = vunpack.c.l.b16 %v216
      %v290 = vunpack.c.l.b16 %v217
      %v291 = vunpack.c.l.b16 %v218
      %v292 = vunpack.c.l.b16 %v219
      %v293 = vunpack.c.l.b16 %v220
      %v294 = vunpack.c.l.b16 %v221
      %v295 = vunpack.c.l.b16 %v222
      %v296 = vunpack.c.l.b16 %v223
      %v297 = vunpack.c.l.b16 %v224
      %v298 = vunpack.c.l.b16 %v225
      %v299 = vunpack.c.l.b16 %v226
      %v300 = vunpack.c.l.b16 %v227
      %v301 = vunpack.c.l.b16 %v228
      %v302 = vunpack.c.l.b16 %v229
      %v303 = vunpack.c.l.b16 %v230
      %v304 = vunpack.c.l.b16 %v231
      %v305 = vunpack.c.l.b16 %v232
      %v306 = vunpack.c.l.b16 %v233
      %v307 = vunpack.c.l.b16 %v234
      %v308 = vunpack.c.l.b16 %v235
      %v309 = vunpack.c.l.b16 %v236
      %v310 = vunpack.c.l.b16 %v237
      %v311 = vpack.c.b16 %v276, %v275
      %v312 = vpack.c.b16 %v278, %v277
      %v313 = vpack.c.b16 %v280, %v279
      %v314 = vpack.c.b16 %v282, %v281
      %v315 = vpack.c.b16 %v284, %v283
      %v316 = vpack.c.b16 %v286, %v285
      %v317 = vpack.c.b16 %v288, %v287
      %v318 = vpack.c.b16 %v290, %v289
      %v319 = vpack.c.b16 %v292, %v291
      %v320 = vpack.c.b16 %v294, %v293
      %v321 = vpack.c.b16 %v296, %v295
      %v322 = vpack.c.b16 %v298, %v297
      %v323 = vpack.c.b16 %v300, %v299
      %v324 = vpack.c.b16 %v302, %v301
      %v325 = vpack.c.b16 %v304, %v303
      %v326 = vpack.c.b16 %v306, %v305
      %v327 = vpack.c.b16 %v308, %v307
      %v328 = vpack.c.b16 %v310, %v309
      %vm329 = vcmask 31744
      %v331 = vsel %vm329, %v311, 0
      %v334 = vsel %vm329, %v312, 0
      %v337 = vsel %vm329, %v313, 0
      %v340 = vsel %vm329, %v314, 0
      %v343 = vsel %vm329, %v315, 0
      %v346 = vsel %vm329, %v316, 0
      %v349 = vsel %vm329, %v317, 0
      %v352 = vsel %vm329, %v318, 0
      %v355 = vsel %vm329, %v319, 0
      %v358 = vsel %vm329, %v320, 0
      %v361 = vsel %vm329, %v321, 0
      %v364 = vsel %vm329, %v322, 0
      %v367 = vsel %vm329, %v323, 0
      %v370 = vsel %vm329, %v324, 0
      %v373 = vsel %vm329, %v325, 0
      %v376 = vsel %vm329, %v326, 0
      %v379 = vsel %vm329, %v327, 0
      %v382 = vsel %vm329, %v328, 0
      %vm384 = vcmask 1041408
      %v386 = vsel %vm384, %v238, 0
      %388 = vmatprep.subr.bf16.mxu0 0
      %389 = vmatpush1.bf16.msra.mxu0 %v386
      %390 = vmatprep.subr.bf16.mxu0 0
      %391 = vmatpush1.bf16.msra.mxu0 0
      %392 = vmatprep.subr.bf16.mxu0 0
      %393 = vmatpush1.bf16.msra.mxu0 0
      %394 = vmatprep.subr.bf16.mxu0 0
      %395 = vmatpush1.bf16.msra.mxu0 0
      %396 = vmatprep.subr.bf16.mxu0 0
      %397 = vmatpush1.bf16.msra.mxu0 0
      %398 = vmatprep.subr.bf16.mxu0 0
      %399 = vmatpush1.bf16.msra.mxu0 0
      %400 = vmatprep.subr.bf16.mxu0 0
      %401 = vmatpush1.bf16.msra.mxu0 0
      %402 = vmatprep.subr.bf16.mxu0 0
      %403 = vmatpush1.bf16.msra.mxu0 0
      %404 = vmatprep.subr.bf16.mxu0 0
      %405 = vmatpush1.bf16.msra.mxu0 0
      %406 = vmatprep.subr.bf16.mxu0 0
      %407 = vmatpush1.bf16.msra.mxu0 0
      %408 = vmatprep.subr.bf16.mxu0 0
      %409 = vmatpush1.bf16.msra.mxu0 0
      %410 = vmatprep.subr.bf16.mxu0 0
      %411 = vmatpush1.bf16.msra.mxu0 0
      %412 = vmatprep.subr.bf16.mxu0 0
      %413 = vmatpush1.bf16.msra.mxu0 0
      %414 = vmatprep.subr.bf16.mxu0 0
      %415 = vmatpush1.bf16.msra.mxu0 0
      %416 = vmatprep.subr.bf16.mxu0 0
      %417 = vmatpush1.bf16.msra.mxu0 0
      %418 = vmatprep.subr.bf16.mxu0 0
      %419 = vmatpush1.bf16.msra.mxu0 0
      %420 = vmatprep.mubr.bf16.mxu0 0
      %421 = vmatmul.mubr.bf16.gmra.mrb[0].mxu0 %v331
      %v422 = vpop.f32.mrb[0].mxu0
      %v423 = vadd.f32 0.0, %v422
      %v424 = vpop.f32.mrb[0].mxu0
      %v425 = vpop.f32.mrb[0].mxu0
      %v426 = vadd.f32 0.0, %v425
      %v427 = vpop.f32.mrb[0].mxu0
      %428 = vmatprep.mubr.bf16.mxu0 0
      %429 = vmatmul.mubr.bf16.gmra.mrb[0].mxu0 %v334
      %v430 = vpop.f32.mrb[0].mxu0
      %v431 = vadd.f32 0.0, %v430
      %v432 = vpop.f32.mrb[0].mxu0
      %v433 = vpop.f32.mrb[0].mxu0
      %v434 = vadd.f32 0.0, %v433
      %v435 = vpop.f32.mrb[0].mxu0
      %436 = vmatprep.mubr.bf16.mxu0 0
      %437 = vmatmul.mubr.bf16.gmra.mrb[0].mxu0 %v337
      %v438 = vpop.f32.mrb[0].mxu0
      %v439 = vadd.f32 0.0, %v438
      %v440 = vpop.f32.mrb[0].mxu0
      %v441 = vpop.f32.mrb[0].mxu0
      %v442 = vadd.f32 0.0, %v441
      %v443 = vpop.f32.mrb[0].mxu0
      %444 = vmatprep.mubr.bf16.mxu0 0
      %445 = vmatmul.mubr.bf16.gmra.mrb[0].mxu0 %v340
      %v446 = vpop.f32.mrb[0].mxu0
      %v447 = vadd.f32 0.0, %v446
      %v448 = vpop.f32.mrb[0].mxu0
      %v449 = vpop.f32.mrb[0].mxu0
      %v450 = vadd.f32 0.0, %v449
      %v451 = vpop.f32.mrb[0].mxu0
      %452 = vmatprep.mubr.bf16.mxu0 0
      %453 = vmatmul.mubr.bf16.gmra.mrb[0].mxu0 %v343
      %v454 = vpop.f32.mrb[0].mxu0
      %v455 = vadd.f32 0.0, %v454
      %v456 = vpop.f32.mrb[0].mxu0
      %v457 = vpop.f32.mrb[0].mxu0
      %v458 = vadd.f32 0.0, %v457
      %v459 = vpop.f32.mrb[0].mxu0
      %460 = vmatprep.mubr.bf16.mxu0 0
      %461 = vmatmul.mubr.bf16.gmra.mrb[0].mxu0 %v346
      %v462 = vpop.f32.mrb[0].mxu0
      %v463 = vadd.f32 0.0, %v462
      %v464 = vpop.f32.mrb[0].mxu0
      %v465 = vpop.f32.mrb[0].mxu0
      %v466 = vadd.f32 0.0, %v465
      %v467 = vpop.f32.mrb[0].mxu0
      %468 = vmatprep.mubr.bf16.mxu0 0
      %469 = vmatmul.mubr.bf16.gmra.mrb[0].mxu0 %v349
      %v470 = vpop.f32.mrb[0].mxu0
      %v471 = vadd.f32 0.0, %v470
      %v472 = vpop.f32.mrb[0].mxu0
      %v473 = vpop.f32.mrb[0].mxu0
      %v474 = vadd.f32 0.0, %v473
      %v475 = vpop.f32.mrb[0].mxu0
      %476 = vmatprep.mubr.bf16.mxu0 0
      %477 = vmatmul.mubr.bf16.gmra.mrb[0].mxu0 %v352
      %v478 = vpop.f32.mrb[0].mxu0
      %v479 = vadd.f32 0.0, %v478
      %v480 = vpop.f32.mrb[0].mxu0
      %v481 = vpop.f32.mrb[0].mxu0
      %v482 = vadd.f32 0.0, %v481
      %v483 = vpop.f32.mrb[0].mxu0
      %484 = vmatprep.mubr.bf16.mxu0 0
      %485 = vmatmul.mubr.bf16.gmra.mrb[0].mxu0 %v355
      %v486 = vpop.f32.mrb[0].mxu0
      %v487 = vadd.f32 0.0, %v486
      %v488 = vpop.f32.mrb[0].mxu0
      %v489 = vpop.f32.mrb[0].mxu0
      %v490 = vadd.f32 0.0, %v489
      %v491 = vpop.f32.mrb[0].mxu0
      %492 = vmatprep.mubr.bf16.mxu0 0
      %493 = vmatmul.mubr.bf16.gmra.mrb[0].mxu0 %v358
      %v494 = vpop.f32.mrb[0].mxu0
      %v495 = vadd.f32 0.0, %v494
      %v496 = vpop.f32.mrb[0].mxu0
      %v497 = vpop.f32.mrb[0].mxu0
      %v498 = vadd.f32 0.0, %v497
      %v499 = vpop.f32.mrb[0].mxu0
      %500 = vmatprep.mubr.bf16.mxu0 0
      %501 = vmatmul.mubr.bf16.gmra.mrb[0].mxu0 %v361
      %v502 = vpop.f32.mrb[0].mxu0
      %v503 = vadd.f32 0.0, %v502
      %v504 = vpop.f32.mrb[0].mxu0
      %v505 = vpop.f32.mrb[0].mxu0
      %v506 = vadd.f32 0.0, %v505
      %v507 = vpop.f32.mrb[0].mxu0
      %508 = vmatprep.mubr.bf16.mxu0 0
      %509 = vmatmul.mubr.bf16.gmra.mrb[0].mxu0 %v364
      %v510 = vpop.f32.mrb[0].mxu0
      %v511 = vadd.f32 0.0, %v510
      %v512 = vpop.f32.mrb[0].mxu0
      %v513 = vpop.f32.mrb[0].mxu0
      %v514 = vadd.f32 0.0, %v513
      %v515 = vpop.f32.mrb[0].mxu0
      %516 = vmatprep.mubr.bf16.mxu0 0
      %517 = vmatmul.mubr.bf16.gmra.mrb[0].mxu0 %v367
      %v518 = vpop.f32.mrb[0].mxu0
      %v519 = vadd.f32 0.0, %v518
      %v520 = vpop.f32.mrb[0].mxu0
      %v521 = vpop.f32.mrb[0].mxu0
      %v522 = vadd.f32 0.0, %v521
      %v523 = vpop.f32.mrb[0].mxu0
      %524 = vmatprep.mubr.bf16.mxu0 0
      %525 = vmatmul.mubr.bf16.gmra.mrb[0].mxu0 %v370
      %v526 = vpop.f32.mrb[0].mxu0
      %v527 = vadd.f32 0.0, %v526
      %v528 = vpop.f32.mrb[0].mxu0
      %v529 = vpop.f32.mrb[0].mxu0
      %v530 = vadd.f32 0.0, %v529
      %v531 = vpop.f32.mrb[0].mxu0
      %532 = vmatprep.mubr.bf16.mxu0 0
      %533 = vmatmul.mubr.bf16.gmra.mrb[0].mxu0 %v373
      %v534 = vpop.f32.mrb[0].mxu0
      %v535 = vadd.f32 0.0, %v534
      %v536 = vpop.f32.mrb[0].mxu0
      %v537 = vpop.f32.mrb[0].mxu0
      %v538 = vadd.f32 0.0, %v537
      %v539 = vpop.f32.mrb[0].mxu0
      %540 = vmatprep.mubr.bf16.mxu0 0
      %541 = vmatmul.mubr.bf16.gmra.mrb[0].mxu0 %v376
      %v542 = vpop.f32.mrb[0].mxu0
      %v543 = vadd.f32 0.0, %v542
      %v544 = vpop.f32.mrb[0].mxu0
      %v545 = vpop.f32.mrb[0].mxu0
      %v546 = vadd.f32 0.0, %v545
      %v547 = vpop.f32.mrb[0].mxu0
      %548 = vmatprep.mubr.bf16.mxu0 0
      %549 = vmatmul.mubr.bf16.gmra.mrb[0].mxu0 %v379
      %v550 = vpop.f32.mrb[0].mxu0
      %v551 = vadd.f32 0.0, %v550
      %v552 = vpop.f32.mrb[0].mxu0
      %v553 = vpop.f32.mrb[0].mxu0
      %v554 = vadd.f32 0.0, %v553
      %v555 = vpop.f32.mrb[0].mxu0
      %556 = vmatprep.mubr.bf16.mxu0 0
      %557 = vmatmul.mubr.bf16.gmra.mrb[0].mxu0 %v382
      %v558 = vpop.f32.mrb[0].mxu0
      %v559 = vadd.f32 0.0, %v558
      %v560 = vpop.f32.mrb[0].mxu0
      %v561 = vpop.f32.mrb[0].mxu0
      %v562 = vadd.f32 0.0, %v561
      %v563 = vpop.f32.mrb[0].mxu0
      %564 = vdwg.mxu0
      %565 = vst [vmem:[%s195] sm:$0xff] %v423
      %566 = vst [vmem:[%s195 + $0x8] sm:$0xff] %v426
      %567 = vst [vmem:[%s195 + $0x10] sm:$0xff] %v431
      %568 = vst [vmem:[%s195 + $0x18] sm:$0xff] %v434
      %569 = vst [vmem:[%s195 + $0x20] sm:$0xff] %v439
      %570 = vst [vmem:[%s195 + $0x28] sm:$0xff] %v442
      %571 = vst [vmem:[%s195 + $0x30] sm:$0xff] %v447
      %572 = vst [vmem:[%s195 + $0x38] sm:$0xff] %v450
      %573 = vst [vmem:[%s195 + $0x40] sm:$0xff] %v455
      %574 = vst [vmem:[%s195 + $0x48] sm:$0xff] %v458
      %575 = vst [vmem:[%s195 + $0x50] sm:$0xff] %v463
      %576 = vst [vmem:[%s195 + $0x58] sm:$0xff] %v466
      %577 = vst [vmem:[%s195 + $0x60] sm:$0xff] %v471
      %578 = vst [vmem:[%s195 + $0x68] sm:$0xff] %v474
      %579 = vst [vmem:[%s195 + $0x70] sm:$0xff] %v479
      %580 = vst [vmem:[%s195 + $0x78] sm:$0xff] %v482
      %581 = vst [vmem:[%s195 + $0x80] sm:$0xff] %v487
      %582 = vst [vmem:[%s195 + $0x88] sm:$0xff] %v490
      %583 = vst [vmem:[%s195 + $0x90] sm:$0xff] %v495
      %584 = vst [vmem:[%s195 + $0x98] sm:$0xff] %v498
      %585 = vst [vmem:[%s195 + $0xa0] sm:$0xff] %v503
      %586 = vst [vmem:[%s195 + $0xa8] sm:$0xff] %v506
      %587 = vst [vmem:[%s195 + $0xb0] sm:$0xff] %v511
      %588 = vst [vmem:[%s195 + $0xb8] sm:$0xff] %v514
      %589 = vst [vmem:[%s195 + $0xc0] sm:$0xff] %v519
      %590 = vst [vmem:[%s195 + $0xc8] sm:$0xff] %v522
      %591 = vst [vmem:[%s195 + $0xd0] sm:$0xff] %v527
      %592 = vst [vmem:[%s195 + $0xd8] sm:$0xff] %v530
      %593 = vst [vmem:[%s195 + $0xe0] sm:$0xff] %v535
      %594 = vst [vmem:[%s195 + $0xe8] sm:$0xff] %v538
      %595 = vst [vmem:[%s195 + $0xf0] sm:$0xff] %v543
      %596 = vst [vmem:[%s195 + $0xf8] sm:$0xff] %v546
      %597 = vst [vmem:[%s195 + $0x100] sm:$0xff] %v551
      %598 = vst [vmem:[%s195 + $0x108] sm:$0xff] %v554
      %599 = vst [vmem:[%s195 + $0x110] sm:$0xff] %v559
      %600 = vst [vmem:[%s195 + $0x118] sm:$0xff] %v562
      %v601 = vld [vmem:[%s190] sm:$0xf]
      %v602 = vld [vmem:[%s190 + $0x4] sm:$0xf]
      %v603 = vld [vmem:[%s190 + $0x8] sm:$0xf]
      %v604 = vld [vmem:[%s190 + $0xc] sm:$0xf]
      %v605 = vld [vmem:[%s190 + $0x10] sm:$0xf]
      %v606 = vld [vmem:[%s190 + $0x14] sm:$0xf]
      %v607 = vld [vmem:[%s190 + $0x18] sm:$0xf]
      %v608 = vld [vmem:[%s190 + $0x1c] sm:$0xf]
      %v609 = vld [vmem:[%s190 + $0x20] sm:$0xf]
      %v610 = vld [vmem:[%s190 + $0x24] sm:$0xf]
      %v611 = vld [vmem:[%s190 + $0x28] sm:$0xf]
      %v612 = vld [vmem:[%s190 + $0x2c] sm:$0xf]
      %v613 = vld [vmem:[%s190 + $0x30] sm:$0xf]
      %v614 = vld [vmem:[%s190 + $0x34] sm:$0xf]
      %v615 = vld [vmem:[%s190 + $0x38] sm:$0xf]
      %v616 = vld [vmem:[%s190 + $0x3c] sm:$0xf]
      %v617 = vld [vmem:[%s190 + $0x40] sm:$0xf]
      %v618 = vld [vmem:[%s190 + $0x44] sm:$0xf]
      %v619 = vld [vmem:[%s190 + $0x48] sm:$0xf]
      %v620 = vld [vmem:[%s190 + $0x4c] sm:$0xf]
      %v621 = vld [vmem:[%s190 + $0x50] sm:$0xf]
      %v622 = vld [vmem:[%s190 + $0x54] sm:$0xf]
      %v623 = vld [vmem:[%s190 + $0x58] sm:$0xf]
      %v624 = vld [vmem:[%s190 + $0x5c] sm:$0xf]
      %v625 = vld [vmem:[%s190 + $0x60] sm:$0xf]
      %v626 = vld [vmem:[%s190 + $0x64] sm:$0xf]
      %v627 = vld [vmem:[%s190 + $0x68] sm:$0xf]
      %v628 = vld [vmem:[%s190 + $0x6c] sm:$0xf]
      %v629 = vld [vmem:[%s190 + $0x70] sm:$0xf]
      %v630 = vld [vmem:[%s190 + $0x74] sm:$0xf]
      %v631 = vld [vmem:[%s190 + $0x78] sm:$0xf]
      %v632 = vld [vmem:[%s190 + $0x7c] sm:$0xf]
      %v633 = vld [vmem:[%s190 + $0x80] sm:$0xf]
      %v634 = vld [vmem:[%s190 + $0x84] sm:$0xf]
      %v635 = vld [vmem:[%s190 + $0x88] sm:$0xf]
      %v636 = vld [vmem:[%s190 + $0x8c] sm:$0xf]
      %v637 = vld [vmem:[%s190 + $0x90] sm:$0x1]
      %s638 = scalar_lea.vmem %s1, 2
      %v639 = vld [vmem:[%s638] sm:$0x3]
      %v677 = vunpack.c.l.b16 %v601
      %v678 = vunpack.c.l.b16 %v602
      %v679 = vunpack.c.l.b16 %v603
      %v680 = vunpack.c.l.b16 %v604
      %v681 = vunpack.c.l.b16 %v605
      %v682 = vunpack.c.l.b16 %v606
      %v683 = vunpack.c.l.b16 %v607
      %v684 = vunpack.c.l.b16 %v608
      %v685 = vunpack.c.l.b16 %v609
      %v686 = vunpack.c.l.b16 %v610
      %v687 = vunpack.c.l.b16 %v611
      %v688 = vunpack.c.l.b16 %v612
      %v689 = vunpack.c.l.b16 %v613
      %v690 = vunpack.c.l.b16 %v614
      %v691 = vunpack.c.l.b16 %v615
      %v692 = vunpack.c.l.b16 %v616
      %v693 = vunpack.c.l.b16 %v617
      %v694 = vunpack.c.l.b16 %v618
      %v695 = vunpack.c.l.b16 %v619
      %v696 = vunpack.c.l.b16 %v620
      %v697 = vunpack.c.l.b16 %v621
      %v698 = vunpack.c.l.b16 %v622
      %v699 = vunpack.c.l.b16 %v623
      %v700 = vunpack.c.l.b16 %v624
      %v701 = vunpack.c.l.b16 %v625
      %v702 = vunpack.c.l.b16 %v626
      %v703 = vunpack.c.l.b16 %v627
      %v704 = vunpack.c.l.b16 %v628
      %v705 = vunpack.c.l.b16 %v629
      %v706 = vunpack.c.l.b16 %v630
      %v707 = vunpack.c.l.b16 %v631
      %v708 = vunpack.c.l.b16 %v632
      %v709 = vunpack.c.l.b16 %v633
      %v710 = vunpack.c.l.b16 %v634
      %v711 = vunpack.c.l.b16 %v635
      %v712 = vunpack.c.l.b16 %v636
      %v713 = vunpack.c.l.b16 %v637
      %v714 = vpack.c.b16 %v678, %v677
      %v715 = vpack.c.b16 %v680, %v679
      %v716 = vpack.c.b16 %v682, %v681
      %v717 = vpack.c.b16 %v684, %v683
      %v718 = vpack.c.b16 %v686, %v685
      %v719 = vpack.c.b16 %v688, %v687
      %v720 = vpack.c.b16 %v690, %v689
      %v721 = vpack.c.b16 %v692, %v691
      %v722 = vpack.c.b16 %v694, %v693
      %v723 = vpack.c.b16 %v696, %v695
      %v724 = vpack.c.b16 %v698, %v697
      %v725 = vpack.c.b16 %v700, %v699
      %v726 = vpack.c.b16 %v702, %v701
      %v727 = vpack.c.b16 %v704, %v703
      %v728 = vpack.c.b16 %v706, %v705
      %v729 = vpack.c.b16 %v708, %v707
      %v730 = vpack.c.b16 %v710, %v709
      %v731 = vpack.c.b16 %v712, %v711
      %v732 = vpack.c.b16 %v713, %v713
      %vm733 = vsmask.f32 7424
      %v735 = vshrl.u32 %v714, 16
      %v737 = vshll.u32 %v714, 16
      %v739 = vrot.slane %v737, 1
      %v740 = vor.u32 %v735, %v739
      %v742 = vshll.u32 %v715, 16
      %v744 = vrot.slane %v742, 1
      %v745 = vsel %vm733, %v740, %v744
      %v746 = vshrl.u32 %v715, 16
      %v748 = vor.u32 %v746, %v744
      %v750 = vshll.u32 %v716, 16
      %v752 = vrot.slane %v750, 1
      %v753 = vsel %vm733, %v748, %v752
      %v754 = vshrl.u32 %v716, 16
      %v756 = vor.u32 %v754, %v752
      %v758 = vshll.u32 %v717, 16
      %v760 = vrot.slane %v758, 1
      %v761 = vsel %vm733, %v756, %v760
      %v762 = vshrl.u32 %v717, 16
      %v764 = vor.u32 %v762, %v760
      %v766 = vshll.u32 %v718, 16
      %v768 = vrot.slane %v766, 1
      %v769 = vsel %vm733, %v764, %v768
      %v770 = vshrl.u32 %v718, 16
      %v772 = vor.u32 %v770, %v768
      %v774 = vshll.u32 %v719, 16
      %v776 = vrot.slane %v774, 1
      %v777 = vsel %vm733, %v772, %v776
      %v778 = vshrl.u32 %v719, 16
      %v780 = vor.u32 %v778, %v776
      %v782 = vshll.u32 %v720, 16
      %v784 = vrot.slane %v782, 1
      %v785 = vsel %vm733, %v780, %v784
      %v786 = vshrl.u32 %v720, 16
      %v788 = vor.u32 %v786, %v784
      %v790 = vshll.u32 %v721, 16
      %v792 = vrot.slane %v790, 1
      %v793 = vsel %vm733, %v788, %v792
      %v794 = vshrl.u32 %v721, 16
      %v796 = vor.u32 %v794, %v792
      %v798 = vshll.u32 %v722, 16
      %v800 = vrot.slane %v798, 1
      %v801 = vsel %vm733, %v796, %v800
      %v802 = vshrl.u32 %v722, 16
      %v804 = vor.u32 %v802, %v800
      %v806 = vshll.u32 %v723, 16
      %v808 = vrot.slane %v806, 1
      %v809 = vsel %vm733, %v804, %v808
      %v810 = vshrl.u32 %v723, 16
      %v812 = vor.u32 %v810, %v808
      %v814 = vshll.u32 %v724, 16
      %v816 = vrot.slane %v814, 1
      %v817 = vsel %vm733, %v812, %v816
      %v818 = vshrl.u32 %v724, 16
      %v820 = vor.u32 %v818, %v816
      %v822 = vshll.u32 %v725, 16
      %v824 = vrot.slane %v822, 1
      %v825 = vsel %vm733, %v820, %v824
      %v826 = vshrl.u32 %v725, 16
      %v828 = vor.u32 %v826, %v824
      %v830 = vshll.u32 %v726, 16
      %v832 = vrot.slane %v830, 1
      %v833 = vsel %vm733, %v828, %v832
      %v834 = vshrl.u32 %v726, 16
      %v836 = vor.u32 %v834, %v832
      %v838 = vshll.u32 %v727, 16
      %v840 = vrot.slane %v838, 1
      %v841 = vsel %vm733, %v836, %v840
      %v842 = vshrl.u32 %v727, 16
      %v844 = vor.u32 %v842, %v840
      %v846 = vshll.u32 %v728, 16
      %v848 = vrot.slane %v846, 1
      %v849 = vsel %vm733, %v844, %v848
      %v850 = vshrl.u32 %v728, 16
      %v852 = vor.u32 %v850, %v848
      %v854 = vshll.u32 %v729, 16
      %v856 = vrot.slane %v854, 1
      %v857 = vsel %vm733, %v852, %v856
      %v858 = vshrl.u32 %v729, 16
      %v860 = vor.u32 %v858, %v856
      %v862 = vshll.u32 %v730, 16
      %v864 = vrot.slane %v862, 1
      %v865 = vsel %vm733, %v860, %v864
      %v866 = vshrl.u32 %v730, 16
      %v868 = vor.u32 %v866, %v864
      %v870 = vshll.u32 %v731, 16
      %v872 = vrot.slane %v870, 1
      %v873 = vsel %vm733, %v868, %v872
      %v874 = vshrl.u32 %v731, 16
      %v876 = vor.u32 %v874, %v872
      %v878 = vshll.u32 %v732, 16
      %v880 = vrot.slane %v878, 1
      %v881 = vsel %vm733, %v876, %v880
      %v883 = vsel %vm329, %v745, 0
      %v886 = vsel %vm329, %v753, 0
      %v889 = vsel %vm329, %v761, 0
      %v892 = vsel %vm329, %v769, 0
      %v895 = vsel %vm329, %v777, 0
      %v898 = vsel %vm329, %v785, 0
      %v901 = vsel %vm329, %v793, 0
      %v904 = vsel %vm329, %v801, 0
      %v907 = vsel %vm329, %v809, 0
      %v910 = vsel %vm329, %v817, 0
      %v913 = vsel %vm329, %v825, 0
      %v916 = vsel %vm329, %v833, 0
      %v919 = vsel %vm329, %v841, 0
      %v922 = vsel %vm329, %v849, 0
      %v925 = vsel %vm329, %v857, 0
      %v928 = vsel %vm329, %v865, 0
      %v931 = vsel %vm329, %v873, 0
      %v934 = vsel %vm329, %v881, 0
      %v937 = vsel %vm384, %v639, 0
      %939 = vmatprep.subr.bf16.mxu0 0
      %940 = vmatpush1.bf16.msra.mxu0 %v937
      %941 = vmatprep.subr.bf16.mxu0 0
      %942 = vmatpush1.bf16.msra.mxu0 0
      %943 = vmatprep.subr.bf16.mxu0 0
      %944 = vmatpush1.bf16.msra.mxu0 0
      %945 = vmatprep.subr.bf16.mxu0 0
      %946 = vmatpush1.bf16.msra.mxu0 0
      %947 = vmatprep.subr.bf16.mxu0 0
      %948 = vmatpush1.bf16.msra.mxu0 0
      %949 = vmatprep.subr.bf16.mxu0 0
      %950 = vmatpush1.bf16.msra.mxu0 0
      %951 = vmatprep.subr.bf16.mxu0 0
      %952 = vmatpush1.bf16.msra.mxu0 0
      %953 = vmatprep.subr.bf16.mxu0 0
      %954 = vmatpush1.bf16.msra.mxu0 0
      %955 = vmatprep.subr.bf16.mxu0 0
      %956 = vmatpush1.bf16.msra.mxu0 0
      %957 = vmatprep.subr.bf16.mxu0 0
      %958 = vmatpush1.bf16.msra.mxu0 0
      %959 = vmatprep.subr.bf16.mxu0 0
      %960 = vmatpush1.bf16.msra.mxu0 0
      %961 = vmatprep.subr.bf16.mxu0 0
      %962 = vmatpush1.bf16.msra.mxu0 0
      %963 = vmatprep.subr.bf16.mxu0 0
      %964 = vmatpush1.bf16.msra.mxu0 0
      %965 = vmatprep.subr.bf16.mxu0 0
      %966 = vmatpush1.bf16.msra.mxu0 0
      %967 = vmatprep.subr.bf16.mxu0 0
      %968 = vmatpush1.bf16.msra.mxu0 0
      %969 = vmatprep.subr.bf16.mxu0 0
      %970 = vmatpush1.bf16.msra.mxu0 0
      %971 = vmatprep.mubr.bf16.mxu0 0
      %972 = vmatmul.mubr.bf16.gmra.mrb[0].mxu0 %v883
      %v973 = vpop.f32.mrb[0].mxu0
      %v974 = vadd.f32 0.0, %v973
      %v975 = vpop.f32.mrb[0].mxu0
      %v976 = vpop.f32.mrb[0].mxu0
      %v977 = vadd.f32 0.0, %v976
      %v978 = vpop.f32.mrb[0].mxu0
      %979 = vmatprep.mubr.bf16.mxu0 0
      %980 = vmatmul.mubr.bf16.gmra.mrb[0].mxu0 %v886
      %v981 = vpop.f32.mrb[0].mxu0
      %v982 = vadd.f32 0.0, %v981
      %v983 = vpop.f32.mrb[0].mxu0
      %v984 = vpop.f32.mrb[0].mxu0
      %v985 = vadd.f32 0.0, %v984
      %v986 = vpop.f32.mrb[0].mxu0
      %987 = vmatprep.mubr.bf16.mxu0 0
      %988 = vmatmul.mubr.bf16.gmra.mrb[0].mxu0 %v889
      %v989 = vpop.f32.mrb[0].mxu0
      %v990 = vadd.f32 0.0, %v989
      %v991 = vpop.f32.mrb[0].mxu0
      %v992 = vpop.f32.mrb[0].mxu0
      %v993 = vadd.f32 0.0, %v992
      %v994 = vpop.f32.mrb[0].mxu0
      %995 = vmatprep.mubr.bf16.mxu0 0
      %996 = vmatmul.mubr.bf16.gmra.mrb[0].mxu0 %v892
      %v997 = vpop.f32.mrb[0].mxu0
      %v998 = vadd.f32 0.0, %v997
      %v999 = vpop.f32.mrb[0].mxu0
      %v1000 = vpop.f32.mrb[0].mxu0
      %v1001 = vadd.f32 0.0, %v1000
      %v1002 = vpop.f32.mrb[0].mxu0
      %1003 = vmatprep.mubr.bf16.mxu0 0
      %1004 = vmatmul.mubr.bf16.gmra.mrb[0].mxu0 %v895
      %v1005 = vpop.f32.mrb[0].mxu0
      %v1006 = vadd.f32 0.0, %v1005
      %v1007 = vpop.f32.mrb[0].mxu0
      %v1008 = vpop.f32.mrb[0].mxu0
      %v1009 = vadd.f32 0.0, %v1008
      %v1010 = vpop.f32.mrb[0].mxu0
      %1011 = vmatprep.mubr.bf16.mxu0 0
      %1012 = vmatmul.mubr.bf16.gmra.mrb[0].mxu0 %v898
      %v1013 = vpop.f32.mrb[0].mxu0
      %v1014 = vadd.f32 0.0, %v1013
      %v1015 = vpop.f32.mrb[0].mxu0
      %v1016 = vpop.f32.mrb[0].mxu0
      %v1017 = vadd.f32 0.0, %v1016
      %v1018 = vpop.f32.mrb[0].mxu0
      %1019 = vmatprep.mubr.bf16.mxu0 0
      %1020 = vmatmul.mubr.bf16.gmra.mrb[0].mxu0 %v901
      %v1021 = vpop.f32.mrb[0].mxu0
      %v1022 = vadd.f32 0.0, %v1021
      %v1023 = vpop.f32.mrb[0].mxu0
      %v1024 = vpop.f32.mrb[0].mxu0
      %v1025 = vadd.f32 0.0, %v1024
      %v1026 = vpop.f32.mrb[0].mxu0
      %1027 = vmatprep.mubr.bf16.mxu0 0
      %1028 = vmatmul.mubr.bf16.gmra.mrb[0].mxu0 %v904
      %v1029 = vpop.f32.mrb[0].mxu0
      %v1030 = vadd.f32 0.0, %v1029
      %v1031 = vpop.f32.mrb[0].mxu0
      %v1032 = vpop.f32.mrb[0].mxu0
      %v1033 = vadd.f32 0.0, %v1032
      %v1034 = vpop.f32.mrb[0].mxu0
      %1035 = vmatprep.mubr.bf16.mxu0 0
      %1036 = vmatmul.mubr.bf16.gmra.mrb[0].mxu0 %v907
      %v1037 = vpop.f32.mrb[0].mxu0
      %v1038 = vadd.f32 0.0, %v1037
      %v1039 = vpop.f32.mrb[0].mxu0
      %v1040 = vpop.f32.mrb[0].mxu0
      %v1041 = vadd.f32 0.0, %v1040
      %v1042 = vpop.f32.mrb[0].mxu0
      %1043 = vmatprep.mubr.bf16.mxu0 0
      %1044 = vmatmul.mubr.bf16.gmra.mrb[0].mxu0 %v910
      %v1045 = vpop.f32.mrb[0].mxu0
      %v1046 = vadd.f32 0.0, %v1045
      %v1047 = vpop.f32.mrb[0].mxu0
      %v1048 = vpop.f32.mrb[0].mxu0
      %v1049 = vadd.f32 0.0, %v1048
      %v1050 = vpop.f32.mrb[0].mxu0
      %1051 = vmatprep.mubr.bf16.mxu0 0
      %1052 = vmatmul.mubr.bf16.gmra.mrb[0].mxu0 %v913
      %v1053 = vpop.f32.mrb[0].mxu0
      %v1054 = vadd.f32 0.0, %v1053
      %v1055 = vpop.f32.mrb[0].mxu0
      %v1056 = vpop.f32.mrb[0].mxu0
      %v1057 = vadd.f32 0.0, %v1056
      %v1058 = vpop.f32.mrb[0].mxu0
      %1059 = vmatprep.mubr.bf16.mxu0 0
      %1060 = vmatmul.mubr.bf16.gmra.mrb[0].mxu0 %v916
      %v1061 = vpop.f32.mrb[0].mxu0
      %v1062 = vadd.f32 0.0, %v1061
      %v1063 = vpop.f32.mrb[0].mxu0
      %v1064 = vpop.f32.mrb[0].mxu0
      %v1065 = vadd.f32 0.0, %v1064
      %v1066 = vpop.f32.mrb[0].mxu0
      %1067 = vmatprep.mubr.bf16.mxu0 0
      %1068 = vmatmul.mubr.bf16.gmra.mrb[0].mxu0 %v919
      %v1069 = vpop.f32.mrb[0].mxu0
      %v1070 = vadd.f32 0.0, %v1069
      %v1071 = vpop.f32.mrb[0].mxu0
      %v1072 = vpop.f32.mrb[0].mxu0
      %v1073 = vadd.f32 0.0, %v1072
      %v1074 = vpop.f32.mrb[0].mxu0
      %1075 = vmatprep.mubr.bf16.mxu0 0
      %1076 = vmatmul.mubr.bf16.gmra.mrb[0].mxu0 %v922
      %v1077 = vpop.f32.mrb[0].mxu0
      %v1078 = vadd.f32 0.0, %v1077
      %v1079 = vpop.f32.mrb[0].mxu0
      %v1080 = vpop.f32.mrb[0].mxu0
      %v1081 = vadd.f32 0.0, %v1080
      %v1082 = vpop.f32.mrb[0].mxu0
      %1083 = vmatprep.mubr.bf16.mxu0 0
      %1084 = vmatmul.mubr.bf16.gmra.mrb[0].mxu0 %v925
      %v1085 = vpop.f32.mrb[0].mxu0
      %v1086 = vadd.f32 0.0, %v1085
      %v1087 = vpop.f32.mrb[0].mxu0
      %v1088 = vpop.f32.mrb[0].mxu0
      %v1089 = vadd.f32 0.0, %v1088
      %v1090 = vpop.f32.mrb[0].mxu0
      %1091 = vmatprep.mubr.bf16.mxu0 0
      %1092 = vmatmul.mubr.bf16.gmra.mrb[0].mxu0 %v928
      %v1093 = vpop.f32.mrb[0].mxu0
      %v1094 = vadd.f32 0.0, %v1093
      %v1095 = vpop.f32.mrb[0].mxu0
      %v1096 = vpop.f32.mrb[0].mxu0
      %v1097 = vadd.f32 0.0, %v1096
      %v1098 = vpop.f32.mrb[0].mxu0
      %1099 = vmatprep.mubr.bf16.mxu0 0
      %1100 = vmatmul.mubr.bf16.gmra.mrb[0].mxu0 %v931
      %v1101 = vpop.f32.mrb[0].mxu0
      %v1102 = vadd.f32 0.0, %v1101
      %v1103 = vpop.f32.mrb[0].mxu0
      %v1104 = vpop.f32.mrb[0].mxu0
      %v1105 = vadd.f32 0.0, %v1104
      %v1106 = vpop.f32.mrb[0].mxu0
      %1107 = vmatprep.mubr.bf16.mxu0 0
      %1108 = vmatmul.mubr.bf16.gmra.mrb[0].mxu0 %v934
      %v1109 = vpop.f32.mrb[0].mxu0
      %v1110 = vadd.f32 0.0, %v1109
      %v1111 = vpop.f32.mrb[0].mxu0
      %v1112 = vpop.f32.mrb[0].mxu0
      %v1113 = vadd.f32 0.0, %v1112
      %v1114 = vpop.f32.mrb[0].mxu0
      %1115 = vdwg.mxu0
      %v1116 = vld [vmem:[%s195] sm:$0xff]
      %v1117 = vld [vmem:[%s195 + $0x8] sm:$0xff]
      %v1118 = vld [vmem:[%s195 + $0x10] sm:$0xff]
      %v1119 = vld [vmem:[%s195 + $0x18] sm:$0xff]
      %v1120 = vld [vmem:[%s195 + $0x20] sm:$0xff]
      %v1121 = vld [vmem:[%s195 + $0x28] sm:$0xff]
      %v1122 = vld [vmem:[%s195 + $0x30] sm:$0xff]
      %v1123 = vld [vmem:[%s195 + $0x38] sm:$0xff]
      %v1124 = vld [vmem:[%s195 + $0x40] sm:$0xff]
      %v1125 = vld [vmem:[%s195 + $0x48] sm:$0xff]
      %v1126 = vld [vmem:[%s195 + $0x50] sm:$0xff]
      %v1127 = vld [vmem:[%s195 + $0x58] sm:$0xff]
      %v1128 = vld [vmem:[%s195 + $0x60] sm:$0xff]
      %v1129 = vld [vmem:[%s195 + $0x68] sm:$0xff]
      %v1130 = vld [vmem:[%s195 + $0x70] sm:$0xff]
      %v1131 = vld [vmem:[%s195 + $0x78] sm:$0xff]
      %v1132 = vld [vmem:[%s195 + $0x80] sm:$0xff]
      %v1133 = vld [vmem:[%s195 + $0x88] sm:$0xff]
      %v1134 = vld [vmem:[%s195 + $0x90] sm:$0xff]
      %v1135 = vld [vmem:[%s195 + $0x98] sm:$0xff]
      %v1136 = vld [vmem:[%s195 + $0xa0] sm:$0xff]
      %v1137 = vld [vmem:[%s195 + $0xa8] sm:$0xff]
      %v1138 = vld [vmem:[%s195 + $0xb0] sm:$0xff]
      %v1139 = vld [vmem:[%s195 + $0xb8] sm:$0xff]
      %v1140 = vld [vmem:[%s195 + $0xc0] sm:$0xff]
      %v1141 = vld [vmem:[%s195 + $0xc8] sm:$0xff]
      %v1142 = vld [vmem:[%s195 + $0xd0] sm:$0xff]
      %v1143 = vld [vmem:[%s195 + $0xd8] sm:$0xff]
      %v1144 = vld [vmem:[%s195 + $0xe0] sm:$0xff]
      %v1145 = vld [vmem:[%s195 + $0xe8] sm:$0xff]
      %v1146 = vld [vmem:[%s195 + $0xf0] sm:$0xff]
      %v1147 = vld [vmem:[%s195 + $0xf8] sm:$0xff]
      %v1148 = vld [vmem:[%s195 + $0x100] sm:$0xff]
      %v1149 = vld [vmem:[%s195 + $0x108] sm:$0xff]
      %v1150 = vld [vmem:[%s195 + $0x110] sm:$0xff]
      %v1151 = vld [vmem:[%s195 + $0x118] sm:$0xff]
      %v1152 = vadd.f32 %v1116, %v974
      %v1153 = vadd.f32 %v1117, %v977
      %v1154 = vadd.f32 %v1118, %v982
      %v1155 = vadd.f32 %v1119, %v985
      %v1156 = vadd.f32 %v1120, %v990
      %v1157 = vadd.f32 %v1121, %v993
      %v1158 = vadd.f32 %v1122, %v998
      %v1159 = vadd.f32 %v1123, %v1001
      %v1160 = vadd.f32 %v1124, %v1006
      %v1161 = vadd.f32 %v1125, %v1009
      %v1162 = vadd.f32 %v1126, %v1014
      %v1163 = vadd.f32 %v1127, %v1017
      %v1164 = vadd.f32 %v1128, %v1022
      %v1165 = vadd.f32 %v1129, %v1025
      %v1166 = vadd.f32 %v1130, %v1030
      %v1167 = vadd.f32 %v1131, %v1033
      %v1168 = vadd.f32 %v1132, %v1038
      %v1169 = vadd.f32 %v1133, %v1041
      %v1170 = vadd.f32 %v1134, %v1046
      %v1171 = vadd.f32 %v1135, %v1049
      %v1172 = vadd.f32 %v1136, %v1054
      %v1173 = vadd.f32 %v1137, %v1057
      %v1174 = vadd.f32 %v1138, %v1062
      %v1175 = vadd.f32 %v1139, %v1065
      %v1176 = vadd.f32 %v1140, %v1070
      %v1177 = vadd.f32 %v1141, %v1073
      %v1178 = vadd.f32 %v1142, %v1078
      %v1179 = vadd.f32 %v1143, %v1081
      %v1180 = vadd.f32 %v1144, %v1086
      %v1181 = vadd.f32 %v1145, %v1089
      %v1182 = vadd.f32 %v1146, %v1094
      %v1183 = vadd.f32 %v1147, %v1097
      %v1184 = vadd.f32 %v1148, %v1102
      %v1185 = vadd.f32 %v1149, %v1105
      %v1186 = vadd.f32 %v1150, %v1110
      %v1187 = vadd.f32 %v1151, %v1113
      %1188 = vst [vmem:[%s195] sm:$0xff] %v1152
      %1189 = vst [vmem:[%s195 + $0x8] sm:$0xff] %v1153
      %1190 = vst [vmem:[%s195 + $0x10] sm:$0xff] %v1154
      %1191 = vst [vmem:[%s195 + $0x18] sm:$0xff] %v1155
      %1192 = vst [vmem:[%s195 + $0x20] sm:$0xff] %v1156
      %1193 = vst [vmem:[%s195 + $0x28] sm:$0xff] %v1157
      %1194 = vst [vmem:[%s195 + $0x30] sm:$0xff] %v1158
      %1195 = vst [vmem:[%s195 + $0x38] sm:$0xff] %v1159
      %1196 = vst [vmem:[%s195 + $0x40] sm:$0xff] %v1160
      %1197 = vst [vmem:[%s195 + $0x48] sm:$0xff] %v1161
      %1198 = vst [vmem:[%s195 + $0x50] sm:$0xff] %v1162
      %1199 = vst [vmem:[%s195 + $0x58] sm:$0xff] %v1163
      %1200 = vst [vmem:[%s195 + $0x60] sm:$0xff] %v1164
      %1201 = vst [vmem:[%s195 + $0x68] sm:$0xff] %v1165
      %1202 = vst [vmem:[%s195 + $0x70] sm:$0xff] %v1166
      %1203 = vst [vmem:[%s195 + $0x78] sm:$0xff] %v1167
      %1204 = vst [vmem:[%s195 + $0x80] sm:$0xff] %v1168
      %1205 = vst [vmem:[%s195 + $0x88] sm:$0xff] %v1169
      %1206 = vst [vmem:[%s195 + $0x90] sm:$0xff] %v1170
      %1207 = vst [vmem:[%s195 + $0x98] sm:$0xff] %v1171
      %1208 = vst [vmem:[%s195 + $0xa0] sm:$0xff] %v1172
      %1209 = vst [vmem:[%s195 + $0xa8] sm:$0xff] %v1173
      %1210 = vst [vmem:[%s195 + $0xb0] sm:$0xff] %v1174
      %1211 = vst [vmem:[%s195 + $0xb8] sm:$0xff] %v1175
      %1212 = vst [vmem:[%s195 + $0xc0] sm:$0xff] %v1176
      %1213 = vst [vmem:[%s195 + $0xc8] sm:$0xff] %v1177
      %1214 = vst [vmem:[%s195 + $0xd0] sm:$0xff] %v1178
      %1215 = vst [vmem:[%s195 + $0xd8] sm:$0xff] %v1179
      %1216 = vst [vmem:[%s195 + $0xe0] sm:$0xff] %v1180
      %1217 = vst [vmem:[%s195 + $0xe8] sm:$0xff] %v1181
      %1218 = vst [vmem:[%s195 + $0xf0] sm:$0xff] %v1182
      %1219 = vst [vmem:[%s195 + $0xf8] sm:$0xff] %v1183
      %1220 = vst [vmem:[%s195 + $0x100] sm:$0xff] %v1184
      %1221 = vst [vmem:[%s195 + $0x108] sm:$0xff] %v1185
      %1222 = vst [vmem:[%s195 + $0x110] sm:$0xff] %v1186
      %1223 = vst [vmem:[%s195 + $0x118] sm:$0xff] %v1187
      %v1224 = vld [vmem:[%s190] sm:$0xe]
      %v1225 = vld [vmem:[%s190 + $0x4] sm:$0xf]
      %v1226 = vld [vmem:[%s190 + $0x8] sm:$0xf]
      %v1227 = vld [vmem:[%s190 + $0xc] sm:$0xf]
      %v1228 = vld [vmem:[%s190 + $0x10] sm:$0xf]
      %v1229 = vld [vmem:[%s190 + $0x14] sm:$0xf]
      %v1230 = vld [vmem:[%s190 + $0x18] sm:$0xf]
      %v1231 = vld [vmem:[%s190 + $0x1c] sm:$0xf]
      %v1232 = vld [vmem:[%s190 + $0x20] sm:$0xf]
      %v1233 = vld [vmem:[%s190 + $0x24] sm:$0xf]
      %v1234 = vld [vmem:[%s190 + $0x28] sm:$0xf]
      %v1235 = vld [vmem:[%s190 + $0x2c] sm:$0xf]
      %v1236 = vld [vmem:[%s190 + $0x30] sm:$0xf]
      %v1237 = vld [vmem:[%s190 + $0x34] sm:$0xf]
      %v1238 = vld [vmem:[%s190 + $0x38] sm:$0xf]
      %v1239 = vld [vmem:[%s190 + $0x3c] sm:$0xf]
      %v1240 = vld [vmem:[%s190 + $0x40] sm:$0xf]
      %v1241 = vld [vmem:[%s190 + $0x44] sm:$0xf]
      %v1242 = vld [vmem:[%s190 + $0x48] sm:$0xf]
      %v1243 = vld [vmem:[%s190 + $0x4c] sm:$0xf]
      %v1244 = vld [vmem:[%s190 + $0x50] sm:$0xf]
      %v1245 = vld [vmem:[%s190 + $0x54] sm:$0xf]
      %v1246 = vld [vmem:[%s190 + $0x58] sm:$0xf]
      %v1247 = vld [vmem:[%s190 + $0x5c] sm:$0xf]
      %v1248 = vld [vmem:[%s190 + $0x60] sm:$0xf]
      %v1249 = vld [vmem:[%s190 + $0x64] sm:$0xf]
      %v1250 = vld [vmem:[%s190 + $0x68] sm:$0xf]
      %v1251 = vld [vmem:[%s190 + $0x6c] sm:$0xf]
      %v1252 = vld [vmem:[%s190 + $0x70] sm:$0xf]
      %v1253 = vld [vmem:[%s190 + $0x74] sm:$0xf]
      %v1254 = vld [vmem:[%s190 + $0x78] sm:$0xf]
      %v1255 = vld [vmem:[%s190 + $0x7c] sm:$0xf]
      %v1256 = vld [vmem:[%s190 + $0x80] sm:$0xf]
      %v1257 = vld [vmem:[%s190 + $0x84] sm:$0xf]
      %v1258 = vld [vmem:[%s190 + $0x88] sm:$0xf]
      %v1259 = vld [vmem:[%s190 + $0x8c] sm:$0xf]
      %v1260 = vld [vmem:[%s190 + $0x90] sm:$0x1]
      %s1261 = scalar_lea.vmem %s1, 4
      %v1262 = vld [vmem:[%s1261] sm:$0x3]
      %v1300 = vunpack.c.l.b16 %v1224
      %v1301 = vunpack.c.l.b16 %v1225
      %v1302 = vunpack.c.l.b16 %v1226
      %v1303 = vunpack.c.l.b16 %v1227
      %v1304 = vunpack.c.l.b16 %v1228
      %v1305 = vunpack.c.l.b16 %v1229
      %v1306 = vunpack.c.l.b16 %v1230
      %v1307 = vunpack.c.l.b16 %v1231
      %v1308 = vunpack.c.l.b16 %v1232
      %v1309 = vunpack.c.l.b16 %v1233
      %v1310 = vunpack.c.l.b16 %v1234
      %v1311 = vunpack.c.l.b16 %v1235
      %v1312 = vunpack.c.l.b16 %v1236
      %v1313 = vunpack.c.l.b16 %v1237
      %v1314 = vunpack.c.l.b16 %v1238
      %v1315 = vunpack.c.l.b16 %v1239
      %v1316 = vunpack.c.l.b16 %v1240
      %v1317 = vunpack.c.l.b16 %v1241
      %v1318 = vunpack.c.l.b16 %v1242
      %v1319 = vunpack.c.l.b16 %v1243
      %v1320 = vunpack.c.l.b16 %v1244
      %v1321 = vunpack.c.l.b16 %v1245
      %v1322 = vunpack.c.l.b16 %v1246
      %v1323 = vunpack.c.l.b16 %v1247
      %v1324 = vunpack.c.l.b16 %v1248
      %v1325 = vunpack.c.l.b16 %v1249
      %v1326 = vunpack.c.l.b16 %v1250
      %v1327 = vunpack.c.l.b16 %v1251
      %v1328 = vunpack.c.l.b16 %v1252
      %v1329 = vunpack.c.l.b16 %v1253
      %v1330 = vunpack.c.l.b16 %v1254
      %v1331 = vunpack.c.l.b16 %v1255
      %v1332 = vunpack.c.l.b16 %v1256
      %v1333 = vunpack.c.l.b16 %v1257
      %v1334 = vunpack.c.l.b16 %v1258
      %v1335 = vunpack.c.l.b16 %v1259
      %v1336 = vunpack.c.l.b16 %v1260
      %v1337 = vpack.c.b16 %v1301, %v1300
      %v1338 = vpack.c.b16 %v1303, %v1302
      %v1339 = vpack.c.b16 %v1305, %v1304
      %v1340 = vpack.c.b16 %v1307, %v1306
      %v1341 = vpack.c.b16 %v1309, %v1308
      %v1342 = vpack.c.b16 %v1311, %v1310
      %v1343 = vpack.c.b16 %v1313, %v1312
      %v1344 = vpack.c.b16 %v1315, %v1314
      %v1345 = vpack.c.b16 %v1317, %v1316
      %v1346 = vpack.c.b16 %v1319, %v1318
      %v1347 = vpack.c.b16 %v1321, %v1320
      %v1348 = vpack.c.b16 %v1323, %v1322
      %v1349 = vpack.c.b16 %v1325, %v1324
      %v1350 = vpack.c.b16 %v1327, %v1326
      %v1351 = vpack.c.b16 %v1329, %v1328
      %v1352 = vpack.c.b16 %v1331, %v1330
      %v1353 = vpack.c.b16 %v1333, %v1332
      %v1354 = vpack.c.b16 %v1335, %v1334
      %v1355 = vpack.c.b16 %v1336, %v1336
      %vm1356 = vcmask 1046528
      %v1357 = vrot.slane %v1337, 1
      %v1358 = vrot.slane %v1338, 1
      %v1359 = vsel %vm1356, %v1357, %v1358
      %v1360 = vrot.slane %v1339, 1
      %v1361 = vsel %vm1356, %v1358, %v1360
      %v1362 = vrot.slane %v1340, 1
      %v1363 = vsel %vm1356, %v1360, %v1362
      %v1364 = vrot.slane %v1341, 1
      %v1365 = vsel %vm1356, %v1362, %v1364
      %v1366 = vrot.slane %v1342, 1
      %v1367 = vsel %vm1356, %v1364, %v1366
      %v1368 = vrot.slane %v1343, 1
      %v1369 = vsel %vm1356, %v1366, %v1368
      %v1370 = vrot.slane %v1344, 1
      %v1371 = vsel %vm1356, %v1368, %v1370
      %v1372 = vrot.slane %v1345, 1
      %v1373 = vsel %vm1356, %v1370, %v1372
      %v1374 = vrot.slane %v1346, 1
      %v1375 = vsel %vm1356, %v1372, %v1374
      %v1376 = vrot.slane %v1347, 1
      %v1377 = vsel %vm1356, %v1374, %v1376
      %v1378 = vrot.slane %v1348, 1
      %v1379 = vsel %vm1356, %v1376, %v1378
      %v1380 = vrot.slane %v1349, 1
      %v1381 = vsel %vm1356, %v1378, %v1380
      %v1382 = vrot.slane %v1350, 1
      %v1383 = vsel %vm1356, %v1380, %v1382
      %v1384 = vrot.slane %v1351, 1
      %v1385 = vsel %vm1356, %v1382, %v1384
      %v1386 = vrot.slane %v1352, 1
      %v1387 = vsel %vm1356, %v1384, %v1386
      %v1388 = vrot.slane %v1353, 1
      %v1389 = vsel %vm1356, %v1386, %v1388
      %v1390 = vrot.slane %v1354, 1
      %v1391 = vsel %vm1356, %v1388, %v1390
      %v1392 = vrot.slane %v1355, 1
      %v1393 = vsel %vm1356, %v1390, %v1392
      %v1395 = vsel %vm329, %v1359, 0
      %v1398 = vsel %vm329, %v1361, 0
      %v1401 = vsel %vm329, %v1363, 0
      %v1404 = vsel %vm329, %v1365, 0
      %v1407 = vsel %vm329, %v1367, 0
      %v1410 = vsel %vm329, %v1369, 0
      %v1413 = vsel %vm329, %v1371, 0
      %v1416 = vsel %vm329, %v1373, 0
      %v1419 = vsel %vm329, %v1375, 0
      %v1422 = vsel %vm329, %v1377, 0
      %v1425 = vsel %vm329, %v1379, 0
      %v1428 = vsel %vm329, %v1381, 0
      %v1431 = vsel %vm329, %v1383, 0
      %v1434 = vsel %vm329, %v1385, 0
      %v1437 = vsel %vm329, %v1387, 0
      %v1440 = vsel %vm329, %v1389, 0
      %v1443 = vsel %vm329, %v1391, 0
      %v1446 = vsel %vm329, %v1393, 0
      %v1449 = vsel %vm384, %v1262, 0
      %1451 = vmatprep.subr.bf16.mxu0 0
      %1452 = vmatpush1.bf16.msra.mxu0 %v1449
      %1453 = vmatprep.subr.bf16.mxu0 0
      %1454 = vmatpush1.bf16.msra.mxu0 0
      %1455 = vmatprep.subr.bf16.mxu0 0
      %1456 = vmatpush1.bf16.msra.mxu0 0
      %1457 = vmatprep.subr.bf16.mxu0 0
      %1458 = vmatpush1.bf16.msra.mxu0 0
      %1459 = vmatprep.subr.bf16.mxu0 0
      %1460 = vmatpush1.bf16.msra.mxu0 0
      %1461 = vmatprep.subr.bf16.mxu0 0
      %1462 = vmatpush1.bf16.msra.mxu0 0
      %1463 = vmatprep.subr.bf16.mxu0 0
      %1464 = vmatpush1.bf16.msra.mxu0 0
      %1465 = vmatprep.subr.bf16.mxu0 0
      %1466 = vmatpush1.bf16.msra.mxu0 0
      %1467 = vmatprep.subr.bf16.mxu0 0
      %1468 = vmatpush1.bf16.msra.mxu0 0
      %1469 = vmatprep.subr.bf16.mxu0 0
      %1470 = vmatpush1.bf16.msra.mxu0 0
      %1471 = vmatprep.subr.bf16.mxu0 0
      %1472 = vmatpush1.bf16.msra.mxu0 0
      %1473 = vmatprep.subr.bf16.mxu0 0
      %1474 = vmatpush1.bf16.msra.mxu0 0
      %1475 = vmatprep.subr.bf16.mxu0 0
      %1476 = vmatpush1.bf16.msra.mxu0 0
      %1477 = vmatprep.subr.bf16.mxu0 0
      %1478 = vmatpush1.bf16.msra.mxu0 0
      %1479 = vmatprep.subr.bf16.mxu0 0
      %1480 = vmatpush1.bf16.msra.mxu0 0
      %1481 = vmatprep.subr.bf16.mxu0 0
      %1482 = vmatpush1.bf16.msra.mxu0 0
      %1483 = vmatprep.mubr.bf16.mxu0 0
      %1484 = vmatmul.mubr.bf16.gmra.mrb[0].mxu0 %v1395
      %v1485 = vpop.f32.mrb[0].mxu0
      %v1486 = vadd.f32 0.0, %v1485
      %v1487 = vpop.f32.mrb[0].mxu0
      %v1488 = vpop.f32.mrb[0].mxu0
      %v1489 = vadd.f32 0.0, %v1488
      %v1490 = vpop.f32.mrb[0].mxu0
      %1491 = vmatprep.mubr.bf16.mxu0 0
      %1492 = vmatmul.mubr.bf16.gmra.mrb[0].mxu0 %v1398
      %v1493 = vpop.f32.mrb[0].mxu0
      %v1494 = vadd.f32 0.0, %v1493
      %v1495 = vpop.f32.mrb[0].mxu0
      %v1496 = vpop.f32.mrb[0].mxu0
      %v1497 = vadd.f32 0.0, %v1496
      %v1498 = vpop.f32.mrb[0].mxu0
      %1499 = vmatprep.mubr.bf16.mxu0 0
      %1500 = vmatmul.mubr.bf16.gmra.mrb[0].mxu0 %v1401
      %v1501 = vpop.f32.mrb[0].mxu0
      %v1502 = vadd.f32 0.0, %v1501
      %v1503 = vpop.f32.mrb[0].mxu0
      %v1504 = vpop.f32.mrb[0].mxu0
      %v1505 = vadd.f32 0.0, %v1504
      %v1506 = vpop.f32.mrb[0].mxu0
      %1507 = vmatprep.mubr.bf16.mxu0 0
      %1508 = vmatmul.mubr.bf16.gmra.mrb[0].mxu0 %v1404
      %v1509 = vpop.f32.mrb[0].mxu0
      %v1510 = vadd.f32 0.0, %v1509
      %v1511 = vpop.f32.mrb[0].mxu0
      %v1512 = vpop.f32.mrb[0].mxu0
      %v1513 = vadd.f32 0.0, %v1512
      %v1514 = vpop.f32.mrb[0].mxu0
      %1515 = vmatprep.mubr.bf16.mxu0 0
      %1516 = vmatmul.mubr.bf16.gmra.mrb[0].mxu0 %v1407
      %v1517 = vpop.f32.mrb[0].mxu0
      %v1518 = vadd.f32 0.0, %v1517
      %v1519 = vpop.f32.mrb[0].mxu0
      %v1520 = vpop.f32.mrb[0].mxu0
      %v1521 = vadd.f32 0.0, %v1520
      %v1522 = vpop.f32.mrb[0].mxu0
      %1523 = vmatprep.mubr.bf16.mxu0 0
      %1524 = vmatmul.mubr.bf16.gmra.mrb[0].mxu0 %v1410
      %v1525 = vpop.f32.mrb[0].mxu0
      %v1526 = vadd.f32 0.0, %v1525
      %v1527 = vpop.f32.mrb[0].mxu0
      %v1528 = vpop.f32.mrb[0].mxu0
      %v1529 = vadd.f32 0.0, %v1528
      %v1530 = vpop.f32.mrb[0].mxu0
      %1531 = vmatprep.mubr.bf16.mxu0 0
      %1532 = vmatmul.mubr.bf16.gmra.mrb[0].mxu0 %v1413
      %v1533 = vpop.f32.mrb[0].mxu0
      %v1534 = vadd.f32 0.0, %v1533
      %v1535 = vpop.f32.mrb[0].mxu0
      %v1536 = vpop.f32.mrb[0].mxu0
      %v1537 = vadd.f32 0.0, %v1536
      %v1538 = vpop.f32.mrb[0].mxu0
      %1539 = vmatprep.mubr.bf16.mxu0 0
      %1540 = vmatmul.mubr.bf16.gmra.mrb[0].mxu0 %v1416
      %v1541 = vpop.f32.mrb[0].mxu0
      %v1542 = vadd.f32 0.0, %v1541
      %v1543 = vpop.f32.mrb[0].mxu0
      %v1544 = vpop.f32.mrb[0].mxu0
      %v1545 = vadd.f32 0.0, %v1544
      %v1546 = vpop.f32.mrb[0].mxu0
      %1547 = vmatprep.mubr.bf16.mxu0 0
      %1548 = vmatmul.mubr.bf16.gmra.mrb[0].mxu0 %v1419
      %v1549 = vpop.f32.mrb[0].mxu0
      %v1550 = vadd.f32 0.0, %v1549
      %v1551 = vpop.f32.mrb[0].mxu0
      %v1552 = vpop.f32.mrb[0].mxu0
      %v1553 = vadd.f32 0.0, %v1552
      %v1554 = vpop.f32.mrb[0].mxu0
      %1555 = vmatprep.mubr.bf16.mxu0 0
      %1556 = vmatmul.mubr.bf16.gmra.mrb[0].mxu0 %v1422
      %v1557 = vpop.f32.mrb[0].mxu0
      %v1558 = vadd.f32 0.0, %v1557
      %v1559 = vpop.f32.mrb[0].mxu0
      %v1560 = vpop.f32.mrb[0].mxu0
      %v1561 = vadd.f32 0.0, %v1560
      %v1562 = vpop.f32.mrb[0].mxu0
      %1563 = vmatprep.mubr.bf16.mxu0 0
      %1564 = vmatmul.mubr.bf16.gmra.mrb[0].mxu0 %v1425
      %v1565 = vpop.f32.mrb[0].mxu0
      %v1566 = vadd.f32 0.0, %v1565
      %v1567 = vpop.f32.mrb[0].mxu0
      %v1568 = vpop.f32.mrb[0].mxu0
      %v1569 = vadd.f32 0.0, %v1568
      %v1570 = vpop.f32.mrb[0].mxu0
      %1571 = vmatprep.mubr.bf16.mxu0 0
      %1572 = vmatmul.mubr.bf16.gmra.mrb[0].mxu0 %v1428
      %v1573 = vpop.f32.mrb[0].mxu0
      %v1574 = vadd.f32 0.0, %v1573
      %v1575 = vpop.f32.mrb[0].mxu0
      %v1576 = vpop.f32.mrb[0].mxu0
      %v1577 = vadd.f32 0.0, %v1576
      %v1578 = vpop.f32.mrb[0].mxu0
      %1579 = vmatprep.mubr.bf16.mxu0 0
      %1580 = vmatmul.mubr.bf16.gmra.mrb[0].mxu0 %v1431
      %v1581 = vpop.f32.mrb[0].mxu0
      %v1582 = vadd.f32 0.0, %v1581
      %v1583 = vpop.f32.mrb[0].mxu0
      %v1584 = vpop.f32.mrb[0].mxu0
      %v1585 = vadd.f32 0.0, %v1584
      %v1586 = vpop.f32.mrb[0].mxu0
      %1587 = vmatprep.mubr.bf16.mxu0 0
      %1588 = vmatmul.mubr.bf16.gmra.mrb[0].mxu0 %v1434
      %v1589 = vpop.f32.mrb[0].mxu0
      %v1590 = vadd.f32 0.0, %v1589
      %v1591 = vpop.f32.mrb[0].mxu0
      %v1592 = vpop.f32.mrb[0].mxu0
      %v1593 = vadd.f32 0.0, %v1592
      %v1594 = vpop.f32.mrb[0].mxu0
      %1595 = vmatprep.mubr.bf16.mxu0 0
      %1596 = vmatmul.mubr.bf16.gmra.mrb[0].mxu0 %v1437
      %v1597 = vpop.f32.mrb[0].mxu0
      %v1598 = vadd.f32 0.0, %v1597
      %v1599 = vpop.f32.mrb[0].mxu0
      %v1600 = vpop.f32.mrb[0].mxu0
      %v1601 = vadd.f32 0.0, %v1600
      %v1602 = vpop.f32.mrb[0].mxu0
      %1603 = vmatprep.mubr.bf16.mxu0 0
      %1604 = vmatmul.mubr.bf16.gmra.mrb[0].mxu0 %v1440
      %v1605 = vpop.f32.mrb[0].mxu0
      %v1606 = vadd.f32 0.0, %v1605
      %v1607 = vpop.f32.mrb[0].mxu0
      %v1608 = vpop.f32.mrb[0].mxu0
      %v1609 = vadd.f32 0.0, %v1608
      %v1610 = vpop.f32.mrb[0].mxu0
      %1611 = vmatprep.mubr.bf16.mxu0 0
      %1612 = vmatmul.mubr.bf16.gmra.mrb[0].mxu0 %v1443
      %v1613 = vpop.f32.mrb[0].mxu0
      %v1614 = vadd.f32 0.0, %v1613
      %v1615 = vpop.f32.mrb[0].mxu0
      %v1616 = vpop.f32.mrb[0].mxu0
      %v1617 = vadd.f32 0.0, %v1616
      %v1618 = vpop.f32.mrb[0].mxu0
      %1619 = vmatprep.mubr.bf16.mxu0 0
      %1620 = vmatmul.mubr.bf16.gmra.mrb[0].mxu0 %v1446
      %v1621 = vpop.f32.mrb[0].mxu0
      %v1622 = vadd.f32 0.0, %v1621
      %v1623 = vpop.f32.mrb[0].mxu0
      %v1624 = vpop.f32.mrb[0].mxu0
      %v1625 = vadd.f32 0.0, %v1624
      %v1626 = vpop.f32.mrb[0].mxu0
      %1627 = vdwg.mxu0
      %v1628 = vld [vmem:[%s195] sm:$0xff]
      %v1629 = vld [vmem:[%s195 + $0x8] sm:$0xff]
      %v1630 = vld [vmem:[%s195 + $0x10] sm:$0xff]
      %v1631 = vld [vmem:[%s195 + $0x18] sm:$0xff]
      %v1632 = vld [vmem:[%s195 + $0x20] sm:$0xff]
      %v1633 = vld [vmem:[%s195 + $0x28] sm:$0xff]
      %v1634 = vld [vmem:[%s195 + $0x30] sm:$0xff]
      %v1635 = vld [vmem:[%s195 + $0x38] sm:$0xff]
      %v1636 = vld [vmem:[%s195 + $0x40] sm:$0xff]
      %v1637 = vld [vmem:[%s195 + $0x48] sm:$0xff]
      %v1638 = vld [vmem:[%s195 + $0x50] sm:$0xff]
      %v1639 = vld [vmem:[%s195 + $0x58] sm:$0xff]
      %v1640 = vld [vmem:[%s195 + $0x60] sm:$0xff]
      %v1641 = vld [vmem:[%s195 + $0x68] sm:$0xff]
      %v1642 = vld [vmem:[%s195 + $0x70] sm:$0xff]
      %v1643 = vld [vmem:[%s195 + $0x78] sm:$0xff]
      %v1644 = vld [vmem:[%s195 + $0x80] sm:$0xff]
      %v1645 = vld [vmem:[%s195 + $0x88] sm:$0xff]
      %v1646 = vld [vmem:[%s195 + $0x90] sm:$0xff]
      %v1647 = vld [vmem:[%s195 + $0x98] sm:$0xff]
      %v1648 = vld [vmem:[%s195 + $0xa0] sm:$0xff]
      %v1649 = vld [vmem:[%s195 + $0xa8] sm:$0xff]
      %v1650 = vld [vmem:[%s195 + $0xb0] sm:$0xff]
      %v1651 = vld [vmem:[%s195 + $0xb8] sm:$0xff]
      %v1652 = vld [vmem:[%s195 + $0xc0] sm:$0xff]
      %v1653 = vld [vmem:[%s195 + $0xc8] sm:$0xff]
      %v1654 = vld [vmem:[%s195 + $0xd0] sm:$0xff]
      %v1655 = vld [vmem:[%s195 + $0xd8] sm:$0xff]
      %v1656 = vld [vmem:[%s195 + $0xe0] sm:$0xff]
      %v1657 = vld [vmem:[%s195 + $0xe8] sm:$0xff]
      %v1658 = vld [vmem:[%s195 + $0xf0] sm:$0xff]
      %v1659 = vld [vmem:[%s195 + $0xf8] sm:$0xff]
      %v1660 = vld [vmem:[%s195 + $0x100] sm:$0xff]
      %v1661 = vld [vmem:[%s195 + $0x108] sm:$0xff]
      %v1662 = vld [vmem:[%s195 + $0x110] sm:$0xff]
      %v1663 = vld [vmem:[%s195 + $0x118] sm:$0xff]
      %v1664 = vadd.f32 %v1628, %v1486
      %v1665 = vadd.f32 %v1629, %v1489
      %v1666 = vadd.f32 %v1630, %v1494
      %v1667 = vadd.f32 %v1631, %v1497
      %v1668 = vadd.f32 %v1632, %v1502
      %v1669 = vadd.f32 %v1633, %v1505
      %v1670 = vadd.f32 %v1634, %v1510
      %v1671 = vadd.f32 %v1635, %v1513
      %v1672 = vadd.f32 %v1636, %v1518
      %v1673 = vadd.f32 %v1637, %v1521
      %v1674 = vadd.f32 %v1638, %v1526
      %v1675 = vadd.f32 %v1639, %v1529
      %v1676 = vadd.f32 %v1640, %v1534
      %v1677 = vadd.f32 %v1641, %v1537
      %v1678 = vadd.f32 %v1642, %v1542
      %v1679 = vadd.f32 %v1643, %v1545
      %v1680 = vadd.f32 %v1644, %v1550
      %v1681 = vadd.f32 %v1645, %v1553
      %v1682 = vadd.f32 %v1646, %v1558
      %v1683 = vadd.f32 %v1647, %v1561
      %v1684 = vadd.f32 %v1648, %v1566
      %v1685 = vadd.f32 %v1649, %v1569
      %v1686 = vadd.f32 %v1650, %v1574
      %v1687 = vadd.f32 %v1651, %v1577
      %v1688 = vadd.f32 %v1652, %v1582
      %v1689 = vadd.f32 %v1653, %v1585
      %v1690 = vadd.f32 %v1654, %v1590
      %v1691 = vadd.f32 %v1655, %v1593
      %v1692 = vadd.f32 %v1656, %v1598
      %v1693 = vadd.f32 %v1657, %v1601
      %v1694 = vadd.f32 %v1658, %v1606
      %v1695 = vadd.f32 %v1659, %v1609
      %v1696 = vadd.f32 %v1660, %v1614
      %v1697 = vadd.f32 %v1661, %v1617
      %v1698 = vadd.f32 %v1662, %v1622
      %v1699 = vadd.f32 %v1663, %v1625
      %1700 = vst [vmem:[%s195] sm:$0xff] %v1664
      %1701 = vst [vmem:[%s195 + $0x8] sm:$0xff] %v1665
      %1702 = vst [vmem:[%s195 + $0x10] sm:$0xff] %v1666
      %1703 = vst [vmem:[%s195 + $0x18] sm:$0xff] %v1667
      %1704 = vst [vmem:[%s195 + $0x20] sm:$0xff] %v1668
      %1705 = vst [vmem:[%s195 + $0x28] sm:$0xff] %v1669
      %1706 = vst [vmem:[%s195 + $0x30] sm:$0xff] %v1670
      %1707 = vst [vmem:[%s195 + $0x38] sm:$0xff] %v1671
      %1708 = vst [vmem:[%s195 + $0x40] sm:$0xff] %v1672
      %1709 = vst [vmem:[%s195 + $0x48] sm:$0xff] %v1673
      %1710 = vst [vmem:[%s195 + $0x50] sm:$0xff] %v1674
      %1711 = vst [vmem:[%s195 + $0x58] sm:$0xff] %v1675
      %1712 = vst [vmem:[%s195 + $0x60] sm:$0xff] %v1676
      %1713 = vst [vmem:[%s195 + $0x68] sm:$0xff] %v1677
      %1714 = vst [vmem:[%s195 + $0x70] sm:$0xff] %v1678
      %1715 = vst [vmem:[%s195 + $0x78] sm:$0xff] %v1679
      %1716 = vst [vmem:[%s195 + $0x80] sm:$0xff] %v1680
      %1717 = vst [vmem:[%s195 + $0x88] sm:$0xff] %v1681
      %1718 = vst [vmem:[%s195 + $0x90] sm:$0xff] %v1682
      %1719 = vst [vmem:[%s195 + $0x98] sm:$0xff] %v1683
      %1720 = vst [vmem:[%s195 + $0xa0] sm:$0xff] %v1684
      %1721 = vst [vmem:[%s195 + $0xa8] sm:$0xff] %v1685
      %1722 = vst [vmem:[%s195 + $0xb0] sm:$0xff] %v1686
      %1723 = vst [vmem:[%s195 + $0xb8] sm:$0xff] %v1687
      %1724 = vst [vmem:[%s195 + $0xc0] sm:$0xff] %v1688
      %1725 = vst [vmem:[%s195 + $0xc8] sm:$0xff] %v1689
      %1726 = vst [vmem:[%s195 + $0xd0] sm:$0xff] %v1690
      %1727 = vst [vmem:[%s195 + $0xd8] sm:$0xff] %v1691
      %1728 = vst [vmem:[%s195 + $0xe0] sm:$0xff] %v1692
      %1729 = vst [vmem:[%s195 + $0xe8] sm:$0xff] %v1693
      %1730 = vst [vmem:[%s195 + $0xf0] sm:$0xff] %v1694
      %1731 = vst [vmem:[%s195 + $0xf8] sm:$0xff] %v1695
      %1732 = vst [vmem:[%s195 + $0x100] sm:$0xff] %v1696
      %1733 = vst [vmem:[%s195 + $0x108] sm:$0xff] %v1697
      %1734 = vst [vmem:[%s195 + $0x110] sm:$0xff] %v1698
      %1735 = vst [vmem:[%s195 + $0x118] sm:$0xff] %v1699
      %v1736 = vld [vmem:[%s190 + $0x8] sm:$0xe]
      %v1737 = vld [vmem:[%s190 + $0xc] sm:$0xf]
      %v1738 = vld [vmem:[%s190 + $0x10] sm:$0xf]
      %v1739 = vld [vmem:[%s190 + $0x14] sm:$0xf]
      %v1740 = vld [vmem:[%s190 + $0x18] sm:$0xf]
      %v1741 = vld [vmem:[%s190 + $0x1c] sm:$0xf]
      %v1742 = vld [vmem:[%s190 + $0x20] sm:$0xf]
      %v1743 = vld [vmem:[%s190 + $0x24] sm:$0xf]
      %v1744 = vld [vmem:[%s190 + $0x28] sm:$0xf]
      %v1745 = vld [vmem:[%s190 + $0x2c] sm:$0xf]
      %v1746 = vld [vmem:[%s190 + $0x30] sm:$0xf]
      %v1747 = vld [vmem:[%s190 + $0x34] sm:$0xf]
      %v1748 = vld [vmem:[%s190 + $0x38] sm:$0xf]
      %v1749 = vld [vmem:[%s190 + $0x3c] sm:$0xf]
      %v1750 = vld [vmem:[%s190 + $0x40] sm:$0xf]
      %v1751 = vld [vmem:[%s190 + $0x44] sm:$0xf]
      %v1752 = vld [vmem:[%s190 + $0x48] sm:$0xf]
      %v1753 = vld [vmem:[%s190 + $0x4c] sm:$0xf]
      %v1754 = vld [vmem:[%s190 + $0x50] sm:$0xf]
      %v1755 = vld [vmem:[%s190 + $0x54] sm:$0xf]
      %v1756 = vld [vmem:[%s190 + $0x58] sm:$0xf]
      %v1757 = vld [vmem:[%s190 + $0x5c] sm:$0xf]
      %v1758 = vld [vmem:[%s190 + $0x60] sm:$0xf]
      %v1759 = vld [vmem:[%s190 + $0x64] sm:$0xf]
      %v1760 = vld [vmem:[%s190 + $0x68] sm:$0xf]
      %v1761 = vld [vmem:[%s190 + $0x6c] sm:$0xf]
      %v1762 = vld [vmem:[%s190 + $0x70] sm:$0xf]
      %v1763 = vld [vmem:[%s190 + $0x74] sm:$0xf]
      %v1764 = vld [vmem:[%s190 + $0x78] sm:$0xf]
      %v1765 = vld [vmem:[%s190 + $0x7c] sm:$0xf]
      %v1766 = vld [vmem:[%s190 + $0x80] sm:$0xf]
      %v1767 = vld [vmem:[%s190 + $0x84] sm:$0xf]
      %v1768 = vld [vmem:[%s190 + $0x88] sm:$0xf]
      %v1769 = vld [vmem:[%s190 + $0x8c] sm:$0xf]
      %v1770 = vld [vmem:[%s190 + $0x90] sm:$0xf]
      %v1771 = vld [vmem:[%s190 + $0x94] sm:$0xf]
      %v1772 = vld [vmem:[%s190 + $0x98] sm:$0x1]
      %s1773 = scalar_lea.vmem %s1, 6
      %v1774 = vld [vmem:[%s1773] sm:$0x3]
      %v1812 = vunpack.c.l.b16 %v1736
      %v1813 = vunpack.c.l.b16 %v1737
      %v1814 = vunpack.c.l.b16 %v1738
      %v1815 = vunpack.c.l.b16 %v1739
      %v1816 = vunpack.c.l.b16 %v1740
      %v1817 = vunpack.c.l.b16 %v1741
      %v1818 = vunpack.c.l.b16 %v1742
      %v1819 = vunpack.c.l.b16 %v1743
      %v1820 = vunpack.c.l.b16 %v1744
      %v1821 = vunpack.c.l.b16 %v1745
      %v1822 = vunpack.c.l.b16 %v1746
      %v1823 = vunpack.c.l.b16 %v1747
      %v1824 = vunpack.c.l.b16 %v1748
      %v1825 = vunpack.c.l.b16 %v1749
      %v1826 = vunpack.c.l.b16 %v1750
      %v1827 = vunpack.c.l.b16 %v1751
      %v1828 = vunpack.c.l.b16 %v1752
      %v1829 = vunpack.c.l.b16 %v1753
      %v1830 = vunpack.c.l.b16 %v1754
      %v1831 = vunpack.c.l.b16 %v1755
      %v1832 = vunpack.c.l.b16 %v1756
      %v1833 = vunpack.c.l.b16 %v1757
      %v1834 = vunpack.c.l.b16 %v1758
      %v1835 = vunpack.c.l.b16 %v1759
      %v1836 = vunpack.c.l.b16 %v1760
      %v1837 = vunpack.c.l.b16 %v1761
      %v1838 = vunpack.c.l.b16 %v1762
      %v1839 = vunpack.c.l.b16 %v1763
      %v1840 = vunpack.c.l.b16 %v1764
      %v1841 = vunpack.c.l.b16 %v1765
      %v1842 = vunpack.c.l.b16 %v1766
      %v1843 = vunpack.c.l.b16 %v1767
      %v1844 = vunpack.c.l.b16 %v1768
      %v1845 = vunpack.c.l.b16 %v1769
      %v1846 = vunpack.c.l.b16 %v1770
      %v1847 = vunpack.c.l.b16 %v1771
      %v1848 = vunpack.c.l.b16 %v1772
      %v1849 = vpack.c.b16 %v1813, %v1812
      %v1850 = vpack.c.b16 %v1815, %v1814
      %v1851 = vpack.c.b16 %v1817, %v1816
      %v1852 = vpack.c.b16 %v1819, %v1818
      %v1853 = vpack.c.b16 %v1821, %v1820
      %v1854 = vpack.c.b16 %v1823, %v1822
      %v1855 = vpack.c.b16 %v1825, %v1824
      %v1856 = vpack.c.b16 %v1827, %v1826
      %v1857 = vpack.c.b16 %v1829, %v1828
      %v1858 = vpack.c.b16 %v1831, %v1830
      %v1859 = vpack.c.b16 %v1833, %v1832
      %v1860 = vpack.c.b16 %v1835, %v1834
      %v1861 = vpack.c.b16 %v1837, %v1836
      %v1862 = vpack.c.b16 %v1839, %v1838
      %v1863 = vpack.c.b16 %v1841, %v1840
      %v1864 = vpack.c.b16 %v1843, %v1842
      %v1865 = vpack.c.b16 %v1845, %v1844
      %v1866 = vpack.c.b16 %v1847, %v1846
      %v1867 = vpack.c.b16 %v1848, %v1848
      %v1868 = vrot.slane %v1849, 1
      %v1869 = vrot.slane %v1850, 1
      %v1870 = vsel %vm1356, %v1868, %v1869
      %v1871 = vrot.slane %v1851, 1
      %v1872 = vsel %vm1356, %v1869, %v1871
      %v1873 = vrot.slane %v1852, 1
      %v1874 = vsel %vm1356, %v1871, %v1873
      %v1875 = vrot.slane %v1853, 1
      %v1876 = vsel %vm1356, %v1873, %v1875
      %v1877 = vrot.slane %v1854, 1
      %v1878 = vsel %vm1356, %v1875, %v1877
      %v1879 = vrot.slane %v1855, 1
      %v1880 = vsel %vm1356, %v1877, %v1879
      %v1881 = vrot.slane %v1856, 1
      %v1882 = vsel %vm1356, %v1879, %v1881
      %v1883 = vrot.slane %v1857, 1
      %v1884 = vsel %vm1356, %v1881, %v1883
      %v1885 = vrot.slane %v1858, 1
      %v1886 = vsel %vm1356, %v1883, %v1885
      %v1887 = vrot.slane %v1859, 1
      %v1888 = vsel %vm1356, %v1885, %v1887
      %v1889 = vrot.slane %v1860, 1
      %v1890 = vsel %vm1356, %v1887, %v1889
      %v1891 = vrot.slane %v1861, 1
      %v1892 = vsel %vm1356, %v1889, %v1891
      %v1893 = vrot.slane %v1862, 1
      %v1894 = vsel %vm1356, %v1891, %v1893
      %v1895 = vrot.slane %v1863, 1
      %v1896 = vsel %vm1356, %v1893, %v1895
      %v1897 = vrot.slane %v1864, 1
      %v1898 = vsel %vm1356, %v1895, %v1897
      %v1899 = vrot.slane %v1865, 1
      %v1900 = vsel %vm1356, %v1897, %v1899
      %v1901 = vrot.slane %v1866, 1
      %v1902 = vsel %vm1356, %v1899, %v1901
      %v1903 = vrot.slane %v1867, 1
      %v1904 = vsel %vm1356, %v1901, %v1903
      %v1906 = vsel %vm329, %v1870, 0
      %v1909 = vsel %vm329, %v1872, 0
      %v1912 = vsel %vm329, %v1874, 0
      %v1915 = vsel %vm329, %v1876, 0
      %v1918 = vsel %vm329, %v1878, 0
      %v1921 = vsel %vm329, %v1880, 0
      %v1924 = vsel %vm329, %v1882, 0
      %v1927 = vsel %vm329, %v1884, 0
      %v1930 = vsel %vm329, %v1886, 0
      %v1933 = vsel %vm329, %v1888, 0
      %v1936 = vsel %vm329, %v1890, 0
      %v1939 = vsel %vm329, %v1892, 0
      %v1942 = vsel %vm329, %v1894, 0
      %v1945 = vsel %vm329, %v1896, 0
      %v1948 = vsel %vm329, %v1898, 0
      %v1951 = vsel %vm329, %v1900, 0
      %v1954 = vsel %vm329, %v1902, 0
      %v1957 = vsel %vm329, %v1904, 0
      %v1960 = vsel %vm384, %v1774, 0
      %1962 = vmatprep.subr.bf16.mxu0 0
      %1963 = vmatpush1.bf16.msra.mxu0 %v1960
      %1964 = vmatprep.subr.bf16.mxu0 0
      %1965 = vmatpush1.bf16.msra.mxu0 0
      %1966 = vmatprep.subr.bf16.mxu0 0
      %1967 = vmatpush1.bf16.msra.mxu0 0
      %1968 = vmatprep.subr.bf16.mxu0 0
      %1969 = vmatpush1.bf16.msra.mxu0 0
      %1970 = vmatprep.subr.bf16.mxu0 0
      %1971 = vmatpush1.bf16.msra.mxu0 0
      %1972 = vmatprep.subr.bf16.mxu0 0
      %1973 = vmatpush1.bf16.msra.mxu0 0
      %1974 = vmatprep.subr.bf16.mxu0 0
      %1975 = vmatpush1.bf16.msra.mxu0 0
      %1976 = vmatprep.subr.bf16.mxu0 0
      %1977 = vmatpush1.bf16.msra.mxu0 0
      %1978 = vmatprep.subr.bf16.mxu0 0
      %1979 = vmatpush1.bf16.msra.mxu0 0
      %1980 = vmatprep.subr.bf16.mxu0 0
      %1981 = vmatpush1.bf16.msra.mxu0 0
      %1982 = vmatprep.subr.bf16.mxu0 0
      %1983 = vmatpush1.bf16.msra.mxu0 0
      %1984 = vmatprep.subr.bf16.mxu0 0
      %1985 = vmatpush1.bf16.msra.mxu0 0
      %1986 = vmatprep.subr.bf16.mxu0 0
      %1987 = vmatpush1.bf16.msra.mxu0 0
      %1988 = vmatprep.subr.bf16.mxu0 0
      %1989 = vmatpush1.bf16.msra.mxu0 0
      %1990 = vmatprep.subr.bf16.mxu0 0
      %1991 = vmatpush1.bf16.msra.mxu0 0
      %1992 = vmatprep.subr.bf16.mxu0 0
      %1993 = vmatpush1.bf16.msra.mxu0 0
      %1994 = vmatprep.mubr.bf16.mxu0 0
      %1995 = vmatmul.mubr.bf16.gmra.mrb[0].mxu0 %v1906
      %v1996 = vpop.f32.mrb[0].mxu0
      %v1997 = vadd.f32 0.0, %v1996
      %v1998 = vpop.f32.mrb[0].mxu0
      %v1999 = vpop.f32.mrb[0].mxu0
      %v2000 = vadd.f32 0.0, %v1999
      %v2001 = vpop.f32.mrb[0].mxu0
      %2002 = vmatprep.mubr.bf16.mxu0 0
      %2003 = vmatmul.mubr.bf16.gmra.mrb[0].mxu0 %v1909
      %v2004 = vpop.f32.mrb[0].mxu0
      %v2005 = vadd.f32 0.0, %v2004
      %v2006 = vpop.f32.mrb[0].mxu0
      %v2007 = vpop.f32.mrb[0].mxu0
      %v2008 = vadd.f32 0.0, %v2007
      %v2009 = vpop.f32.mrb[0].mxu0
      %2010 = vmatprep.mubr.bf16.mxu0 0
      %2011 = vmatmul.mubr.bf16.gmra.mrb[0].mxu0 %v1912
      %v2012 = vpop.f32.mrb[0].mxu0
      %v2013 = vadd.f32 0.0, %v2012
      %v2014 = vpop.f32.mrb[0].mxu0
      %v2015 = vpop.f32.mrb[0].mxu0
      %v2016 = vadd.f32 0.0, %v2015
      %v2017 = vpop.f32.mrb[0].mxu0
      %2018 = vmatprep.mubr.bf16.mxu0 0
      %2019 = vmatmul.mubr.bf16.gmra.mrb[0].mxu0 %v1915
      %v2020 = vpop.f32.mrb[0].mxu0
      %v2021 = vadd.f32 0.0, %v2020
      %v2022 = vpop.f32.mrb[0].mxu0
      %v2023 = vpop.f32.mrb[0].mxu0
      %v2024 = vadd.f32 0.0, %v2023
      %v2025 = vpop.f32.mrb[0].mxu0
      %2026 = vmatprep.mubr.bf16.mxu0 0
      %2027 = vmatmul.mubr.bf16.gmra.mrb[0].mxu0 %v1918
      %v2028 = vpop.f32.mrb[0].mxu0
      %v2029 = vadd.f32 0.0, %v2028
      %v2030 = vpop.f32.mrb[0].mxu0
      %v2031 = vpop.f32.mrb[0].mxu0
      %v2032 = vadd.f32 0.0, %v2031
      %v2033 = vpop.f32.mrb[0].mxu0
      %2034 = vmatprep.mubr.bf16.mxu0 0
      %2035 = vmatmul.mubr.bf16.gmra.mrb[0].mxu0 %v1921
      %v2036 = vpop.f32.mrb[0].mxu0
      %v2037 = vadd.f32 0.0, %v2036
      %v2038 = vpop.f32.mrb[0].mxu0
      %v2039 = vpop.f32.mrb[0].mxu0
      %v2040 = vadd.f32 0.0, %v2039
      %v2041 = vpop.f32.mrb[0].mxu0
      %2042 = vmatprep.mubr.bf16.mxu0 0
      %2043 = vmatmul.mubr.bf16.gmra.mrb[0].mxu0 %v1924
      %v2044 = vpop.f32.mrb[0].mxu0
      %v2045 = vadd.f32 0.0, %v2044
      %v2046 = vpop.f32.mrb[0].mxu0
      %v2047 = vpop.f32.mrb[0].mxu0
      %v2048 = vadd.f32 0.0, %v2047
      %v2049 = vpop.f32.mrb[0].mxu0
      %2050 = vmatprep.mubr.bf16.mxu0 0
      %2051 = vmatmul.mubr.bf16.gmra.mrb[0].mxu0 %v1927
      %v2052 = vpop.f32.mrb[0].mxu0
      %v2053 = vadd.f32 0.0, %v2052
      %v2054 = vpop.f32.mrb[0].mxu0
      %v2055 = vpop.f32.mrb[0].mxu0
      %v2056 = vadd.f32 0.0, %v2055
      %v2057 = vpop.f32.mrb[0].mxu0
      %2058 = vmatprep.mubr.bf16.mxu0 0
      %2059 = vmatmul.mubr.bf16.gmra.mrb[0].mxu0 %v1930
      %v2060 = vpop.f32.mrb[0].mxu0
      %v2061 = vadd.f32 0.0, %v2060
      %v2062 = vpop.f32.mrb[0].mxu0
      %v2063 = vpop.f32.mrb[0].mxu0
      %v2064 = vadd.f32 0.0, %v2063
      %v2065 = vpop.f32.mrb[0].mxu0
      %2066 = vmatprep.mubr.bf16.mxu0 0
      %2067 = vmatmul.mubr.bf16.gmra.mrb[0].mxu0 %v1933
      %v2068 = vpop.f32.mrb[0].mxu0
      %v2069 = vadd.f32 0.0, %v2068
      %v2070 = vpop.f32.mrb[0].mxu0
      %v2071 = vpop.f32.mrb[0].mxu0
      %v2072 = vadd.f32 0.0, %v2071
      %v2073 = vpop.f32.mrb[0].mxu0
      %2074 = vmatprep.mubr.bf16.mxu0 0
      %2075 = vmatmul.mubr.bf16.gmra.mrb[0].mxu0 %v1936
      %v2076 = vpop.f32.mrb[0].mxu0
      %v2077 = vadd.f32 0.0, %v2076
      %v2078 = vpop.f32.mrb[0].mxu0
      %v2079 = vpop.f32.mrb[0].mxu0
      %v2080 = vadd.f32 0.0, %v2079
      %v2081 = vpop.f32.mrb[0].mxu0
      %2082 = vmatprep.mubr.bf16.mxu0 0
      %2083 = vmatmul.mubr.bf16.gmra.mrb[0].mxu0 %v1939
      %v2084 = vpop.f32.mrb[0].mxu0
      %v2085 = vadd.f32 0.0, %v2084
      %v2086 = vpop.f32.mrb[0].mxu0
      %v2087 = vpop.f32.mrb[0].mxu0
      %v2088 = vadd.f32 0.0, %v2087
      %v2089 = vpop.f32.mrb[0].mxu0
      %2090 = vmatprep.mubr.bf16.mxu0 0
      %2091 = vmatmul.mubr.bf16.gmra.mrb[0].mxu0 %v1942
      %v2092 = vpop.f32.mrb[0].mxu0
      %v2093 = vadd.f32 0.0, %v2092
      %v2094 = vpop.f32.mrb[0].mxu0
      %v2095 = vpop.f32.mrb[0].mxu0
      %v2096 = vadd.f32 0.0, %v2095
      %v2097 = vpop.f32.mrb[0].mxu0
      %2098 = vmatprep.mubr.bf16.mxu0 0
      %2099 = vmatmul.mubr.bf16.gmra.mrb[0].mxu0 %v1945
      %v2100 = vpop.f32.mrb[0].mxu0
      %v2101 = vadd.f32 0.0, %v2100
      %v2102 = vpop.f32.mrb[0].mxu0
      %v2103 = vpop.f32.mrb[0].mxu0
      %v2104 = vadd.f32 0.0, %v2103
      %v2105 = vpop.f32.mrb[0].mxu0
      %2106 = vmatprep.mubr.bf16.mxu0 0
      %2107 = vmatmul.mubr.bf16.gmra.mrb[0].mxu0 %v1948
      %v2108 = vpop.f32.mrb[0].mxu0
      %v2109 = vadd.f32 0.0, %v2108
      %v2110 = vpop.f32.mrb[0].mxu0
      %v2111 = vpop.f32.mrb[0].mxu0
      %v2112 = vadd.f32 0.0, %v2111
      %v2113 = vpop.f32.mrb[0].mxu0
      %2114 = vmatprep.mubr.bf16.mxu0 0
      %2115 = vmatmul.mubr.bf16.gmra.mrb[0].mxu0 %v1951
      %v2116 = vpop.f32.mrb[0].mxu0
      %v2117 = vadd.f32 0.0, %v2116
      %v2118 = vpop.f32.mrb[0].mxu0
      %v2119 = vpop.f32.mrb[0].mxu0
      %v2120 = vadd.f32 0.0, %v2119
      %v2121 = vpop.f32.mrb[0].mxu0
      %2122 = vmatprep.mubr.bf16.mxu0 0
      %2123 = vmatmul.mubr.bf16.gmra.mrb[0].mxu0 %v1954
      %v2124 = vpop.f32.mrb[0].mxu0
      %v2125 = vadd.f32 0.0, %v2124
      %v2126 = vpop.f32.mrb[0].mxu0
      %v2127 = vpop.f32.mrb[0].mxu0
      %v2128 = vadd.f32 0.0, %v2127
      %v2129 = vpop.f32.mrb[0].mxu0
      %2130 = vmatprep.mubr.bf16.mxu0 0
      %2131 = vmatmul.mubr.bf16.gmra.mrb[0].mxu0 %v1957
      %v2132 = vpop.f32.mrb[0].mxu0
      %v2133 = vadd.f32 0.0, %v2132
      %v2134 = vpop.f32.mrb[0].mxu0
      %v2135 = vpop.f32.mrb[0].mxu0
      %v2136 = vadd.f32 0.0, %v2135
      %v2137 = vpop.f32.mrb[0].mxu0
      %2138 = vdwg.mxu0
      %v2139 = vld [vmem:[%s195] sm:$0xff]
      %v2140 = vld [vmem:[%s195 + $0x8] sm:$0xff]
      %v2141 = vld [vmem:[%s195 + $0x10] sm:$0xff]
      %v2142 = vld [vmem:[%s195 + $0x18] sm:$0xff]
      %v2143 = vld [vmem:[%s195 + $0x20] sm:$0xff]
      %v2144 = vld [vmem:[%s195 + $0x28] sm:$0xff]
      %v2145 = vld [vmem:[%s195 + $0x30] sm:$0xff]
      %v2146 = vld [vmem:[%s195 + $0x38] sm:$0xff]
      %v2147 = vld [vmem:[%s195 + $0x40] sm:$0xff]
      %v2148 = vld [vmem:[%s195 + $0x48] sm:$0xff]
      %v2149 = vld [vmem:[%s195 + $0x50] sm:$0xff]
      %v2150 = vld [vmem:[%s195 + $0x58] sm:$0xff]
      %v2151 = vld [vmem:[%s195 + $0x60] sm:$0xff]
      %v2152 = vld [vmem:[%s195 + $0x68] sm:$0xff]
      %v2153 = vld [vmem:[%s195 + $0x70] sm:$0xff]
      %v2154 = vld [vmem:[%s195 + $0x78] sm:$0xff]
      %v2155 = vld [vmem:[%s195 + $0x80] sm:$0xff]
      %v2156 = vld [vmem:[%s195 + $0x88] sm:$0xff]
      %v2157 = vld [vmem:[%s195 + $0x90] sm:$0xff]
      %v2158 = vld [vmem:[%s195 + $0x98] sm:$0xff]
      %v2159 = vld [vmem:[%s195 + $0xa0] sm:$0xff]
      %v2160 = vld [vmem:[%s195 + $0xa8] sm:$0xff]
      %v2161 = vld [vmem:[%s195 + $0xb0] sm:$0xff]
      %v2162 = vld [vmem:[%s195 + $0xb8] sm:$0xff]
      %v2163 = vld [vmem:[%s195 + $0xc0] sm:$0xff]
      %v2164 = vld [vmem:[%s195 + $0xc8] sm:$0xff]
      %v2165 = vld [vmem:[%s195 + $0xd0] sm:$0xff]
      %v2166 = vld [vmem:[%s195 + $0xd8] sm:$0xff]
      %v2167 = vld [vmem:[%s195 + $0xe0] sm:$0xff]
      %v2168 = vld [vmem:[%s195 + $0xe8] sm:$0xff]
      %v2169 = vld [vmem:[%s195 + $0xf0] sm:$0xff]
      %v2170 = vld [vmem:[%s195 + $0xf8] sm:$0xff]
      %v2171 = vld [vmem:[%s195 + $0x100] sm:$0xff]
      %v2172 = vld [vmem:[%s195 + $0x108] sm:$0xff]
      %v2173 = vld [vmem:[%s195 + $0x110] sm:$0xff]
      %v2174 = vld [vmem:[%s195 + $0x118] sm:$0xff]
      %v2175 = vadd.f32 %v2139, %v1997
      %v2176 = vadd.f32 %v2140, %v2000
      %v2177 = vadd.f32 %v2141, %v2005
      %v2178 = vadd.f32 %v2142, %v2008
      %v2179 = vadd.f32 %v2143, %v2013
      %v2180 = vadd.f32 %v2144, %v2016
      %v2181 = vadd.f32 %v2145, %v2021
      %v2182 = vadd.f32 %v2146, %v2024
      %v2183 = vadd.f32 %v2147, %v2029
      %v2184 = vadd.f32 %v2148, %v2032
      %v2185 = vadd.f32 %v2149, %v2037
      %v2186 = vadd.f32 %v2150, %v2040
      %v2187 = vadd.f32 %v2151, %v2045
      %v2188 = vadd.f32 %v2152, %v2048
      %v2189 = vadd.f32 %v2153, %v2053
      %v2190 = vadd.f32 %v2154, %v2056
      %v2191 = vadd.f32 %v2155, %v2061
      %v2192 = vadd.f32 %v2156, %v2064
      %v2193 = vadd.f32 %v2157, %v2069
      %v2194 = vadd.f32 %v2158, %v2072
      %v2195 = vadd.f32 %v2159, %v2077
      %v2196 = vadd.f32 %v2160, %v2080
      %v2197 = vadd.f32 %v2161, %v2085
      %v2198 = vadd.f32 %v2162, %v2088
      %v2199 = vadd.f32 %v2163, %v2093
      %v2200 = vadd.f32 %v2164, %v2096
      %v2201 = vadd.f32 %v2165, %v2101
      %v2202 = vadd.f32 %v2166, %v2104
      %v2203 = vadd.f32 %v2167, %v2109
      %v2204 = vadd.f32 %v2168, %v2112
      %v2205 = vadd.f32 %v2169, %v2117
      %v2206 = vadd.f32 %v2170, %v2120
      %v2207 = vadd.f32 %v2171, %v2125
      %v2208 = vadd.f32 %v2172, %v2128
      %v2209 = vadd.f32 %v2173, %v2133
      %v2210 = vadd.f32 %v2174, %v2136
      %2211 = vst [vmem:[%s195] sm:$0xff] %v2175
      %2212 = vst [vmem:[%s195 + $0x8] sm:$0xff] %v2176
      %2213 = vst [vmem:[%s195 + $0x10] sm:$0xff] %v2177
      %2214 = vst [vmem:[%s195 + $0x18] sm:$0xff] %v2178
      %2215 = vst [vmem:[%s195 + $0x20] sm:$0xff] %v2179
      %2216 = vst [vmem:[%s195 + $0x28] sm:$0xff] %v2180
      %2217 = vst [vmem:[%s195 + $0x30] sm:$0xff] %v2181
      %2218 = vst [vmem:[%s195 + $0x38] sm:$0xff] %v2182
      %2219 = vst [vmem:[%s195 + $0x40] sm:$0xff] %v2183
      %2220 = vst [vmem:[%s195 + $0x48] sm:$0xff] %v2184
      %2221 = vst [vmem:[%s195 + $0x50] sm:$0xff] %v2185
      %2222 = vst [vmem:[%s195 + $0x58] sm:$0xff] %v2186
      %2223 = vst [vmem:[%s195 + $0x60] sm:$0xff] %v2187
      %2224 = vst [vmem:[%s195 + $0x68] sm:$0xff] %v2188
      %2225 = vst [vmem:[%s195 + $0x70] sm:$0xff] %v2189
      %2226 = vst [vmem:[%s195 + $0x78] sm:$0xff] %v2190
      %2227 = vst [vmem:[%s195 + $0x80] sm:$0xff] %v2191
      %2228 = vst [vmem:[%s195 + $0x88] sm:$0xff] %v2192
      %2229 = vst [vmem:[%s195 + $0x90] sm:$0xff] %v2193
      %2230 = vst [vmem:[%s195 + $0x98] sm:$0xff] %v2194
      %2231 = vst [vmem:[%s195 + $0xa0] sm:$0xff] %v2195
      %2232 = vst [vmem:[%s195 + $0xa8] sm:$0xff] %v2196
      %2233 = vst [vmem:[%s195 + $0xb0] sm:$0xff] %v2197
      %2234 = vst [vmem:[%s195 + $0xb8] sm:$0xff] %v2198
      %2235 = vst [vmem:[%s195 + $0xc0] sm:$0xff] %v2199
      %2236 = vst [vmem:[%s195 + $0xc8] sm:$0xff] %v2200
      %2237 = vst [vmem:[%s195 + $0xd0] sm:$0xff] %v2201
      %2238 = vst [vmem:[%s195 + $0xd8] sm:$0xff] %v2202
      %2239 = vst [vmem:[%s195 + $0xe0] sm:$0xff] %v2203
      %2240 = vst [vmem:[%s195 + $0xe8] sm:$0xff] %v2204
      %2241 = vst [vmem:[%s195 + $0xf0] sm:$0xff] %v2205
      %2242 = vst [vmem:[%s195 + $0xf8] sm:$0xff] %v2206
      %2243 = vst [vmem:[%s195 + $0x100] sm:$0xff] %v2207
      %2244 = vst [vmem:[%s195 + $0x108] sm:$0xff] %v2208
      %2245 = vst [vmem:[%s195 + $0x110] sm:$0xff] %v2209
      %2246 = vst [vmem:[%s195 + $0x118] sm:$0xff] %v2210
      %v2247 = vld [vmem:[%s190 + $0x8] sm:$0xe]
      %v2248 = vld [vmem:[%s190 + $0xc] sm:$0xf]
      %v2249 = vld [vmem:[%s190 + $0x10] sm:$0xf]
      %v2250 = vld [vmem:[%s190 + $0x14] sm:$0xf]
      %v2251 = vld [vmem:[%s190 + $0x18] sm:$0xf]
      %v2252 = vld [vmem:[%s190 + $0x1c] sm:$0xf]
      %v2253 = vld [vmem:[%s190 + $0x20] sm:$0xf]
      %v2254 = vld [vmem:[%s190 + $0x24] sm:$0xf]
      %v2255 = vld [vmem:[%s190 + $0x28] sm:$0xf]
      %v2256 = vld [vmem:[%s190 + $0x2c] sm:$0xf]
      %v2257 = vld [vmem:[%s190 + $0x30] sm:$0xf]
      %v2258 = vld [vmem:[%s190 + $0x34] sm:$0xf]
      %v2259 = vld [vmem:[%s190 + $0x38] sm:$0xf]
      %v2260 = vld [vmem:[%s190 + $0x3c] sm:$0xf]
      %v2261 = vld [vmem:[%s190 + $0x40] sm:$0xf]
      %v2262 = vld [vmem:[%s190 + $0x44] sm:$0xf]
      %v2263 = vld [vmem:[%s190 + $0x48] sm:$0xf]
      %v2264 = vld [vmem:[%s190 + $0x4c] sm:$0xf]
      %v2265 = vld [vmem:[%s190 + $0x50] sm:$0xf]
      %v2266 = vld [vmem:[%s190 + $0x54] sm:$0xf]
      %v2267 = vld [vmem:[%s190 + $0x58] sm:$0xf]
      %v2268 = vld [vmem:[%s190 + $0x5c] sm:$0xf]
      %v2269 = vld [vmem:[%s190 + $0x60] sm:$0xf]
      %v2270 = vld [vmem:[%s190 + $0x64] sm:$0xf]
      %v2271 = vld [vmem:[%s190 + $0x68] sm:$0xf]
      %v2272 = vld [vmem:[%s190 + $0x6c] sm:$0xf]
      %v2273 = vld [vmem:[%s190 + $0x70] sm:$0xf]
      %v2274 = vld [vmem:[%s190 + $0x74] sm:$0xf]
      %v2275 = vld [vmem:[%s190 + $0x78] sm:$0xf]
      %v2276 = vld [vmem:[%s190 + $0x7c] sm:$0xf]
      %v2277 = vld [vmem:[%s190 + $0x80] sm:$0xf]
      %v2278 = vld [vmem:[%s190 + $0x84] sm:$0xf]
      %v2279 = vld [vmem:[%s190 + $0x88] sm:$0xf]
      %v2280 = vld [vmem:[%s190 + $0x8c] sm:$0xf]
      %v2281 = vld [vmem:[%s190 + $0x90] sm:$0xf]
      %v2282 = vld [vmem:[%s190 + $0x94] sm:$0xf]
      %v2283 = vld [vmem:[%s190 + $0x98] sm:$0x3]
      %s2284 = scalar_lea.vmem %s1, 8
      %v2285 = vld [vmem:[%s2284] sm:$0x3]
      %v2323 = vunpack.c.l.b16 %v2247
      %v2324 = vunpack.c.l.b16 %v2248
      %v2325 = vunpack.c.l.b16 %v2249
      %v2326 = vunpack.c.l.b16 %v2250
      %v2327 = vunpack.c.l.b16 %v2251
      %v2328 = vunpack.c.l.b16 %v2252
      %v2329 = vunpack.c.l.b16 %v2253
      %v2330 = vunpack.c.l.b16 %v2254
      %v2331 = vunpack.c.l.b16 %v2255
      %v2332 = vunpack.c.l.b16 %v2256
      %v2333 = vunpack.c.l.b16 %v2257
      %v2334 = vunpack.c.l.b16 %v2258
      %v2335 = vunpack.c.l.b16 %v2259
      %v2336 = vunpack.c.l.b16 %v2260
      %v2337 = vunpack.c.l.b16 %v2261
      %v2338 = vunpack.c.l.b16 %v2262
      %v2339 = vunpack.c.l.b16 %v2263
      %v2340 = vunpack.c.l.b16 %v2264
      %v2341 = vunpack.c.l.b16 %v2265
      %v2342 = vunpack.c.l.b16 %v2266
      %v2343 = vunpack.c.l.b16 %v2267
      %v2344 = vunpack.c.l.b16 %v2268
      %v2345 = vunpack.c.l.b16 %v2269
      %v2346 = vunpack.c.l.b16 %v2270
      %v2347 = vunpack.c.l.b16 %v2271
      %v2348 = vunpack.c.l.b16 %v2272
      %v2349 = vunpack.c.l.b16 %v2273
      %v2350 = vunpack.c.l.b16 %v2274
      %v2351 = vunpack.c.l.b16 %v2275
      %v2352 = vunpack.c.l.b16 %v2276
      %v2353 = vunpack.c.l.b16 %v2277
      %v2354 = vunpack.c.l.b16 %v2278
      %v2355 = vunpack.c.l.b16 %v2279
      %v2356 = vunpack.c.l.b16 %v2280
      %v2357 = vunpack.c.l.b16 %v2281
      %v2358 = vunpack.c.l.b16 %v2282
      %v2359 = vunpack.c.l.b16 %v2283
      %v2360 = vpack.c.b16 %v2324, %v2323
      %v2361 = vpack.c.b16 %v2326, %v2325
      %v2362 = vpack.c.b16 %v2328, %v2327
      %v2363 = vpack.c.b16 %v2330, %v2329
      %v2364 = vpack.c.b16 %v2332, %v2331
      %v2365 = vpack.c.b16 %v2334, %v2333
      %v2366 = vpack.c.b16 %v2336, %v2335
      %v2367 = vpack.c.b16 %v2338, %v2337
      %v2368 = vpack.c.b16 %v2340, %v2339
      %v2369 = vpack.c.b16 %v2342, %v2341
      %v2370 = vpack.c.b16 %v2344, %v2343
      %v2371 = vpack.c.b16 %v2346, %v2345
      %v2372 = vpack.c.b16 %v2348, %v2347
      %v2373 = vpack.c.b16 %v2350, %v2349
      %v2374 = vpack.c.b16 %v2352, %v2351
      %v2375 = vpack.c.b16 %v2354, %v2353
      %v2376 = vpack.c.b16 %v2356, %v2355
      %v2377 = vpack.c.b16 %v2358, %v2357
      %v2378 = vpack.c.b16 %v2359, %v2359
      %vm2379 = vsmask.f32 6400
      %v2381 = vshrl.u32 %v2360, 16
      %v2383 = vrot.slane %v2381, 1
      %v2384 = vshll.u32 %v2360, 16
      %v2386 = vrot.slane %v2384, 2
      %v2387 = vor.u32 %v2383, %v2386
      %v2389 = vshrl.u32 %v2361, 16
      %v2391 = vrot.slane %v2389, 1
      %v2392 = vshll.u32 %v2361, 16
      %v2394 = vrot.slane %v2392, 2
      %v2395 = vor.u32 %v2391, %v2394
      %v2396 = vsel %vm2379, %v2387, %v2395
      %v2398 = vshrl.u32 %v2362, 16
      %v2400 = vrot.slane %v2398, 1
      %v2401 = vshll.u32 %v2362, 16
      %v2403 = vrot.slane %v2401, 2
      %v2404 = vor.u32 %v2400, %v2403
      %v2405 = vsel %vm2379, %v2395, %v2404
      %v2407 = vshrl.u32 %v2363, 16
      %v2409 = vrot.slane %v2407, 1
      %v2410 = vshll.u32 %v2363, 16
      %v2412 = vrot.slane %v2410, 2
      %v2413 = vor.u32 %v2409, %v2412
      %v2414 = vsel %vm2379, %v2404, %v2413
      %v2416 = vshrl.u32 %v2364, 16
      %v2418 = vrot.slane %v2416, 1
      %v2419 = vshll.u32 %v2364, 16
      %v2421 = vrot.slane %v2419, 2
      %v2422 = vor.u32 %v2418, %v2421
      %v2423 = vsel %vm2379, %v2413, %v2422
      %v2425 = vshrl.u32 %v2365, 16
      %v2427 = vrot.slane %v2425, 1
      %v2428 = vshll.u32 %v2365, 16
      %v2430 = vrot.slane %v2428, 2
      %v2431 = vor.u32 %v2427, %v2430
      %v2432 = vsel %vm2379, %v2422, %v2431
      %v2434 = vshrl.u32 %v2366, 16
      %v2436 = vrot.slane %v2434, 1
      %v2437 = vshll.u32 %v2366, 16
      %v2439 = vrot.slane %v2437, 2
      %v2440 = vor.u32 %v2436, %v2439
      %v2441 = vsel %vm2379, %v2431, %v2440
      %v2443 = vshrl.u32 %v2367, 16
      %v2445 = vrot.slane %v2443, 1
      %v2446 = vshll.u32 %v2367, 16
      %v2448 = vrot.slane %v2446, 2
      %v2449 = vor.u32 %v2445, %v2448
      %v2450 = vsel %vm2379, %v2440, %v2449
      %v2452 = vshrl.u32 %v2368, 16
      %v2454 = vrot.slane %v2452, 1
      %v2455 = vshll.u32 %v2368, 16
      %v2457 = vrot.slane %v2455, 2
      %v2458 = vor.u32 %v2454, %v2457
      %v2459 = vsel %vm2379, %v2449, %v2458
      %v2461 = vshrl.u32 %v2369, 16
      %v2463 = vrot.slane %v2461, 1
      %v2464 = vshll.u32 %v2369, 16
      %v2466 = vrot.slane %v2464, 2
      %v2467 = vor.u32 %v2463, %v2466
      %v2468 = vsel %vm2379, %v2458, %v2467
      %v2470 = vshrl.u32 %v2370, 16
      %v2472 = vrot.slane %v2470, 1
      %v2473 = vshll.u32 %v2370, 16
      %v2475 = vrot.slane %v2473, 2
      %v2476 = vor.u32 %v2472, %v2475
      %v2477 = vsel %vm2379, %v2467, %v2476
      %v2479 = vshrl.u32 %v2371, 16
      %v2481 = vrot.slane %v2479, 1
      %v2482 = vshll.u32 %v2371, 16
      %v2484 = vrot.slane %v2482, 2
      %v2485 = vor.u32 %v2481, %v2484
      %v2486 = vsel %vm2379, %v2476, %v2485
      %v2488 = vshrl.u32 %v2372, 16
      %v2490 = vrot.slane %v2488, 1
      %v2491 = vshll.u32 %v2372, 16
      %v2493 = vrot.slane %v2491, 2
      %v2494 = vor.u32 %v2490, %v2493
      %v2495 = vsel %vm2379, %v2485, %v2494
      %v2497 = vshrl.u32 %v2373, 16
      %v2499 = vrot.slane %v2497, 1
      %v2500 = vshll.u32 %v2373, 16
      %v2502 = vrot.slane %v2500, 2
      %v2503 = vor.u32 %v2499, %v2502
      %v2504 = vsel %vm2379, %v2494, %v2503
      %v2506 = vshrl.u32 %v2374, 16
      %v2508 = vrot.slane %v2506, 1
      %v2509 = vshll.u32 %v2374, 16
      %v2511 = vrot.slane %v2509, 2
      %v2512 = vor.u32 %v2508, %v2511
      %v2513 = vsel %vm2379, %v2503, %v2512
      %v2515 = vshrl.u32 %v2375, 16
      %v2517 = vrot.slane %v2515, 1
      %v2518 = vshll.u32 %v2375, 16
      %v2520 = vrot.slane %v2518, 2
      %v2521 = vor.u32 %v2517, %v2520
      %v2522 = vsel %vm2379, %v2512, %v2521
      %v2524 = vshrl.u32 %v2376, 16
      %v2526 = vrot.slane %v2524, 1
      %v2527 = vshll.u32 %v2376, 16
      %v2529 = vrot.slane %v2527, 2
      %v2530 = vor.u32 %v2526, %v2529
      %v2531 = vsel %vm2379, %v2521, %v2530
      %v2533 = vshrl.u32 %v2377, 16
      %v2535 = vrot.slane %v2533, 1
      %v2536 = vshll.u32 %v2377, 16
      %v2538 = vrot.slane %v2536, 2
      %v2539 = vor.u32 %v2535, %v2538
      %v2540 = vsel %vm2379, %v2530, %v2539
      %v2542 = vshrl.u32 %v2378, 16
      %v2544 = vrot.slane %v2542, 1
      %v2545 = vshll.u32 %v2378, 16
      %v2547 = vrot.slane %v2545, 2
      %v2548 = vor.u32 %v2544, %v2547
      %v2549 = vsel %vm2379, %v2539, %v2548
      %v2551 = vsel %vm329, %v2396, 0
      %v2554 = vsel %vm329, %v2405, 0
      %v2557 = vsel %vm329, %v2414, 0
      %v2560 = vsel %vm329, %v2423, 0
      %v2563 = vsel %vm329, %v2432, 0
      %v2566 = vsel %vm329, %v2441, 0
      %v2569 = vsel %vm329, %v2450, 0
      %v2572 = vsel %vm329, %v2459, 0
      %v2575 = vsel %vm329, %v2468, 0
      %v2578 = vsel %vm329, %v2477, 0
      %v2581 = vsel %vm329, %v2486, 0
      %v2584 = vsel %vm329, %v2495, 0
      %v2587 = vsel %vm329, %v2504, 0
      %v2590 = vsel %vm329, %v2513, 0
      %v2593 = vsel %vm329, %v2522, 0
      %v2596 = vsel %vm329, %v2531, 0
      %v2599 = vsel %vm329, %v2540, 0
      %v2602 = vsel %vm329, %v2549, 0
      %v2605 = vsel %vm384, %v2285, 0
      %2607 = vmatprep.subr.bf16.mxu0 0
      %2608 = vmatpush1.bf16.msra.mxu0 %v2605
      %2609 = vmatprep.subr.bf16.mxu0 0
      %2610 = vmatpush1.bf16.msra.mxu0 0
      %2611 = vmatprep.subr.bf16.mxu0 0
      %2612 = vmatpush1.bf16.msra.mxu0 0
      %2613 = vmatprep.subr.bf16.mxu0 0
      %2614 = vmatpush1.bf16.msra.mxu0 0
      %2615 = vmatprep.subr.bf16.mxu0 0
      %2616 = vmatpush1.bf16.msra.mxu0 0
      %2617 = vmatprep.subr.bf16.mxu0 0
      %2618 = vmatpush1.bf16.msra.mxu0 0
      %2619 = vmatprep.subr.bf16.mxu0 0
      %2620 = vmatpush1.bf16.msra.mxu0 0
      %2621 = vmatprep.subr.bf16.mxu0 0
      %2622 = vmatpush1.bf16.msra.mxu0 0
      %2623 = vmatprep.subr.bf16.mxu0 0
      %2624 = vmatpush1.bf16.msra.mxu0 0
      %2625 = vmatprep.subr.bf16.mxu0 0
      %2626 = vmatpush1.bf16.msra.mxu0 0
      %2627 = vmatprep.subr.bf16.mxu0 0
      %2628 = vmatpush1.bf16.msra.mxu0 0
      %2629 = vmatprep.subr.bf16.mxu0 0
      %2630 = vmatpush1.bf16.msra.mxu0 0
      %2631 = vmatprep.subr.bf16.mxu0 0
      %2632 = vmatpush1.bf16.msra.mxu0 0
      %2633 = vmatprep.subr.bf16.mxu0 0
      %2634 = vmatpush1.bf16.msra.mxu0 0
      %2635 = vmatprep.subr.bf16.mxu0 0
      %2636 = vmatpush1.bf16.msra.mxu0 0
      %2637 = vmatprep.subr.bf16.mxu0 0
      %2638 = vmatpush1.bf16.msra.mxu0 0
      %2639 = vmatprep.mubr.bf16.mxu0 0
      %2640 = vmatmul.mubr.bf16.gmra.mrb[0].mxu0 %v2551
      %v2641 = vpop.f32.mrb[0].mxu0
      %v2642 = vadd.f32 0.0, %v2641
      %v2643 = vpop.f32.mrb[0].mxu0
      %v2644 = vpop.f32.mrb[0].mxu0
      %v2645 = vadd.f32 0.0, %v2644
      %v2646 = vpop.f32.mrb[0].mxu0
      %2647 = vmatprep.mubr.bf16.mxu0 0
      %2648 = vmatmul.mubr.bf16.gmra.mrb[0].mxu0 %v2554
      %v2649 = vpop.f32.mrb[0].mxu0
      %v2650 = vadd.f32 0.0, %v2649
      %v2651 = vpop.f32.mrb[0].mxu0
      %v2652 = vpop.f32.mrb[0].mxu0
      %v2653 = vadd.f32 0.0, %v2652
      %v2654 = vpop.f32.mrb[0].mxu0
      %2655 = vmatprep.mubr.bf16.mxu0 0
      %2656 = vmatmul.mubr.bf16.gmra.mrb[0].mxu0 %v2557
      %v2657 = vpop.f32.mrb[0].mxu0
      %v2658 = vadd.f32 0.0, %v2657
      %v2659 = vpop.f32.mrb[0].mxu0
      %v2660 = vpop.f32.mrb[0].mxu0
      %v2661 = vadd.f32 0.0, %v2660
      %v2662 = vpop.f32.mrb[0].mxu0
      %2663 = vmatprep.mubr.bf16.mxu0 0
      %2664 = vmatmul.mubr.bf16.gmra.mrb[0].mxu0 %v2560
      %v2665 = vpop.f32.mrb[0].mxu0
      %v2666 = vadd.f32 0.0, %v2665
      %v2667 = vpop.f32.mrb[0].mxu0
      %v2668 = vpop.f32.mrb[0].mxu0
      %v2669 = vadd.f32 0.0, %v2668
      %v2670 = vpop.f32.mrb[0].mxu0
      %2671 = vmatprep.mubr.bf16.mxu0 0
      %2672 = vmatmul.mubr.bf16.gmra.mrb[0].mxu0 %v2563
      %v2673 = vpop.f32.mrb[0].mxu0
      %v2674 = vadd.f32 0.0, %v2673
      %v2675 = vpop.f32.mrb[0].mxu0
      %v2676 = vpop.f32.mrb[0].mxu0
      %v2677 = vadd.f32 0.0, %v2676
      %v2678 = vpop.f32.mrb[0].mxu0
      %2679 = vmatprep.mubr.bf16.mxu0 0
      %2680 = vmatmul.mubr.bf16.gmra.mrb[0].mxu0 %v2566
      %v2681 = vpop.f32.mrb[0].mxu0
      %v2682 = vadd.f32 0.0, %v2681
      %v2683 = vpop.f32.mrb[0].mxu0
      %v2684 = vpop.f32.mrb[0].mxu0
      %v2685 = vadd.f32 0.0, %v2684
      %v2686 = vpop.f32.mrb[0].mxu0
      %2687 = vmatprep.mubr.bf16.mxu0 0
      %2688 = vmatmul.mubr.bf16.gmra.mrb[0].mxu0 %v2569
      %v2689 = vpop.f32.mrb[0].mxu0
      %v2690 = vadd.f32 0.0, %v2689
      %v2691 = vpop.f32.mrb[0].mxu0
      %v2692 = vpop.f32.mrb[0].mxu0
      %v2693 = vadd.f32 0.0, %v2692
      %v2694 = vpop.f32.mrb[0].mxu0
      %2695 = vmatprep.mubr.bf16.mxu0 0
      %2696 = vmatmul.mubr.bf16.gmra.mrb[0].mxu0 %v2572
      %v2697 = vpop.f32.mrb[0].mxu0
      %v2698 = vadd.f32 0.0, %v2697
      %v2699 = vpop.f32.mrb[0].mxu0
      %v2700 = vpop.f32.mrb[0].mxu0
      %v2701 = vadd.f32 0.0, %v2700
      %v2702 = vpop.f32.mrb[0].mxu0
      %2703 = vmatprep.mubr.bf16.mxu0 0
      %2704 = vmatmul.mubr.bf16.gmra.mrb[0].mxu0 %v2575
      %v2705 = vpop.f32.mrb[0].mxu0
      %v2706 = vadd.f32 0.0, %v2705
      %v2707 = vpop.f32.mrb[0].mxu0
      %v2708 = vpop.f32.mrb[0].mxu0
      %v2709 = vadd.f32 0.0, %v2708
      %v2710 = vpop.f32.mrb[0].mxu0
      %2711 = vmatprep.mubr.bf16.mxu0 0
      %2712 = vmatmul.mubr.bf16.gmra.mrb[0].mxu0 %v2578
      %v2713 = vpop.f32.mrb[0].mxu0
      %v2714 = vadd.f32 0.0, %v2713
      %v2715 = vpop.f32.mrb[0].mxu0
      %v2716 = vpop.f32.mrb[0].mxu0
      %v2717 = vadd.f32 0.0, %v2716
      %v2718 = vpop.f32.mrb[0].mxu0
      %2719 = vmatprep.mubr.bf16.mxu0 0
      %2720 = vmatmul.mubr.bf16.gmra.mrb[0].mxu0 %v2581
      %v2721 = vpop.f32.mrb[0].mxu0
      %v2722 = vadd.f32 0.0, %v2721
      %v2723 = vpop.f32.mrb[0].mxu0
      %v2724 = vpop.f32.mrb[0].mxu0
      %v2725 = vadd.f32 0.0, %v2724
      %v2726 = vpop.f32.mrb[0].mxu0
      %2727 = vmatprep.mubr.bf16.mxu0 0
      %2728 = vmatmul.mubr.bf16.gmra.mrb[0].mxu0 %v2584
      %v2729 = vpop.f32.mrb[0].mxu0
      %v2730 = vadd.f32 0.0, %v2729
      %v2731 = vpop.f32.mrb[0].mxu0
      %v2732 = vpop.f32.mrb[0].mxu0
      %v2733 = vadd.f32 0.0, %v2732
      %v2734 = vpop.f32.mrb[0].mxu0
      %2735 = vmatprep.mubr.bf16.mxu0 0
      %2736 = vmatmul.mubr.bf16.gmra.mrb[0].mxu0 %v2587
      %v2737 = vpop.f32.mrb[0].mxu0
      %v2738 = vadd.f32 0.0, %v2737
      %v2739 = vpop.f32.mrb[0].mxu0
      %v2740 = vpop.f32.mrb[0].mxu0
      %v2741 = vadd.f32 0.0, %v2740
      %v2742 = vpop.f32.mrb[0].mxu0
      %2743 = vmatprep.mubr.bf16.mxu0 0
      %2744 = vmatmul.mubr.bf16.gmra.mrb[0].mxu0 %v2590
      %v2745 = vpop.f32.mrb[0].mxu0
      %v2746 = vadd.f32 0.0, %v2745
      %v2747 = vpop.f32.mrb[0].mxu0
      %v2748 = vpop.f32.mrb[0].mxu0
      %v2749 = vadd.f32 0.0, %v2748
      %v2750 = vpop.f32.mrb[0].mxu0
      %2751 = vmatprep.mubr.bf16.mxu0 0
      %2752 = vmatmul.mubr.bf16.gmra.mrb[0].mxu0 %v2593
      %v2753 = vpop.f32.mrb[0].mxu0
      %v2754 = vadd.f32 0.0, %v2753
      %v2755 = vpop.f32.mrb[0].mxu0
      %v2756 = vpop.f32.mrb[0].mxu0
      %v2757 = vadd.f32 0.0, %v2756
      %v2758 = vpop.f32.mrb[0].mxu0
      %2759 = vmatprep.mubr.bf16.mxu0 0
      %2760 = vmatmul.mubr.bf16.gmra.mrb[0].mxu0 %v2596
      %v2761 = vpop.f32.mrb[0].mxu0
      %v2762 = vadd.f32 0.0, %v2761
      %v2763 = vpop.f32.mrb[0].mxu0
      %v2764 = vpop.f32.mrb[0].mxu0
      %v2765 = vadd.f32 0.0, %v2764
      %v2766 = vpop.f32.mrb[0].mxu0
      %2767 = vmatprep.mubr.bf16.mxu0 0
      %2768 = vmatmul.mubr.bf16.gmra.mrb[0].mxu0 %v2599
      %v2769 = vpop.f32.mrb[0].mxu0
      %v2770 = vadd.f32 0.0, %v2769
      %v2771 = vpop.f32.mrb[0].mxu0
      %v2772 = vpop.f32.mrb[0].mxu0
      %v2773 = vadd.f32 0.0, %v2772
      %v2774 = vpop.f32.mrb[0].mxu0
      %2775 = vmatprep.mubr.bf16.mxu0 0
      %2776 = vmatmul.mubr.bf16.gmra.mrb[0].mxu0 %v2602
      %v2777 = vpop.f32.mrb[0].mxu0
      %v2778 = vadd.f32 0.0, %v2777
      %v2779 = vpop.f32.mrb[0].mxu0
      %v2780 = vpop.f32.mrb[0].mxu0
      %v2781 = vadd.f32 0.0, %v2780
      %v2782 = vpop.f32.mrb[0].mxu0
      %2783 = vdwg.mxu0
      %v2784 = vld [vmem:[%s195] sm:$0xff]
      %v2785 = vld [vmem:[%s195 + $0x8] sm:$0xff]
      %v2786 = vld [vmem:[%s195 + $0x10] sm:$0xff]
      %v2787 = vld [vmem:[%s195 + $0x18] sm:$0xff]
      %v2788 = vld [vmem:[%s195 + $0x20] sm:$0xff]
      %v2789 = vld [vmem:[%s195 + $0x28] sm:$0xff]
      %v2790 = vld [vmem:[%s195 + $0x30] sm:$0xff]
      %v2791 = vld [vmem:[%s195 + $0x38] sm:$0xff]
      %v2792 = vld [vmem:[%s195 + $0x40] sm:$0xff]
      %v2793 = vld [vmem:[%s195 + $0x48] sm:$0xff]
      %v2794 = vld [vmem:[%s195 + $0x50] sm:$0xff]
      %v2795 = vld [vmem:[%s195 + $0x58] sm:$0xff]
      %v2796 = vld [vmem:[%s195 + $0x60] sm:$0xff]
      %v2797 = vld [vmem:[%s195 + $0x68] sm:$0xff]
      %v2798 = vld [vmem:[%s195 + $0x70] sm:$0xff]
      %v2799 = vld [vmem:[%s195 + $0x78] sm:$0xff]
      %v2800 = vld [vmem:[%s195 + $0x80] sm:$0xff]
      %v2801 = vld [vmem:[%s195 + $0x88] sm:$0xff]
      %v2802 = vld [vmem:[%s195 + $0x90] sm:$0xff]
      %v2803 = vld [vmem:[%s195 + $0x98] sm:$0xff]
      %v2804 = vld [vmem:[%s195 + $0xa0] sm:$0xff]
      %v2805 = vld [vmem:[%s195 + $0xa8] sm:$0xff]
      %v2806 = vld [vmem:[%s195 + $0xb0] sm:$0xff]
      %v2807 = vld [vmem:[%s195 + $0xb8] sm:$0xff]
      %v2808 = vld [vmem:[%s195 + $0xc0] sm:$0xff]
      %v2809 = vld [vmem:[%s195 + $0xc8] sm:$0xff]
      %v2810 = vld [vmem:[%s195 + $0xd0] sm:$0xff]
      %v2811 = vld [vmem:[%s195 + $0xd8] sm:$0xff]
      %v2812 = vld [vmem:[%s195 + $0xe0] sm:$0xff]
      %v2813 = vld [vmem:[%s195 + $0xe8] sm:$0xff]
      %v2814 = vld [vmem:[%s195 + $0xf0] sm:$0xff]
      %v2815 = vld [vmem:[%s195 + $0xf8] sm:$0xff]
      %v2816 = vld [vmem:[%s195 + $0x100] sm:$0xff]
      %v2817 = vld [vmem:[%s195 + $0x108] sm:$0xff]
      %v2818 = vld [vmem:[%s195 + $0x110] sm:$0xff]
      %v2819 = vld [vmem:[%s195 + $0x118] sm:$0xff]
      %v2820 = vadd.f32 %v2784, %v2642
      %v2821 = vadd.f32 %v2785, %v2645
      %v2822 = vadd.f32 %v2786, %v2650
      %v2823 = vadd.f32 %v2787, %v2653
      %v2824 = vadd.f32 %v2788, %v2658
      %v2825 = vadd.f32 %v2789, %v2661
      %v2826 = vadd.f32 %v2790, %v2666
      %v2827 = vadd.f32 %v2791, %v2669
      %v2828 = vadd.f32 %v2792, %v2674
      %v2829 = vadd.f32 %v2793, %v2677
      %v2830 = vadd.f32 %v2794, %v2682
      %v2831 = vadd.f32 %v2795, %v2685
      %v2832 = vadd.f32 %v2796, %v2690
      %v2833 = vadd.f32 %v2797, %v2693
      %v2834 = vadd.f32 %v2798, %v2698
      %v2835 = vadd.f32 %v2799, %v2701
      %v2836 = vadd.f32 %v2800, %v2706
      %v2837 = vadd.f32 %v2801, %v2709
      %v2838 = vadd.f32 %v2802, %v2714
      %v2839 = vadd.f32 %v2803, %v2717
      %v2840 = vadd.f32 %v2804, %v2722
      %v2841 = vadd.f32 %v2805, %v2725
      %v2842 = vadd.f32 %v2806, %v2730
      %v2843 = vadd.f32 %v2807, %v2733
      %v2844 = vadd.f32 %v2808, %v2738
      %v2845 = vadd.f32 %v2809, %v2741
      %v2846 = vadd.f32 %v2810, %v2746
      %v2847 = vadd.f32 %v2811, %v2749
      %v2848 = vadd.f32 %v2812, %v2754
      %v2849 = vadd.f32 %v2813, %v2757
      %v2850 = vadd.f32 %v2814, %v2762
      %v2851 = vadd.f32 %v2815, %v2765
      %v2852 = vadd.f32 %v2816, %v2770
      %v2853 = vadd.f32 %v2817, %v2773
      %v2854 = vadd.f32 %v2818, %v2778
      %v2855 = vadd.f32 %v2819, %v2781
      %2856 = vst [vmem:[%s195] sm:$0xff] %v2820
      %2857 = vst [vmem:[%s195 + $0x8] sm:$0xff] %v2821
      %2858 = vst [vmem:[%s195 + $0x10] sm:$0xff] %v2822
      %2859 = vst [vmem:[%s195 + $0x18] sm:$0xff] %v2823
      %2860 = vst [vmem:[%s195 + $0x20] sm:$0xff] %v2824
      %2861 = vst [vmem:[%s195 + $0x28] sm:$0xff] %v2825
      %2862 = vst [vmem:[%s195 + $0x30] sm:$0xff] %v2826
      %2863 = vst [vmem:[%s195 + $0x38] sm:$0xff] %v2827
      %2864 = vst [vmem:[%s195 + $0x40] sm:$0xff] %v2828
      %2865 = vst [vmem:[%s195 + $0x48] sm:$0xff] %v2829
      %2866 = vst [vmem:[%s195 + $0x50] sm:$0xff] %v2830
      %2867 = vst [vmem:[%s195 + $0x58] sm:$0xff] %v2831
      %2868 = vst [vmem:[%s195 + $0x60] sm:$0xff] %v2832
      %2869 = vst [vmem:[%s195 + $0x68] sm:$0xff] %v2833
      %2870 = vst [vmem:[%s195 + $0x70] sm:$0xff] %v2834
      %2871 = vst [vmem:[%s195 + $0x78] sm:$0xff] %v2835
      %2872 = vst [vmem:[%s195 + $0x80] sm:$0xff] %v2836
      %2873 = vst [vmem:[%s195 + $0x88] sm:$0xff] %v2837
      %2874 = vst [vmem:[%s195 + $0x90] sm:$0xff] %v2838
      %2875 = vst [vmem:[%s195 + $0x98] sm:$0xff] %v2839
      %2876 = vst [vmem:[%s195 + $0xa0] sm:$0xff] %v2840
      %2877 = vst [vmem:[%s195 + $0xa8] sm:$0xff] %v2841
      %2878 = vst [vmem:[%s195 + $0xb0] sm:$0xff] %v2842
      %2879 = vst [vmem:[%s195 + $0xb8] sm:$0xff] %v2843
      %2880 = vst [vmem:[%s195 + $0xc0] sm:$0xff] %v2844
      %2881 = vst [vmem:[%s195 + $0xc8] sm:$0xff] %v2845
      %2882 = vst [vmem:[%s195 + $0xd0] sm:$0xff] %v2846
      %2883 = vst [vmem:[%s195 + $0xd8] sm:$0xff] %v2847
      %2884 = vst [vmem:[%s195 + $0xe0] sm:$0xff] %v2848
      %2885 = vst [vmem:[%s195 + $0xe8] sm:$0xff] %v2849
      %2886 = vst [vmem:[%s195 + $0xf0] sm:$0xff] %v2850
      %2887 = vst [vmem:[%s195 + $0xf8] sm:$0xff] %v2851
      %2888 = vst [vmem:[%s195 + $0x100] sm:$0xff] %v2852
      %2889 = vst [vmem:[%s195 + $0x108] sm:$0xff] %v2853
      %2890 = vst [vmem:[%s195 + $0x110] sm:$0xff] %v2854
      %2891 = vst [vmem:[%s195 + $0x118] sm:$0xff] %v2855
      %v2892 = vld [vmem:[%s190 + $0x8] sm:$0xc]
      %v2893 = vld [vmem:[%s190 + $0xc] sm:$0xf]
      %v2894 = vld [vmem:[%s190 + $0x10] sm:$0xf]
      %v2895 = vld [vmem:[%s190 + $0x14] sm:$0xf]
      %v2896 = vld [vmem:[%s190 + $0x18] sm:$0xf]
      %v2897 = vld [vmem:[%s190 + $0x1c] sm:$0xf]
      %v2898 = vld [vmem:[%s190 + $0x20] sm:$0xf]
      %v2899 = vld [vmem:[%s190 + $0x24] sm:$0xf]
      %v2900 = vld [vmem:[%s190 + $0x28] sm:$0xf]
      %v2901 = vld [vmem:[%s190 + $0x2c] sm:$0xf]
      %v2902 = vld [vmem:[%s190 + $0x30] sm:$0xf]
      %v2903 = vld [vmem:[%s190 + $0x34] sm:$0xf]
      %v2904 = vld [vmem:[%s190 + $0x38] sm:$0xf]
      %v2905 = vld [vmem:[%s190 + $0x3c] sm:$0xf]
      %v2906 = vld [vmem:[%s190 + $0x40] sm:$0xf]
      %v2907 = vld [vmem:[%s190 + $0x44] sm:$0xf]
      %v2908 = vld [vmem:[%s190 + $0x48] sm:$0xf]
      %v2909 = vld [vmem:[%s190 + $0x4c] sm:$0xf]
      %v2910 = vld [vmem:[%s190 + $0x50] sm:$0xf]
      %v2911 = vld [vmem:[%s190 + $0x54] sm:$0xf]
      %v2912 = vld [vmem:[%s190 + $0x58] sm:$0xf]
      %v2913 = vld [vmem:[%s190 + $0x5c] sm:$0xf]
      %v2914 = vld [vmem:[%s190 + $0x60] sm:$0xf]
      %v2915 = vld [vmem:[%s190 + $0x64] sm:$0xf]
      %v2916 = vld [vmem:[%s190 + $0x68] sm:$0xf]
      %v2917 = vld [vmem:[%s190 + $0x6c] sm:$0xf]
      %v2918 = vld [vmem:[%s190 + $0x70] sm:$0xf]
      %v2919 = vld [vmem:[%s190 + $0x74] sm:$0xf]
      %v2920 = vld [vmem:[%s190 + $0x78] sm:$0xf]
      %v2921 = vld [vmem:[%s190 + $0x7c] sm:$0xf]
      %v2922 = vld [vmem:[%s190 + $0x80] sm:$0xf]
      %v2923 = vld [vmem:[%s190 + $0x84] sm:$0xf]
      %v2924 = vld [vmem:[%s190 + $0x88] sm:$0xf]
      %v2925 = vld [vmem:[%s190 + $0x8c] sm:$0xf]
      %v2926 = vld [vmem:[%s190 + $0x90] sm:$0xf]
      %v2927 = vld [vmem:[%s190 + $0x94] sm:$0xf]
      %v2928 = vld [vmem:[%s190 + $0x98] sm:$0x3]
      %s2929 = scalar_lea.vmem %s1, 10
      %v2930 = vld [vmem:[%s2929] sm:$0x3]
      %v2968 = vunpack.c.l.b16 %v2892
      %v2969 = vunpack.c.l.b16 %v2893
      %v2970 = vunpack.c.l.b16 %v2894
      %v2971 = vunpack.c.l.b16 %v2895
      %v2972 = vunpack.c.l.b16 %v2896
      %v2973 = vunpack.c.l.b16 %v2897
      %v2974 = vunpack.c.l.b16 %v2898
      %v2975 = vunpack.c.l.b16 %v2899
      %v2976 = vunpack.c.l.b16 %v2900
      %v2977 = vunpack.c.l.b16 %v2901
      %v2978 = vunpack.c.l.b16 %v2902
      %v2979 = vunpack.c.l.b16 %v2903
      %v2980 = vunpack.c.l.b16 %v2904
      %v2981 = vunpack.c.l.b16 %v2905
      %v2982 = vunpack.c.l.b16 %v2906
      %v2983 = vunpack.c.l.b16 %v2907
      %v2984 = vunpack.c.l.b16 %v2908
      %v2985 = vunpack.c.l.b16 %v2909
      %v2986 = vunpack.c.l.b16 %v2910
      %v2987 = vunpack.c.l.b16 %v2911
      %v2988 = vunpack.c.l.b16 %v2912
      %v2989 = vunpack.c.l.b16 %v2913
      %v2990 = vunpack.c.l.b16 %v2914
      %v2991 = vunpack.c.l.b16 %v2915
      %v2992 = vunpack.c.l.b16 %v2916
      %v2993 = vunpack.c.l.b16 %v2917
      %v2994 = vunpack.c.l.b16 %v2918
      %v2995 = vunpack.c.l.b16 %v2919
      %v2996 = vunpack.c.l.b16 %v2920
      %v2997 = vunpack.c.l.b16 %v2921
      %v2998 = vunpack.c.l.b16 %v2922
      %v2999 = vunpack.c.l.b16 %v2923
      %v3000 = vunpack.c.l.b16 %v2924
      %v3001 = vunpack.c.l.b16 %v2925
      %v3002 = vunpack.c.l.b16 %v2926
      %v3003 = vunpack.c.l.b16 %v2927
      %v3004 = vunpack.c.l.b16 %v2928
      %v3005 = vpack.c.b16 %v2969, %v2968
      %v3006 = vpack.c.b16 %v2971, %v2970
      %v3007 = vpack.c.b16 %v2973, %v2972
      %v3008 = vpack.c.b16 %v2975, %v2974
      %v3009 = vpack.c.b16 %v2977, %v2976
      %v3010 = vpack.c.b16 %v2979, %v2978
      %v3011 = vpack.c.b16 %v2981, %v2980
      %v3012 = vpack.c.b16 %v2983, %v2982
      %v3013 = vpack.c.b16 %v2985, %v2984
      %v3014 = vpack.c.b16 %v2987, %v2986
      %v3015 = vpack.c.b16 %v2989, %v2988
      %v3016 = vpack.c.b16 %v2991, %v2990
      %v3017 = vpack.c.b16 %v2993, %v2992
      %v3018 = vpack.c.b16 %v2995, %v2994
      %v3019 = vpack.c.b16 %v2997, %v2996
      %v3020 = vpack.c.b16 %v2999, %v2998
      %v3021 = vpack.c.b16 %v3001, %v3000
      %v3022 = vpack.c.b16 %v3003, %v3002
      %v3023 = vpack.c.b16 %v3004, %v3004
      %vm3024 = vcmask 1045504
      %v3025 = vrot.slane %v3005, 2
      %v3026 = vrot.slane %v3006, 2
      %v3027 = vsel %vm3024, %v3025, %v3026
      %v3028 = vrot.slane %v3007, 2
      %v3029 = vsel %vm3024, %v3026, %v3028
      %v3030 = vrot.slane %v3008, 2
      %v3031 = vsel %vm3024, %v3028, %v3030
      %v3032 = vrot.slane %v3009, 2
      %v3033 = vsel %vm3024, %v3030, %v3032
      %v3034 = vrot.slane %v3010, 2
      %v3035 = vsel %vm3024, %v3032, %v3034
      %v3036 = vrot.slane %v3011, 2
      %v3037 = vsel %vm3024, %v3034, %v3036
      %v3038 = vrot.slane %v3012, 2
      %v3039 = vsel %vm3024, %v3036, %v3038
      %v3040 = vrot.slane %v3013, 2
      %v3041 = vsel %vm3024, %v3038, %v3040
      %v3042 = vrot.slane %v3014, 2
      %v3043 = vsel %vm3024, %v3040, %v3042
      %v3044 = vrot.slane %v3015, 2
      %v3045 = vsel %vm3024, %v3042, %v3044
      %v3046 = vrot.slane %v3016, 2
      %v3047 = vsel %vm3024, %v3044, %v3046
      %v3048 = vrot.slane %v3017, 2
      %v3049 = vsel %vm3024, %v3046, %v3048
      %v3050 = vrot.slane %v3018, 2
      %v3051 = vsel %vm3024, %v3048, %v3050
      %v3052 = vrot.slane %v3019, 2
      %v3053 = vsel %vm3024, %v3050, %v3052
      %v3054 = vrot.slane %v3020, 2
      %v3055 = vsel %vm3024, %v3052, %v3054
      %v3056 = vrot.slane %v3021, 2
      %v3057 = vsel %vm3024, %v3054, %v3056
      %v3058 = vrot.slane %v3022, 2
      %v3059 = vsel %vm3024, %v3056, %v3058
      %v3060 = vrot.slane %v3023, 2
      %v3061 = vsel %vm3024, %v3058, %v3060
      %v3063 = vsel %vm329, %v3027, 0
      %v3066 = vsel %vm329, %v3029, 0
      %v3069 = vsel %vm329, %v3031, 0
      %v3072 = vsel %vm329, %v3033, 0
      %v3075 = vsel %vm329, %v3035, 0
      %v3078 = vsel %vm329, %v3037, 0
      %v3081 = vsel %vm329, %v3039, 0
      %v3084 = vsel %vm329, %v3041, 0
      %v3087 = vsel %vm329, %v3043, 0
      %v3090 = vsel %vm329, %v3045, 0
      %v3093 = vsel %vm329, %v3047, 0
      %v3096 = vsel %vm329, %v3049, 0
      %v3099 = vsel %vm329, %v3051, 0
      %v3102 = vsel %vm329, %v3053, 0
      %v3105 = vsel %vm329, %v3055, 0
      %v3108 = vsel %vm329, %v3057, 0
      %v3111 = vsel %vm329, %v3059, 0
      %v3114 = vsel %vm329, %v3061, 0
      %v3117 = vsel %vm384, %v2930, 0
      %3119 = vmatprep.subr.bf16.mxu0 0
      %3120 = vmatpush1.bf16.msra.mxu0 %v3117
      %3121 = vmatprep.subr.bf16.mxu0 0
      %3122 = vmatpush1.bf16.msra.mxu0 0
      %3123 = vmatprep.subr.bf16.mxu0 0
      %3124 = vmatpush1.bf16.msra.mxu0 0
      %3125 = vmatprep.subr.bf16.mxu0 0
      %3126 = vmatpush1.bf16.msra.mxu0 0
      %3127 = vmatprep.subr.bf16.mxu0 0
      %3128 = vmatpush1.bf16.msra.mxu0 0
      %3129 = vmatprep.subr.bf16.mxu0 0
      %3130 = vmatpush1.bf16.msra.mxu0 0
      %3131 = vmatprep.subr.bf16.mxu0 0
      %3132 = vmatpush1.bf16.msra.mxu0 0
      %3133 = vmatprep.subr.bf16.mxu0 0
      %3134 = vmatpush1.bf16.msra.mxu0 0
      %3135 = vmatprep.subr.bf16.mxu0 0
      %3136 = vmatpush1.bf16.msra.mxu0 0
      %3137 = vmatprep.subr.bf16.mxu0 0
      %3138 = vmatpush1.bf16.msra.mxu0 0
      %3139 = vmatprep.subr.bf16.mxu0 0
      %3140 = vmatpush1.bf16.msra.mxu0 0
      %3141 = vmatprep.subr.bf16.mxu0 0
      %3142 = vmatpush1.bf16.msra.mxu0 0
      %3143 = vmatprep.subr.bf16.mxu0 0
      %3144 = vmatpush1.bf16.msra.mxu0 0
      %3145 = vmatprep.subr.bf16.mxu0 0
      %3146 = vmatpush1.bf16.msra.mxu0 0
      %3147 = vmatprep.subr.bf16.mxu0 0
      %3148 = vmatpush1.bf16.msra.mxu0 0
      %3149 = vmatprep.subr.bf16.mxu0 0
      %3150 = vmatpush1.bf16.msra.mxu0 0
      %3151 = vmatprep.mubr.bf16.mxu0 0
      %3152 = vmatmul.mubr.bf16.gmra.mrb[0].mxu0 %v3063
      %v3153 = vpop.f32.mrb[0].mxu0
      %v3154 = vadd.f32 0.0, %v3153
      %v3155 = vpop.f32.mrb[0].mxu0
      %v3156 = vpop.f32.mrb[0].mxu0
      %v3157 = vadd.f32 0.0, %v3156
      %v3158 = vpop.f32.mrb[0].mxu0
      %3159 = vmatprep.mubr.bf16.mxu0 0
      %3160 = vmatmul.mubr.bf16.gmra.mrb[0].mxu0 %v3066
      %v3161 = vpop.f32.mrb[0].mxu0
      %v3162 = vadd.f32 0.0, %v3161
      %v3163 = vpop.f32.mrb[0].mxu0
      %v3164 = vpop.f32.mrb[0].mxu0
      %v3165 = vadd.f32 0.0, %v3164
      %v3166 = vpop.f32.mrb[0].mxu0
      %3167 = vmatprep.mubr.bf16.mxu0 0
      %3168 = vmatmul.mubr.bf16.gmra.mrb[0].mxu0 %v3069
      %v3169 = vpop.f32.mrb[0].mxu0
      %v3170 = vadd.f32 0.0, %v3169
      %v3171 = vpop.f32.mrb[0].mxu0
      %v3172 = vpop.f32.mrb[0].mxu0
      %v3173 = vadd.f32 0.0, %v3172
      %v3174 = vpop.f32.mrb[0].mxu0
      %3175 = vmatprep.mubr.bf16.mxu0 0
      %3176 = vmatmul.mubr.bf16.gmra.mrb[0].mxu0 %v3072
      %v3177 = vpop.f32.mrb[0].mxu0
      %v3178 = vadd.f32 0.0, %v3177
      %v3179 = vpop.f32.mrb[0].mxu0
      %v3180 = vpop.f32.mrb[0].mxu0
      %v3181 = vadd.f32 0.0, %v3180
      %v3182 = vpop.f32.mrb[0].mxu0
      %3183 = vmatprep.mubr.bf16.mxu0 0
      %3184 = vmatmul.mubr.bf16.gmra.mrb[0].mxu0 %v3075
      %v3185 = vpop.f32.mrb[0].mxu0
      %v3186 = vadd.f32 0.0, %v3185
      %v3187 = vpop.f32.mrb[0].mxu0
      %v3188 = vpop.f32.mrb[0].mxu0
      %v3189 = vadd.f32 0.0, %v3188
      %v3190 = vpop.f32.mrb[0].mxu0
      %3191 = vmatprep.mubr.bf16.mxu0 0
      %3192 = vmatmul.mubr.bf16.gmra.mrb[0].mxu0 %v3078
      %v3193 = vpop.f32.mrb[0].mxu0
      %v3194 = vadd.f32 0.0, %v3193
      %v3195 = vpop.f32.mrb[0].mxu0
      %v3196 = vpop.f32.mrb[0].mxu0
      %v3197 = vadd.f32 0.0, %v3196
      %v3198 = vpop.f32.mrb[0].mxu0
      %3199 = vmatprep.mubr.bf16.mxu0 0
      %3200 = vmatmul.mubr.bf16.gmra.mrb[0].mxu0 %v3081
      %v3201 = vpop.f32.mrb[0].mxu0
      %v3202 = vadd.f32 0.0, %v3201
      %v3203 = vpop.f32.mrb[0].mxu0
      %v3204 = vpop.f32.mrb[0].mxu0
      %v3205 = vadd.f32 0.0, %v3204
      %v3206 = vpop.f32.mrb[0].mxu0
      %3207 = vmatprep.mubr.bf16.mxu0 0
      %3208 = vmatmul.mubr.bf16.gmra.mrb[0].mxu0 %v3084
      %v3209 = vpop.f32.mrb[0].mxu0
      %v3210 = vadd.f32 0.0, %v3209
      %v3211 = vpop.f32.mrb[0].mxu0
      %v3212 = vpop.f32.mrb[0].mxu0
      %v3213 = vadd.f32 0.0, %v3212
      %v3214 = vpop.f32.mrb[0].mxu0
      %3215 = vmatprep.mubr.bf16.mxu0 0
      %3216 = vmatmul.mubr.bf16.gmra.mrb[0].mxu0 %v3087
      %v3217 = vpop.f32.mrb[0].mxu0
      %v3218 = vadd.f32 0.0, %v3217
      %v3219 = vpop.f32.mrb[0].mxu0
      %v3220 = vpop.f32.mrb[0].mxu0
      %v3221 = vadd.f32 0.0, %v3220
      %v3222 = vpop.f32.mrb[0].mxu0
      %3223 = vmatprep.mubr.bf16.mxu0 0
      %3224 = vmatmul.mubr.bf16.gmra.mrb[0].mxu0 %v3090
      %v3225 = vpop.f32.mrb[0].mxu0
      %v3226 = vadd.f32 0.0, %v3225
      %v3227 = vpop.f32.mrb[0].mxu0
      %v3228 = vpop.f32.mrb[0].mxu0
      %v3229 = vadd.f32 0.0, %v3228
      %v3230 = vpop.f32.mrb[0].mxu0
      %3231 = vmatprep.mubr.bf16.mxu0 0
      %3232 = vmatmul.mubr.bf16.gmra.mrb[0].mxu0 %v3093
      %v3233 = vpop.f32.mrb[0].mxu0
      %v3234 = vadd.f32 0.0, %v3233
      %v3235 = vpop.f32.mrb[0].mxu0
      %v3236 = vpop.f32.mrb[0].mxu0
      %v3237 = vadd.f32 0.0, %v3236
      %v3238 = vpop.f32.mrb[0].mxu0
      %3239 = vmatprep.mubr.bf16.mxu0 0
      %3240 = vmatmul.mubr.bf16.gmra.mrb[0].mxu0 %v3096
      %v3241 = vpop.f32.mrb[0].mxu0
      %v3242 = vadd.f32 0.0, %v3241
      %v3243 = vpop.f32.mrb[0].mxu0
      %v3244 = vpop.f32.mrb[0].mxu0
      %v3245 = vadd.f32 0.0, %v3244
      %v3246 = vpop.f32.mrb[0].mxu0
      %3247 = vmatprep.mubr.bf16.mxu0 0
      %3248 = vmatmul.mubr.bf16.gmra.mrb[0].mxu0 %v3099
      %v3249 = vpop.f32.mrb[0].mxu0
      %v3250 = vadd.f32 0.0, %v3249
      %v3251 = vpop.f32.mrb[0].mxu0
      %v3252 = vpop.f32.mrb[0].mxu0
      %v3253 = vadd.f32 0.0, %v3252
      %v3254 = vpop.f32.mrb[0].mxu0
      %3255 = vmatprep.mubr.bf16.mxu0 0
      %3256 = vmatmul.mubr.bf16.gmra.mrb[0].mxu0 %v3102
      %v3257 = vpop.f32.mrb[0].mxu0
      %v3258 = vadd.f32 0.0, %v3257
      %v3259 = vpop.f32.mrb[0].mxu0
      %v3260 = vpop.f32.mrb[0].mxu0
      %v3261 = vadd.f32 0.0, %v3260
      %v3262 = vpop.f32.mrb[0].mxu0
      %3263 = vmatprep.mubr.bf16.mxu0 0
      %3264 = vmatmul.mubr.bf16.gmra.mrb[0].mxu0 %v3105
      %v3265 = vpop.f32.mrb[0].mxu0
      %v3266 = vadd.f32 0.0, %v3265
      %v3267 = vpop.f32.mrb[0].mxu0
      %v3268 = vpop.f32.mrb[0].mxu0
      %v3269 = vadd.f32 0.0, %v3268
      %v3270 = vpop.f32.mrb[0].mxu0
      %3271 = vmatprep.mubr.bf16.mxu0 0
      %3272 = vmatmul.mubr.bf16.gmra.mrb[0].mxu0 %v3108
      %v3273 = vpop.f32.mrb[0].mxu0
      %v3274 = vadd.f32 0.0, %v3273
      %v3275 = vpop.f32.mrb[0].mxu0
      %v3276 = vpop.f32.mrb[0].mxu0
      %v3277 = vadd.f32 0.0, %v3276
      %v3278 = vpop.f32.mrb[0].mxu0
      %3279 = vmatprep.mubr.bf16.mxu0 0
      %3280 = vmatmul.mubr.bf16.gmra.mrb[0].mxu0 %v3111
      %v3281 = vpop.f32.mrb[0].mxu0
      %v3282 = vadd.f32 0.0, %v3281
      %v3283 = vpop.f32.mrb[0].mxu0
      %v3284 = vpop.f32.mrb[0].mxu0
      %v3285 = vadd.f32 0.0, %v3284
      %v3286 = vpop.f32.mrb[0].mxu0
      %3287 = vmatprep.mubr.bf16.mxu0 0
      %3288 = vmatmul.mubr.bf16.gmra.mrb[0].mxu0 %v3114
      %v3289 = vpop.f32.mrb[0].mxu0
      %v3290 = vadd.f32 0.0, %v3289
      %v3291 = vpop.f32.mrb[0].mxu0
      %v3292 = vpop.f32.mrb[0].mxu0
      %v3293 = vadd.f32 0.0, %v3292
      %v3294 = vpop.f32.mrb[0].mxu0
      %3295 = vdwg.mxu0
      %v3296 = vld [vmem:[%s195] sm:$0xff]
      %v3297 = vld [vmem:[%s195 + $0x8] sm:$0xff]
      %v3298 = vld [vmem:[%s195 + $0x10] sm:$0xff]
      %v3299 = vld [vmem:[%s195 + $0x18] sm:$0xff]
      %v3300 = vld [vmem:[%s195 + $0x20] sm:$0xff]
      %v3301 = vld [vmem:[%s195 + $0x28] sm:$0xff]
      %v3302 = vld [vmem:[%s195 + $0x30] sm:$0xff]
      %v3303 = vld [vmem:[%s195 + $0x38] sm:$0xff]
      %v3304 = vld [vmem:[%s195 + $0x40] sm:$0xff]
      %v3305 = vld [vmem:[%s195 + $0x48] sm:$0xff]
      %v3306 = vld [vmem:[%s195 + $0x50] sm:$0xff]
      %v3307 = vld [vmem:[%s195 + $0x58] sm:$0xff]
      %v3308 = vld [vmem:[%s195 + $0x60] sm:$0xff]
      %v3309 = vld [vmem:[%s195 + $0x68] sm:$0xff]
      %v3310 = vld [vmem:[%s195 + $0x70] sm:$0xff]
      %v3311 = vld [vmem:[%s195 + $0x78] sm:$0xff]
      %v3312 = vld [vmem:[%s195 + $0x80] sm:$0xff]
      %v3313 = vld [vmem:[%s195 + $0x88] sm:$0xff]
      %v3314 = vld [vmem:[%s195 + $0x90] sm:$0xff]
      %v3315 = vld [vmem:[%s195 + $0x98] sm:$0xff]
      %v3316 = vld [vmem:[%s195 + $0xa0] sm:$0xff]
      %v3317 = vld [vmem:[%s195 + $0xa8] sm:$0xff]
      %v3318 = vld [vmem:[%s195 + $0xb0] sm:$0xff]
      %v3319 = vld [vmem:[%s195 + $0xb8] sm:$0xff]
      %v3320 = vld [vmem:[%s195 + $0xc0] sm:$0xff]
      %v3321 = vld [vmem:[%s195 + $0xc8] sm:$0xff]
      %v3322 = vld [vmem:[%s195 + $0xd0] sm:$0xff]
      %v3323 = vld [vmem:[%s195 + $0xd8] sm:$0xff]
      %v3324 = vld [vmem:[%s195 + $0xe0] sm:$0xff]
      %v3325 = vld [vmem:[%s195 + $0xe8] sm:$0xff]
      %v3326 = vld [vmem:[%s195 + $0xf0] sm:$0xff]
      %v3327 = vld [vmem:[%s195 + $0xf8] sm:$0xff]
      %v3328 = vld [vmem:[%s195 + $0x100] sm:$0xff]
      %v3329 = vld [vmem:[%s195 + $0x108] sm:$0xff]
      %v3330 = vld [vmem:[%s195 + $0x110] sm:$0xff]
      %v3331 = vld [vmem:[%s195 + $0x118] sm:$0xff]
      %v3332 = vadd.f32 %v3296, %v3154
      %v3333 = vadd.f32 %v3297, %v3157
      %v3334 = vadd.f32 %v3298, %v3162
      %v3335 = vadd.f32 %v3299, %v3165
      %v3336 = vadd.f32 %v3300, %v3170
      %v3337 = vadd.f32 %v3301, %v3173
      %v3338 = vadd.f32 %v3302, %v3178
      %v3339 = vadd.f32 %v3303, %v3181
      %v3340 = vadd.f32 %v3304, %v3186
      %v3341 = vadd.f32 %v3305, %v3189
      %v3342 = vadd.f32 %v3306, %v3194
      %v3343 = vadd.f32 %v3307, %v3197
      %v3344 = vadd.f32 %v3308, %v3202
      %v3345 = vadd.f32 %v3309, %v3205
      %v3346 = vadd.f32 %v3310, %v3210
      %v3347 = vadd.f32 %v3311, %v3213
      %v3348 = vadd.f32 %v3312, %v3218
      %v3349 = vadd.f32 %v3313, %v3221
      %v3350 = vadd.f32 %v3314, %v3226
      %v3351 = vadd.f32 %v3315, %v3229
      %v3352 = vadd.f32 %v3316, %v3234
      %v3353 = vadd.f32 %v3317, %v3237
      %v3354 = vadd.f32 %v3318, %v3242
      %v3355 = vadd.f32 %v3319, %v3245
      %v3356 = vadd.f32 %v3320, %v3250
      %v3357 = vadd.f32 %v3321, %v3253
      %v3358 = vadd.f32 %v3322, %v3258
      %v3359 = vadd.f32 %v3323, %v3261
      %v3360 = vadd.f32 %v3324, %v3266
      %v3361 = vadd.f32 %v3325, %v3269
      %v3362 = vadd.f32 %v3326, %v3274
      %v3363 = vadd.f32 %v3327, %v3277
      %v3364 = vadd.f32 %v3328, %v3282
      %v3365 = vadd.f32 %v3329, %v3285
      %v3366 = vadd.f32 %v3330, %v3290
      %v3367 = vadd.f32 %v3331, %v3293
      %3368 = vst [vmem:[%s195] sm:$0xff] %v3332
      %3369 = vst [vmem:[%s195 + $0x8] sm:$0xff] %v3333
      %3370 = vst [vmem:[%s195 + $0x10] sm:$0xff] %v3334
      %3371 = vst [vmem:[%s195 + $0x18] sm:$0xff] %v3335
      %3372 = vst [vmem:[%s195 + $0x20] sm:$0xff] %v3336
      %3373 = vst [vmem:[%s195 + $0x28] sm:$0xff] %v3337
      %3374 = vst [vmem:[%s195 + $0x30] sm:$0xff] %v3338
      %3375 = vst [vmem:[%s195 + $0x38] sm:$0xff] %v3339
      %3376 = vst [vmem:[%s195 + $0x40] sm:$0xff] %v3340
      %3377 = vst [vmem:[%s195 + $0x48] sm:$0xff] %v3341
      %3378 = vst [vmem:[%s195 + $0x50] sm:$0xff] %v3342
      %3379 = vst [vmem:[%s195 + $0x58] sm:$0xff] %v3343
      %3380 = vst [vmem:[%s195 + $0x60] sm:$0xff] %v3344
      %3381 = vst [vmem:[%s195 + $0x68] sm:$0xff] %v3345
      %3382 = vst [vmem:[%s195 + $0x70] sm:$0xff] %v3346
      %3383 = vst [vmem:[%s195 + $0x78] sm:$0xff] %v3347
      %3384 = vst [vmem:[%s195 + $0x80] sm:$0xff] %v3348
      %3385 = vst [vmem:[%s195 + $0x88] sm:$0xff] %v3349
      %3386 = vst [vmem:[%s195 + $0x90] sm:$0xff] %v3350
      %3387 = vst [vmem:[%s195 + $0x98] sm:$0xff] %v3351
      %3388 = vst [vmem:[%s195 + $0xa0] sm:$0xff] %v3352
      %3389 = vst [vmem:[%s195 + $0xa8] sm:$0xff] %v3353
      %3390 = vst [vmem:[%s195 + $0xb0] sm:$0xff] %v3354
      %3391 = vst [vmem:[%s195 + $0xb8] sm:$0xff] %v3355
      %3392 = vst [vmem:[%s195 + $0xc0] sm:$0xff] %v3356
      %3393 = vst [vmem:[%s195 + $0xc8] sm:$0xff] %v3357
      %3394 = vst [vmem:[%s195 + $0xd0] sm:$0xff] %v3358
      %3395 = vst [vmem:[%s195 + $0xd8] sm:$0xff] %v3359
      %3396 = vst [vmem:[%s195 + $0xe0] sm:$0xff] %v3360
      %3397 = vst [vmem:[%s195 + $0xe8] sm:$0xff] %v3361
      %3398 = vst [vmem:[%s195 + $0xf0] sm:$0xff] %v3362
      %3399 = vst [vmem:[%s195 + $0xf8] sm:$0xff] %v3363
      %3400 = vst [vmem:[%s195 + $0x100] sm:$0xff] %v3364
      %3401 = vst [vmem:[%s195 + $0x108] sm:$0xff] %v3365
      %3402 = vst [vmem:[%s195 + $0x110] sm:$0xff] %v3366
      %3403 = vst [vmem:[%s195 + $0x118] sm:$0xff] %v3367
      %v3404 = vld [vmem:[%s190 + $0x10] sm:$0xc]
      %v3405 = vld [vmem:[%s190 + $0x14] sm:$0xf]
      %v3406 = vld [vmem:[%s190 + $0x18] sm:$0xf]
      %v3407 = vld [vmem:[%s190 + $0x1c] sm:$0xf]
      %v3408 = vld [vmem:[%s190 + $0x20] sm:$0xf]
      %v3409 = vld [vmem:[%s190 + $0x24] sm:$0xf]
      %v3410 = vld [vmem:[%s190 + $0x28] sm:$0xf]
      %v3411 = vld [vmem:[%s190 + $0x2c] sm:$0xf]
      %v3412 = vld [vmem:[%s190 + $0x30] sm:$0xf]
      %v3413 = vld [vmem:[%s190 + $0x34] sm:$0xf]
      %v3414 = vld [vmem:[%s190 + $0x38] sm:$0xf]
      %v3415 = vld [vmem:[%s190 + $0x3c] sm:$0xf]
      %v3416 = vld [vmem:[%s190 + $0x40] sm:$0xf]
      %v3417 = vld [vmem:[%s190 + $0x44] sm:$0xf]
      %v3418 = vld [vmem:[%s190 + $0x48] sm:$0xf]
      %v3419 = vld [vmem:[%s190 + $0x4c] sm:$0xf]
      %v3420 = vld [vmem:[%s190 + $0x50] sm:$0xf]
      %v3421 = vld [vmem:[%s190 + $0x54] sm:$0xf]
      %v3422 = vld [vmem:[%s190 + $0x58] sm:$0xf]
      %v3423 = vld [vmem:[%s190 + $0x5c] sm:$0xf]
      %v3424 = vld [vmem:[%s190 + $0x60] sm:$0xf]
      %v3425 = vld [vmem:[%s190 + $0x64] sm:$0xf]
      %v3426 = vld [vmem:[%s190 + $0x68] sm:$0xf]
      %v3427 = vld [vmem:[%s190 + $0x6c] sm:$0xf]
      %v3428 = vld [vmem:[%s190 + $0x70] sm:$0xf]
      %v3429 = vld [vmem:[%s190 + $0x74] sm:$0xf]
      %v3430 = vld [vmem:[%s190 + $0x78] sm:$0xf]
      %v3431 = vld [vmem:[%s190 + $0x7c] sm:$0xf]
      %v3432 = vld [vmem:[%s190 + $0x80] sm:$0xf]
      %v3433 = vld [vmem:[%s190 + $0x84] sm:$0xf]
      %v3434 = vld [vmem:[%s190 + $0x88] sm:$0xf]
      %v3435 = vld [vmem:[%s190 + $0x8c] sm:$0xf]
      %v3436 = vld [vmem:[%s190 + $0x90] sm:$0xf]
      %v3437 = vld [vmem:[%s190 + $0x94] sm:$0xf]
      %v3438 = vld [vmem:[%s190 + $0x98] sm:$0xf]
      %v3439 = vld [vmem:[%s190 + $0x9c] sm:$0xf]
      %v3440 = vld [vmem:[%s190 + $0xa0] sm:$0x3]
      %s3441 = scalar_lea.vmem %s1, 12
      %v3442 = vld [vmem:[%s3441] sm:$0x3]
      %v3480 = vunpack.c.l.b16 %v3404
      %v3481 = vunpack.c.l.b16 %v3405
      %v3482 = vunpack.c.l.b16 %v3406
      %v3483 = vunpack.c.l.b16 %v3407
      %v3484 = vunpack.c.l.b16 %v3408
      %v3485 = vunpack.c.l.b16 %v3409
      %v3486 = vunpack.c.l.b16 %v3410
      %v3487 = vunpack.c.l.b16 %v3411
      %v3488 = vunpack.c.l.b16 %v3412
      %v3489 = vunpack.c.l.b16 %v3413
      %v3490 = vunpack.c.l.b16 %v3414
      %v3491 = vunpack.c.l.b16 %v3415
      %v3492 = vunpack.c.l.b16 %v3416
      %v3493 = vunpack.c.l.b16 %v3417
      %v3494 = vunpack.c.l.b16 %v3418
      %v3495 = vunpack.c.l.b16 %v3419
      %v3496 = vunpack.c.l.b16 %v3420
      %v3497 = vunpack.c.l.b16 %v3421
      %v3498 = vunpack.c.l.b16 %v3422
      %v3499 = vunpack.c.l.b16 %v3423
      %v3500 = vunpack.c.l.b16 %v3424
      %v3501 = vunpack.c.l.b16 %v3425
      %v3502 = vunpack.c.l.b16 %v3426
      %v3503 = vunpack.c.l.b16 %v3427
      %v3504 = vunpack.c.l.b16 %v3428
      %v3505 = vunpack.c.l.b16 %v3429
      %v3506 = vunpack.c.l.b16 %v3430
      %v3507 = vunpack.c.l.b16 %v3431
      %v3508 = vunpack.c.l.b16 %v3432
      %v3509 = vunpack.c.l.b16 %v3433
      %v3510 = vunpack.c.l.b16 %v3434
      %v3511 = vunpack.c.l.b16 %v3435
      %v3512 = vunpack.c.l.b16 %v3436
      %v3513 = vunpack.c.l.b16 %v3437
      %v3514 = vunpack.c.l.b16 %v3438
      %v3515 = vunpack.c.l.b16 %v3439
      %v3516 = vunpack.c.l.b16 %v3440
      %v3517 = vpack.c.b16 %v3481, %v3480
      %v3518 = vpack.c.b16 %v3483, %v3482
      %v3519 = vpack.c.b16 %v3485, %v3484
      %v3520 = vpack.c.b16 %v3487, %v3486
      %v3521 = vpack.c.b16 %v3489, %v3488
      %v3522 = vpack.c.b16 %v3491, %v3490
      %v3523 = vpack.c.b16 %v3493, %v3492
      %v3524 = vpack.c.b16 %v3495, %v3494
      %v3525 = vpack.c.b16 %v3497, %v3496
      %v3526 = vpack.c.b16 %v3499, %v3498
      %v3527 = vpack.c.b16 %v3501, %v3500
      %v3528 = vpack.c.b16 %v3503, %v3502
      %v3529 = vpack.c.b16 %v3505, %v3504
      %v3530 = vpack.c.b16 %v3507, %v3506
      %v3531 = vpack.c.b16 %v3509, %v3508
      %v3532 = vpack.c.b16 %v3511, %v3510
      %v3533 = vpack.c.b16 %v3513, %v3512
      %v3534 = vpack.c.b16 %v3515, %v3514
      %v3535 = vpack.c.b16 %v3516, %v3516
      %v3536 = vrot.slane %v3517, 2
      %v3537 = vrot.slane %v3518, 2
      %v3538 = vsel %vm3024, %v3536, %v3537
      %v3539 = vrot.slane %v3519, 2
      %v3540 = vsel %vm3024, %v3537, %v3539
      %v3541 = vrot.slane %v3520, 2
      %v3542 = vsel %vm3024, %v3539, %v3541
      %v3543 = vrot.slane %v3521, 2
      %v3544 = vsel %vm3024, %v3541, %v3543
      %v3545 = vrot.slane %v3522, 2
      %v3546 = vsel %vm3024, %v3543, %v3545
      %v3547 = vrot.slane %v3523, 2
      %v3548 = vsel %vm3024, %v3545, %v3547
      %v3549 = vrot.slane %v3524, 2
      %v3550 = vsel %vm3024, %v3547, %v3549
      %v3551 = vrot.slane %v3525, 2
      %v3552 = vsel %vm3024, %v3549, %v3551
      %v3553 = vrot.slane %v3526, 2
      %v3554 = vsel %vm3024, %v3551, %v3553
      %v3555 = vrot.slane %v3527, 2
      %v3556 = vsel %vm3024, %v3553, %v3555
      %v3557 = vrot.slane %v3528, 2
      %v3558 = vsel %vm3024, %v3555, %v3557
      %v3559 = vrot.slane %v3529, 2
      %v3560 = vsel %vm3024, %v3557, %v3559
      %v3561 = vrot.slane %v3530, 2
      %v3562 = vsel %vm3024, %v3559, %v3561
      %v3563 = vrot.slane %v3531, 2
      %v3564 = vsel %vm3024, %v3561, %v3563
      %v3565 = vrot.slane %v3532, 2
      %v3566 = vsel %vm3024, %v3563, %v3565
      %v3567 = vrot.slane %v3533, 2
      %v3568 = vsel %vm3024, %v3565, %v3567
      %v3569 = vrot.slane %v3534, 2
      %v3570 = vsel %vm3024, %v3567, %v3569
      %v3571 = vrot.slane %v3535, 2
      %v3572 = vsel %vm3024, %v3569, %v3571
      %v3574 = vsel %vm329, %v3538, 0
      %v3577 = vsel %vm329, %v3540, 0
      %v3580 = vsel %vm329, %v3542, 0
      %v3583 = vsel %vm329, %v3544, 0
      %v3586 = vsel %vm329, %v3546, 0
      %v3589 = vsel %vm329, %v3548, 0
      %v3592 = vsel %vm329, %v3550, 0
      %v3595 = vsel %vm329, %v3552, 0
      %v3598 = vsel %vm329, %v3554, 0
      %v3601 = vsel %vm329, %v3556, 0
      %v3604 = vsel %vm329, %v3558, 0
      %v3607 = vsel %vm329, %v3560, 0
      %v3610 = vsel %vm329, %v3562, 0
      %v3613 = vsel %vm329, %v3564, 0
      %v3616 = vsel %vm329, %v3566, 0
      %v3619 = vsel %vm329, %v3568, 0
      %v3622 = vsel %vm329, %v3570, 0
      %v3625 = vsel %vm329, %v3572, 0
      %v3628 = vsel %vm384, %v3442, 0
      %3630 = vmatprep.subr.bf16.mxu0 0
      %3631 = vmatpush1.bf16.msra.mxu0 %v3628
      %3632 = vmatprep.subr.bf16.mxu0 0
      %3633 = vmatpush1.bf16.msra.mxu0 0
      %3634 = vmatprep.subr.bf16.mxu0 0
      %3635 = vmatpush1.bf16.msra.mxu0 0
      %3636 = vmatprep.subr.bf16.mxu0 0
      %3637 = vmatpush1.bf16.msra.mxu0 0
      %3638 = vmatprep.subr.bf16.mxu0 0
      %3639 = vmatpush1.bf16.msra.mxu0 0
      %3640 = vmatprep.subr.bf16.mxu0 0
      %3641 = vmatpush1.bf16.msra.mxu0 0
      %3642 = vmatprep.subr.bf16.mxu0 0
      %3643 = vmatpush1.bf16.msra.mxu0 0
      %3644 = vmatprep.subr.bf16.mxu0 0
      %3645 = vmatpush1.bf16.msra.mxu0 0
      %3646 = vmatprep.subr.bf16.mxu0 0
      %3647 = vmatpush1.bf16.msra.mxu0 0
      %3648 = vmatprep.subr.bf16.mxu0 0
      %3649 = vmatpush1.bf16.msra.mxu0 0
      %3650 = vmatprep.subr.bf16.mxu0 0
      %3651 = vmatpush1.bf16.msra.mxu0 0
      %3652 = vmatprep.subr.bf16.mxu0 0
      %3653 = vmatpush1.bf16.msra.mxu0 0
      %3654 = vmatprep.subr.bf16.mxu0 0
      %3655 = vmatpush1.bf16.msra.mxu0 0
      %3656 = vmatprep.subr.bf16.mxu0 0
      %3657 = vmatpush1.bf16.msra.mxu0 0
      %3658 = vmatprep.subr.bf16.mxu0 0
      %3659 = vmatpush1.bf16.msra.mxu0 0
      %3660 = vmatprep.subr.bf16.mxu0 0
      %3661 = vmatpush1.bf16.msra.mxu0 0
      %3662 = vmatprep.mubr.bf16.mxu0 0
      %3663 = vmatmul.mubr.bf16.gmra.mrb[0].mxu0 %v3574
      %v3664 = vpop.f32.mrb[0].mxu0
      %v3665 = vadd.f32 0.0, %v3664
      %v3666 = vpop.f32.mrb[0].mxu0
      %v3667 = vpop.f32.mrb[0].mxu0
      %v3668 = vadd.f32 0.0, %v3667
      %v3669 = vpop.f32.mrb[0].mxu0
      %3670 = vmatprep.mubr.bf16.mxu0 0
      %3671 = vmatmul.mubr.bf16.gmra.mrb[0].mxu0 %v3577
      %v3672 = vpop.f32.mrb[0].mxu0
      %v3673 = vadd.f32 0.0, %v3672
      %v3674 = vpop.f32.mrb[0].mxu0
      %v3675 = vpop.f32.mrb[0].mxu0
      %v3676 = vadd.f32 0.0, %v3675
      %v3677 = vpop.f32.mrb[0].mxu0
      %3678 = vmatprep.mubr.bf16.mxu0 0
      %3679 = vmatmul.mubr.bf16.gmra.mrb[0].mxu0 %v3580
      %v3680 = vpop.f32.mrb[0].mxu0
      %v3681 = vadd.f32 0.0, %v3680
      %v3682 = vpop.f32.mrb[0].mxu0
      %v3683 = vpop.f32.mrb[0].mxu0
      %v3684 = vadd.f32 0.0, %v3683
      %v3685 = vpop.f32.mrb[0].mxu0
      %3686 = vmatprep.mubr.bf16.mxu0 0
      %3687 = vmatmul.mubr.bf16.gmra.mrb[0].mxu0 %v3583
      %v3688 = vpop.f32.mrb[0].mxu0
      %v3689 = vadd.f32 0.0, %v3688
      %v3690 = vpop.f32.mrb[0].mxu0
      %v3691 = vpop.f32.mrb[0].mxu0
      %v3692 = vadd.f32 0.0, %v3691
      %v3693 = vpop.f32.mrb[0].mxu0
      %3694 = vmatprep.mubr.bf16.mxu0 0
      %3695 = vmatmul.mubr.bf16.gmra.mrb[0].mxu0 %v3586
      %v3696 = vpop.f32.mrb[0].mxu0
      %v3697 = vadd.f32 0.0, %v3696
      %v3698 = vpop.f32.mrb[0].mxu0
      %v3699 = vpop.f32.mrb[0].mxu0
      %v3700 = vadd.f32 0.0, %v3699
      %v3701 = vpop.f32.mrb[0].mxu0
      %3702 = vmatprep.mubr.bf16.mxu0 0
      %3703 = vmatmul.mubr.bf16.gmra.mrb[0].mxu0 %v3589
      %v3704 = vpop.f32.mrb[0].mxu0
      %v3705 = vadd.f32 0.0, %v3704
      %v3706 = vpop.f32.mrb[0].mxu0
      %v3707 = vpop.f32.mrb[0].mxu0
      %v3708 = vadd.f32 0.0, %v3707
      %v3709 = vpop.f32.mrb[0].mxu0
      %3710 = vmatprep.mubr.bf16.mxu0 0
      %3711 = vmatmul.mubr.bf16.gmra.mrb[0].mxu0 %v3592
      %v3712 = vpop.f32.mrb[0].mxu0
      %v3713 = vadd.f32 0.0, %v3712
      %v3714 = vpop.f32.mrb[0].mxu0
      %v3715 = vpop.f32.mrb[0].mxu0
      %v3716 = vadd.f32 0.0, %v3715
      %v3717 = vpop.f32.mrb[0].mxu0
      %3718 = vmatprep.mubr.bf16.mxu0 0
      %3719 = vmatmul.mubr.bf16.gmra.mrb[0].mxu0 %v3595
      %v3720 = vpop.f32.mrb[0].mxu0
      %v3721 = vadd.f32 0.0, %v3720
      %v3722 = vpop.f32.mrb[0].mxu0
      %v3723 = vpop.f32.mrb[0].mxu0
      %v3724 = vadd.f32 0.0, %v3723
      %v3725 = vpop.f32.mrb[0].mxu0
      %3726 = vmatprep.mubr.bf16.mxu0 0
      %3727 = vmatmul.mubr.bf16.gmra.mrb[0].mxu0 %v3598
      %v3728 = vpop.f32.mrb[0].mxu0
      %v3729 = vadd.f32 0.0, %v3728
      %v3730 = vpop.f32.mrb[0].mxu0
      %v3731 = vpop.f32.mrb[0].mxu0
      %v3732 = vadd.f32 0.0, %v3731
      %v3733 = vpop.f32.mrb[0].mxu0
      %3734 = vmatprep.mubr.bf16.mxu0 0
      %3735 = vmatmul.mubr.bf16.gmra.mrb[0].mxu0 %v3601
      %v3736 = vpop.f32.mrb[0].mxu0
      %v3737 = vadd.f32 0.0, %v3736
      %v3738 = vpop.f32.mrb[0].mxu0
      %v3739 = vpop.f32.mrb[0].mxu0
      %v3740 = vadd.f32 0.0, %v3739
      %v3741 = vpop.f32.mrb[0].mxu0
      %3742 = vmatprep.mubr.bf16.mxu0 0
      %3743 = vmatmul.mubr.bf16.gmra.mrb[0].mxu0 %v3604
      %v3744 = vpop.f32.mrb[0].mxu0
      %v3745 = vadd.f32 0.0, %v3744
      %v3746 = vpop.f32.mrb[0].mxu0
      %v3747 = vpop.f32.mrb[0].mxu0
      %v3748 = vadd.f32 0.0, %v3747
      %v3749 = vpop.f32.mrb[0].mxu0
      %3750 = vmatprep.mubr.bf16.mxu0 0
      %3751 = vmatmul.mubr.bf16.gmra.mrb[0].mxu0 %v3607
      %v3752 = vpop.f32.mrb[0].mxu0
      %v3753 = vadd.f32 0.0, %v3752
      %v3754 = vpop.f32.mrb[0].mxu0
      %v3755 = vpop.f32.mrb[0].mxu0
      %v3756 = vadd.f32 0.0, %v3755
      %v3757 = vpop.f32.mrb[0].mxu0
      %3758 = vmatprep.mubr.bf16.mxu0 0
      %3759 = vmatmul.mubr.bf16.gmra.mrb[0].mxu0 %v3610
      %v3760 = vpop.f32.mrb[0].mxu0
      %v3761 = vadd.f32 0.0, %v3760
      %v3762 = vpop.f32.mrb[0].mxu0
      %v3763 = vpop.f32.mrb[0].mxu0
      %v3764 = vadd.f32 0.0, %v3763
      %v3765 = vpop.f32.mrb[0].mxu0
      %3766 = vmatprep.mubr.bf16.mxu0 0
      %3767 = vmatmul.mubr.bf16.gmra.mrb[0].mxu0 %v3613
      %v3768 = vpop.f32.mrb[0].mxu0
      %v3769 = vadd.f32 0.0, %v3768
      %v3770 = vpop.f32.mrb[0].mxu0
      %v3771 = vpop.f32.mrb[0].mxu0
      %v3772 = vadd.f32 0.0, %v3771
      %v3773 = vpop.f32.mrb[0].mxu0
      %3774 = vmatprep.mubr.bf16.mxu0 0
      %3775 = vmatmul.mubr.bf16.gmra.mrb[0].mxu0 %v3616
      %v3776 = vpop.f32.mrb[0].mxu0
      %v3777 = vadd.f32 0.0, %v3776
      %v3778 = vpop.f32.mrb[0].mxu0
      %v3779 = vpop.f32.mrb[0].mxu0
      %v3780 = vadd.f32 0.0, %v3779
      %v3781 = vpop.f32.mrb[0].mxu0
      %3782 = vmatprep.mubr.bf16.mxu0 0
      %3783 = vmatmul.mubr.bf16.gmra.mrb[0].mxu0 %v3619
      %v3784 = vpop.f32.mrb[0].mxu0
      %v3785 = vadd.f32 0.0, %v3784
      %v3786 = vpop.f32.mrb[0].mxu0
      %v3787 = vpop.f32.mrb[0].mxu0
      %v3788 = vadd.f32 0.0, %v3787
      %v3789 = vpop.f32.mrb[0].mxu0
      %3790 = vmatprep.mubr.bf16.mxu0 0
      %3791 = vmatmul.mubr.bf16.gmra.mrb[0].mxu0 %v3622
      %v3792 = vpop.f32.mrb[0].mxu0
      %v3793 = vadd.f32 0.0, %v3792
      %v3794 = vpop.f32.mrb[0].mxu0
      %v3795 = vpop.f32.mrb[0].mxu0
      %v3796 = vadd.f32 0.0, %v3795
      %v3797 = vpop.f32.mrb[0].mxu0
      %3798 = vmatprep.mubr.bf16.mxu0 0
      %3799 = vmatmul.mubr.bf16.gmra.mrb[0].mxu0 %v3625
      %v3800 = vpop.f32.mrb[0].mxu0
      %v3801 = vadd.f32 0.0, %v3800
      %v3802 = vpop.f32.mrb[0].mxu0
      %v3803 = vpop.f32.mrb[0].mxu0
      %v3804 = vadd.f32 0.0, %v3803
      %v3805 = vpop.f32.mrb[0].mxu0
      %3806 = vdwg.mxu0
      %v3807 = vld [vmem:[%s195] sm:$0xff]
      %v3808 = vld [vmem:[%s195 + $0x8] sm:$0xff]
      %v3809 = vld [vmem:[%s195 + $0x10] sm:$0xff]
      %v3810 = vld [vmem:[%s195 + $0x18] sm:$0xff]
      %v3811 = vld [vmem:[%s195 + $0x20] sm:$0xff]
      %v3812 = vld [vmem:[%s195 + $0x28] sm:$0xff]
      %v3813 = vld [vmem:[%s195 + $0x30] sm:$0xff]
      %v3814 = vld [vmem:[%s195 + $0x38] sm:$0xff]
      %v3815 = vld [vmem:[%s195 + $0x40] sm:$0xff]
      %v3816 = vld [vmem:[%s195 + $0x48] sm:$0xff]
      %v3817 = vld [vmem:[%s195 + $0x50] sm:$0xff]
      %v3818 = vld [vmem:[%s195 + $0x58] sm:$0xff]
      %v3819 = vld [vmem:[%s195 + $0x60] sm:$0xff]
      %v3820 = vld [vmem:[%s195 + $0x68] sm:$0xff]
      %v3821 = vld [vmem:[%s195 + $0x70] sm:$0xff]
      %v3822 = vld [vmem:[%s195 + $0x78] sm:$0xff]
      %v3823 = vld [vmem:[%s195 + $0x80] sm:$0xff]
      %v3824 = vld [vmem:[%s195 + $0x88] sm:$0xff]
      %v3825 = vld [vmem:[%s195 + $0x90] sm:$0xff]
      %v3826 = vld [vmem:[%s195 + $0x98] sm:$0xff]
      %v3827 = vld [vmem:[%s195 + $0xa0] sm:$0xff]
      %v3828 = vld [vmem:[%s195 + $0xa8] sm:$0xff]
      %v3829 = vld [vmem:[%s195 + $0xb0] sm:$0xff]
      %v3830 = vld [vmem:[%s195 + $0xb8] sm:$0xff]
      %v3831 = vld [vmem:[%s195 + $0xc0] sm:$0xff]
      %v3832 = vld [vmem:[%s195 + $0xc8] sm:$0xff]
      %v3833 = vld [vmem:[%s195 + $0xd0] sm:$0xff]
      %v3834 = vld [vmem:[%s195 + $0xd8] sm:$0xff]
      %v3835 = vld [vmem:[%s195 + $0xe0] sm:$0xff]
      %v3836 = vld [vmem:[%s195 + $0xe8] sm:$0xff]
      %v3837 = vld [vmem:[%s195 + $0xf0] sm:$0xff]
      %v3838 = vld [vmem:[%s195 + $0xf8] sm:$0xff]
      %v3839 = vld [vmem:[%s195 + $0x100] sm:$0xff]
      %v3840 = vld [vmem:[%s195 + $0x108] sm:$0xff]
      %v3841 = vld [vmem:[%s195 + $0x110] sm:$0xff]
      %v3842 = vld [vmem:[%s195 + $0x118] sm:$0xff]
      %v3843 = vadd.f32 %v3807, %v3665
      %v3844 = vadd.f32 %v3808, %v3668
      %v3845 = vadd.f32 %v3809, %v3673
      %v3846 = vadd.f32 %v3810, %v3676
      %v3847 = vadd.f32 %v3811, %v3681
      %v3848 = vadd.f32 %v3812, %v3684
      %v3849 = vadd.f32 %v3813, %v3689
      %v3850 = vadd.f32 %v3814, %v3692
      %v3851 = vadd.f32 %v3815, %v3697
      %v3852 = vadd.f32 %v3816, %v3700
      %v3853 = vadd.f32 %v3817, %v3705
      %v3854 = vadd.f32 %v3818, %v3708
      %v3855 = vadd.f32 %v3819, %v3713
      %v3856 = vadd.f32 %v3820, %v3716
      %v3857 = vadd.f32 %v3821, %v3721
      %v3858 = vadd.f32 %v3822, %v3724
      %v3859 = vadd.f32 %v3823, %v3729
      %v3860 = vadd.f32 %v3824, %v3732
      %v3861 = vadd.f32 %v3825, %v3737
      %v3862 = vadd.f32 %v3826, %v3740
      %v3863 = vadd.f32 %v3827, %v3745
      %v3864 = vadd.f32 %v3828, %v3748
      %v3865 = vadd.f32 %v3829, %v3753
      %v3866 = vadd.f32 %v3830, %v3756
      %v3867 = vadd.f32 %v3831, %v3761
      %v3868 = vadd.f32 %v3832, %v3764
      %v3869 = vadd.f32 %v3833, %v3769
      %v3870 = vadd.f32 %v3834, %v3772
      %v3871 = vadd.f32 %v3835, %v3777
      %v3872 = vadd.f32 %v3836, %v3780
      %v3873 = vadd.f32 %v3837, %v3785
      %v3874 = vadd.f32 %v3838, %v3788
      %v3875 = vadd.f32 %v3839, %v3793
      %v3876 = vadd.f32 %v3840, %v3796
      %v3877 = vadd.f32 %v3841, %v3801
      %v3878 = vadd.f32 %v3842, %v3804
      %3879 = vst [vmem:[%s195] sm:$0xff] %v3843
      %3880 = vst [vmem:[%s195 + $0x8] sm:$0xff] %v3844
      %3881 = vst [vmem:[%s195 + $0x10] sm:$0xff] %v3845
      %3882 = vst [vmem:[%s195 + $0x18] sm:$0xff] %v3846
      %3883 = vst [vmem:[%s195 + $0x20] sm:$0xff] %v3847
      %3884 = vst [vmem:[%s195 + $0x28] sm:$0xff] %v3848
      %3885 = vst [vmem:[%s195 + $0x30] sm:$0xff] %v3849
      %3886 = vst [vmem:[%s195 + $0x38] sm:$0xff] %v3850
      %3887 = vst [vmem:[%s195 + $0x40] sm:$0xff] %v3851
      %3888 = vst [vmem:[%s195 + $0x48] sm:$0xff] %v3852
      %3889 = vst [vmem:[%s195 + $0x50] sm:$0xff] %v3853
      %3890 = vst [vmem:[%s195 + $0x58] sm:$0xff] %v3854
      %3891 = vst [vmem:[%s195 + $0x60] sm:$0xff] %v3855
      %3892 = vst [vmem:[%s195 + $0x68] sm:$0xff] %v3856
      %3893 = vst [vmem:[%s195 + $0x70] sm:$0xff] %v3857
      %3894 = vst [vmem:[%s195 + $0x78] sm:$0xff] %v3858
      %3895 = vst [vmem:[%s195 + $0x80] sm:$0xff] %v3859
      %3896 = vst [vmem:[%s195 + $0x88] sm:$0xff] %v3860
      %3897 = vst [vmem:[%s195 + $0x90] sm:$0xff] %v3861
      %3898 = vst [vmem:[%s195 + $0x98] sm:$0xff] %v3862
      %3899 = vst [vmem:[%s195 + $0xa0] sm:$0xff] %v3863
      %3900 = vst [vmem:[%s195 + $0xa8] sm:$0xff] %v3864
      %3901 = vst [vmem:[%s195 + $0xb0] sm:$0xff] %v3865
      %3902 = vst [vmem:[%s195 + $0xb8] sm:$0xff] %v3866
      %3903 = vst [vmem:[%s195 + $0xc0] sm:$0xff] %v3867
      %3904 = vst [vmem:[%s195 + $0xc8] sm:$0xff] %v3868
      %3905 = vst [vmem:[%s195 + $0xd0] sm:$0xff] %v3869
      %3906 = vst [vmem:[%s195 + $0xd8] sm:$0xff] %v3870
      %3907 = vst [vmem:[%s195 + $0xe0] sm:$0xff] %v3871
      %3908 = vst [vmem:[%s195 + $0xe8] sm:$0xff] %v3872
      %3909 = vst [vmem:[%s195 + $0xf0] sm:$0xff] %v3873
      %3910 = vst [vmem:[%s195 + $0xf8] sm:$0xff] %v3874
      %3911 = vst [vmem:[%s195 + $0x100] sm:$0xff] %v3875
      %3912 = vst [vmem:[%s195 + $0x108] sm:$0xff] %v3876
      %3913 = vst [vmem:[%s195 + $0x110] sm:$0xff] %v3877
      %3914 = vst [vmem:[%s195 + $0x118] sm:$0xff] %v3878
      %v3915 = vld [vmem:[%s190 + $0x10] sm:$0xc]
      %v3916 = vld [vmem:[%s190 + $0x14] sm:$0xf]
      %v3917 = vld [vmem:[%s190 + $0x18] sm:$0xf]
      %v3918 = vld [vmem:[%s190 + $0x1c] sm:$0xf]
      %v3919 = vld [vmem:[%s190 + $0x20] sm:$0xf]
      %v3920 = vld [vmem:[%s190 + $0x24] sm:$0xf]
      %v3921 = vld [vmem:[%s190 + $0x28] sm:$0xf]
      %v3922 = vld [vmem:[%s190 + $0x2c] sm:$0xf]
      %v3923 = vld [vmem:[%s190 + $0x30] sm:$0xf]
      %v3924 = vld [vmem:[%s190 + $0x34] sm:$0xf]
      %v3925 = vld [vmem:[%s190 + $0x38] sm:$0xf]
      %v3926 = vld [vmem:[%s190 + $0x3c] sm:$0xf]
      %v3927 = vld [vmem:[%s190 + $0x40] sm:$0xf]
      %v3928 = vld [vmem:[%s190 + $0x44] sm:$0xf]
      %v3929 = vld [vmem:[%s190 + $0x48] sm:$0xf]
      %v3930 = vld [vmem:[%s190 + $0x4c] sm:$0xf]
      %v3931 = vld [vmem:[%s190 + $0x50] sm:$0xf]
      %v3932 = vld [vmem:[%s190 + $0x54] sm:$0xf]
      %v3933 = vld [vmem:[%s190 + $0x58] sm:$0xf]
      %v3934 = vld [vmem:[%s190 + $0x5c] sm:$0xf]
      %v3935 = vld [vmem:[%s190 + $0x60] sm:$0xf]
      %v3936 = vld [vmem:[%s190 + $0x64] sm:$0xf]
      %v3937 = vld [vmem:[%s190 + $0x68] sm:$0xf]
      %v3938 = vld [vmem:[%s190 + $0x6c] sm:$0xf]
      %v3939 = vld [vmem:[%s190 + $0x70] sm:$0xf]
      %v3940 = vld [vmem:[%s190 + $0x74] sm:$0xf]
      %v3941 = vld [vmem:[%s190 + $0x78] sm:$0xf]
      %v3942 = vld [vmem:[%s190 + $0x7c] sm:$0xf]
      %v3943 = vld [vmem:[%s190 + $0x80] sm:$0xf]
      %v3944 = vld [vmem:[%s190 + $0x84] sm:$0xf]
      %v3945 = vld [vmem:[%s190 + $0x88] sm:$0xf]
      %v3946 = vld [vmem:[%s190 + $0x8c] sm:$0xf]
      %v3947 = vld [vmem:[%s190 + $0x90] sm:$0xf]
      %v3948 = vld [vmem:[%s190 + $0x94] sm:$0xf]
      %v3949 = vld [vmem:[%s190 + $0x98] sm:$0xf]
      %v3950 = vld [vmem:[%s190 + $0x9c] sm:$0xf]
      %v3951 = vld [vmem:[%s190 + $0xa0] sm:$0x7]
      %s3952 = scalar_lea.vmem %s1, 14
      %v3953 = vld [vmem:[%s3952] sm:$0x3]
      %v3991 = vunpack.c.l.b16 %v3915
      %v3992 = vunpack.c.l.b16 %v3916
      %v3993 = vunpack.c.l.b16 %v3917
      %v3994 = vunpack.c.l.b16 %v3918
      %v3995 = vunpack.c.l.b16 %v3919
      %v3996 = vunpack.c.l.b16 %v3920
      %v3997 = vunpack.c.l.b16 %v3921
      %v3998 = vunpack.c.l.b16 %v3922
      %v3999 = vunpack.c.l.b16 %v3923
      %v4000 = vunpack.c.l.b16 %v3924
      %v4001 = vunpack.c.l.b16 %v3925
      %v4002 = vunpack.c.l.b16 %v3926
      %v4003 = vunpack.c.l.b16 %v3927
      %v4004 = vunpack.c.l.b16 %v3928
      %v4005 = vunpack.c.l.b16 %v3929
      %v4006 = vunpack.c.l.b16 %v3930
      %v4007 = vunpack.c.l.b16 %v3931
      %v4008 = vunpack.c.l.b16 %v3932
      %v4009 = vunpack.c.l.b16 %v3933
      %v4010 = vunpack.c.l.b16 %v3934
      %v4011 = vunpack.c.l.b16 %v3935
      %v4012 = vunpack.c.l.b16 %v3936
      %v4013 = vunpack.c.l.b16 %v3937
      %v4014 = vunpack.c.l.b16 %v3938
      %v4015 = vunpack.c.l.b16 %v3939
      %v4016 = vunpack.c.l.b16 %v3940
      %v4017 = vunpack.c.l.b16 %v3941
      %v4018 = vunpack.c.l.b16 %v3942
      %v4019 = vunpack.c.l.b16 %v3943
      %v4020 = vunpack.c.l.b16 %v3944
      %v4021 = vunpack.c.l.b16 %v3945
      %v4022 = vunpack.c.l.b16 %v3946
      %v4023 = vunpack.c.l.b16 %v3947
      %v4024 = vunpack.c.l.b16 %v3948
      %v4025 = vunpack.c.l.b16 %v3949
      %v4026 = vunpack.c.l.b16 %v3950
      %v4027 = vunpack.c.l.b16 %v3951
      %v4028 = vpack.c.b16 %v3992, %v3991
      %v4029 = vpack.c.b16 %v3994, %v3993
      %v4030 = vpack.c.b16 %v3996, %v3995
      %v4031 = vpack.c.b16 %v3998, %v3997
      %v4032 = vpack.c.b16 %v4000, %v3999
      %v4033 = vpack.c.b16 %v4002, %v4001
      %v4034 = vpack.c.b16 %v4004, %v4003
      %v4035 = vpack.c.b16 %v4006, %v4005
      %v4036 = vpack.c.b16 %v4008, %v4007
      %v4037 = vpack.c.b16 %v4010, %v4009
      %v4038 = vpack.c.b16 %v4012, %v4011
      %v4039 = vpack.c.b16 %v4014, %v4013
      %v4040 = vpack.c.b16 %v4016, %v4015
      %v4041 = vpack.c.b16 %v4018, %v4017
      %v4042 = vpack.c.b16 %v4020, %v4019
      %v4043 = vpack.c.b16 %v4022, %v4021
      %v4044 = vpack.c.b16 %v4024, %v4023
      %v4045 = vpack.c.b16 %v4026, %v4025
      %v4046 = vpack.c.b16 %v4027, %v4027
      %vm4047 = vsmask.f32 5376
      %v4049 = vshrl.u32 %v4028, 16
      %v4051 = vrot.slane %v4049, 2
      %v4052 = vshll.u32 %v4028, 16
      %v4054 = vrot.slane %v4052, 3
      %v4055 = vor.u32 %v4051, %v4054
      %v4057 = vshrl.u32 %v4029, 16
      %v4059 = vrot.slane %v4057, 2
      %v4060 = vshll.u32 %v4029, 16
      %v4062 = vrot.slane %v4060, 3
      %v4063 = vor.u32 %v4059, %v4062
      %v4064 = vsel %vm4047, %v4055, %v4063
      %v4066 = vshrl.u32 %v4030, 16
      %v4068 = vrot.slane %v4066, 2
      %v4069 = vshll.u32 %v4030, 16
      %v4071 = vrot.slane %v4069, 3
      %v4072 = vor.u32 %v4068, %v4071
      %v4073 = vsel %vm4047, %v4063, %v4072
      %v4075 = vshrl.u32 %v4031, 16
      %v4077 = vrot.slane %v4075, 2
      %v4078 = vshll.u32 %v4031, 16
      %v4080 = vrot.slane %v4078, 3
      %v4081 = vor.u32 %v4077, %v4080
      %v4082 = vsel %vm4047, %v4072, %v4081
      %v4084 = vshrl.u32 %v4032, 16
      %v4086 = vrot.slane %v4084, 2
      %v4087 = vshll.u32 %v4032, 16
      %v4089 = vrot.slane %v4087, 3
      %v4090 = vor.u32 %v4086, %v4089
      %v4091 = vsel %vm4047, %v4081, %v4090
      %v4093 = vshrl.u32 %v4033, 16
      %v4095 = vrot.slane %v4093, 2
      %v4096 = vshll.u32 %v4033, 16
      %v4098 = vrot.slane %v4096, 3
      %v4099 = vor.u32 %v4095, %v4098
      %v4100 = vsel %vm4047, %v4090, %v4099
      %v4102 = vshrl.u32 %v4034, 16
      %v4104 = vrot.slane %v4102, 2
      %v4105 = vshll.u32 %v4034, 16
      %v4107 = vrot.slane %v4105, 3
      %v4108 = vor.u32 %v4104, %v4107
      %v4109 = vsel %vm4047, %v4099, %v4108
      %v4111 = vshrl.u32 %v4035, 16
      %v4113 = vrot.slane %v4111, 2
      %v4114 = vshll.u32 %v4035, 16
      %v4116 = vrot.slane %v4114, 3
      %v4117 = vor.u32 %v4113, %v4116
      %v4118 = vsel %vm4047, %v4108, %v4117
      %v4120 = vshrl.u32 %v4036, 16
      %v4122 = vrot.slane %v4120, 2
      %v4123 = vshll.u32 %v4036, 16
      %v4125 = vrot.slane %v4123, 3
      %v4126 = vor.u32 %v4122, %v4125
      %v4127 = vsel %vm4047, %v4117, %v4126
      %v4129 = vshrl.u32 %v4037, 16
      %v4131 = vrot.slane %v4129, 2
      %v4132 = vshll.u32 %v4037, 16
      %v4134 = vrot.slane %v4132, 3
      %v4135 = vor.u32 %v4131, %v4134
      %v4136 = vsel %vm4047, %v4126, %v4135
      %v4138 = vshrl.u32 %v4038, 16
      %v4140 = vrot.slane %v4138, 2
      %v4141 = vshll.u32 %v4038, 16
      %v4143 = vrot.slane %v4141, 3
      %v4144 = vor.u32 %v4140, %v4143
      %v4145 = vsel %vm4047, %v4135, %v4144
      %v4147 = vshrl.u32 %v4039, 16
      %v4149 = vrot.slane %v4147, 2
      %v4150 = vshll.u32 %v4039, 16
      %v4152 = vrot.slane %v4150, 3
      %v4153 = vor.u32 %v4149, %v4152
      %v4154 = vsel %vm4047, %v4144, %v4153
      %v4156 = vshrl.u32 %v4040, 16
      %v4158 = vrot.slane %v4156, 2
      %v4159 = vshll.u32 %v4040, 16
      %v4161 = vrot.slane %v4159, 3
      %v4162 = vor.u32 %v4158, %v4161
      %v4163 = vsel %vm4047, %v4153, %v4162
      %v4165 = vshrl.u32 %v4041, 16
      %v4167 = vrot.slane %v4165, 2
      %v4168 = vshll.u32 %v4041, 16
      %v4170 = vrot.slane %v4168, 3
      %v4171 = vor.u32 %v4167, %v4170
      %v4172 = vsel %vm4047, %v4162, %v4171
      %v4174 = vshrl.u32 %v4042, 16
      %v4176 = vrot.slane %v4174, 2
      %v4177 = vshll.u32 %v4042, 16
      %v4179 = vrot.slane %v4177, 3
      %v4180 = vor.u32 %v4176, %v4179
      %v4181 = vsel %vm4047, %v4171, %v4180
      %v4183 = vshrl.u32 %v4043, 16
      %v4185 = vrot.slane %v4183, 2
      %v4186 = vshll.u32 %v4043, 16
      %v4188 = vrot.slane %v4186, 3
      %v4189 = vor.u32 %v4185, %v4188
      %v4190 = vsel %vm4047, %v4180, %v4189
      %v4192 = vshrl.u32 %v4044, 16
      %v4194 = vrot.slane %v4192, 2
      %v4195 = vshll.u32 %v4044, 16
      %v4197 = vrot.slane %v4195, 3
      %v4198 = vor.u32 %v4194, %v4197
      %v4199 = vsel %vm4047, %v4189, %v4198
      %v4201 = vshrl.u32 %v4045, 16
      %v4203 = vrot.slane %v4201, 2
      %v4204 = vshll.u32 %v4045, 16
      %v4206 = vrot.slane %v4204, 3
      %v4207 = vor.u32 %v4203, %v4206
      %v4208 = vsel %vm4047, %v4198, %v4207
      %v4210 = vshrl.u32 %v4046, 16
      %v4212 = vrot.slane %v4210, 2
      %v4213 = vshll.u32 %v4046, 16
      %v4215 = vrot.slane %v4213, 3
      %v4216 = vor.u32 %v4212, %v4215
      %v4217 = vsel %vm4047, %v4207, %v4216
      %v4219 = vsel %vm329, %v4064, 0
      %v4222 = vsel %vm329, %v4073, 0
      %v4225 = vsel %vm329, %v4082, 0
      %v4228 = vsel %vm329, %v4091, 0
      %v4231 = vsel %vm329, %v4100, 0
      %v4234 = vsel %vm329, %v4109, 0
      %v4237 = vsel %vm329, %v4118, 0
      %v4240 = vsel %vm329, %v4127, 0
      %v4243 = vsel %vm329, %v4136, 0
      %v4246 = vsel %vm329, %v4145, 0
      %v4249 = vsel %vm329, %v4154, 0
      %v4252 = vsel %vm329, %v4163, 0
      %v4255 = vsel %vm329, %v4172, 0
      %v4258 = vsel %vm329, %v4181, 0
      %v4261 = vsel %vm329, %v4190, 0
      %v4264 = vsel %vm329, %v4199, 0
      %v4267 = vsel %vm329, %v4208, 0
      %v4270 = vsel %vm329, %v4217, 0
      %v4273 = vsel %vm384, %v3953, 0
      %4275 = vmatprep.subr.bf16.mxu0 0
      %4276 = vmatpush1.bf16.msra.mxu0 %v4273
      %4277 = vmatprep.subr.bf16.mxu0 0
      %4278 = vmatpush1.bf16.msra.mxu0 0
      %4279 = vmatprep.subr.bf16.mxu0 0
      %4280 = vmatpush1.bf16.msra.mxu0 0
      %4281 = vmatprep.subr.bf16.mxu0 0
      %4282 = vmatpush1.bf16.msra.mxu0 0
      %4283 = vmatprep.subr.bf16.mxu0 0
      %4284 = vmatpush1.bf16.msra.mxu0 0
      %4285 = vmatprep.subr.bf16.mxu0 0
      %4286 = vmatpush1.bf16.msra.mxu0 0
      %4287 = vmatprep.subr.bf16.mxu0 0
      %4288 = vmatpush1.bf16.msra.mxu0 0
      %4289 = vmatprep.subr.bf16.mxu0 0
      %4290 = vmatpush1.bf16.msra.mxu0 0
      %4291 = vmatprep.subr.bf16.mxu0 0
      %4292 = vmatpush1.bf16.msra.mxu0 0
      %4293 = vmatprep.subr.bf16.mxu0 0
      %4294 = vmatpush1.bf16.msra.mxu0 0
      %4295 = vmatprep.subr.bf16.mxu0 0
      %4296 = vmatpush1.bf16.msra.mxu0 0
      %4297 = vmatprep.subr.bf16.mxu0 0
      %4298 = vmatpush1.bf16.msra.mxu0 0
      %4299 = vmatprep.subr.bf16.mxu0 0
      %4300 = vmatpush1.bf16.msra.mxu0 0
      %4301 = vmatprep.subr.bf16.mxu0 0
      %4302 = vmatpush1.bf16.msra.mxu0 0
      %4303 = vmatprep.subr.bf16.mxu0 0
      %4304 = vmatpush1.bf16.msra.mxu0 0
      %4305 = vmatprep.subr.bf16.mxu0 0
      %4306 = vmatpush1.bf16.msra.mxu0 0
      %4307 = vmatprep.mubr.bf16.mxu0 0
      %4308 = vmatmul.mubr.bf16.gmra.mrb[0].mxu0 %v4219
      %v4309 = vpop.f32.mrb[0].mxu0
      %v4310 = vadd.f32 0.0, %v4309
      %v4311 = vpop.f32.mrb[0].mxu0
      %v4312 = vpop.f32.mrb[0].mxu0
      %v4313 = vadd.f32 0.0, %v4312
      %v4314 = vpop.f32.mrb[0].mxu0
      %4315 = vmatprep.mubr.bf16.mxu0 0
      %4316 = vmatmul.mubr.bf16.gmra.mrb[0].mxu0 %v4222
      %v4317 = vpop.f32.mrb[0].mxu0
      %v4318 = vadd.f32 0.0, %v4317
      %v4319 = vpop.f32.mrb[0].mxu0
      %v4320 = vpop.f32.mrb[0].mxu0
      %v4321 = vadd.f32 0.0, %v4320
      %v4322 = vpop.f32.mrb[0].mxu0
      %4323 = vmatprep.mubr.bf16.mxu0 0
      %4324 = vmatmul.mubr.bf16.gmra.mrb[0].mxu0 %v4225
      %v4325 = vpop.f32.mrb[0].mxu0
      %v4326 = vadd.f32 0.0, %v4325
      %v4327 = vpop.f32.mrb[0].mxu0
      %v4328 = vpop.f32.mrb[0].mxu0
      %v4329 = vadd.f32 0.0, %v4328
      %v4330 = vpop.f32.mrb[0].mxu0
      %4331 = vmatprep.mubr.bf16.mxu0 0
      %4332 = vmatmul.mubr.bf16.gmra.mrb[0].mxu0 %v4228
      %v4333 = vpop.f32.mrb[0].mxu0
      %v4334 = vadd.f32 0.0, %v4333
      %v4335 = vpop.f32.mrb[0].mxu0
      %v4336 = vpop.f32.mrb[0].mxu0
      %v4337 = vadd.f32 0.0, %v4336
      %v4338 = vpop.f32.mrb[0].mxu0
      %4339 = vmatprep.mubr.bf16.mxu0 0
      %4340 = vmatmul.mubr.bf16.gmra.mrb[0].mxu0 %v4231
      %v4341 = vpop.f32.mrb[0].mxu0
      %v4342 = vadd.f32 0.0, %v4341
      %v4343 = vpop.f32.mrb[0].mxu0
      %v4344 = vpop.f32.mrb[0].mxu0
      %v4345 = vadd.f32 0.0, %v4344
      %v4346 = vpop.f32.mrb[0].mxu0
      %4347 = vmatprep.mubr.bf16.mxu0 0
      %4348 = vmatmul.mubr.bf16.gmra.mrb[0].mxu0 %v4234
      %v4349 = vpop.f32.mrb[0].mxu0
      %v4350 = vadd.f32 0.0, %v4349
      %v4351 = vpop.f32.mrb[0].mxu0
      %v4352 = vpop.f32.mrb[0].mxu0
      %v4353 = vadd.f32 0.0, %v4352
      %v4354 = vpop.f32.mrb[0].mxu0
      %4355 = vmatprep.mubr.bf16.mxu0 0
      %4356 = vmatmul.mubr.bf16.gmra.mrb[0].mxu0 %v4237
      %v4357 = vpop.f32.mrb[0].mxu0
      %v4358 = vadd.f32 0.0, %v4357
      %v4359 = vpop.f32.mrb[0].mxu0
      %v4360 = vpop.f32.mrb[0].mxu0
      %v4361 = vadd.f32 0.0, %v4360
      %v4362 = vpop.f32.mrb[0].mxu0
      %4363 = vmatprep.mubr.bf16.mxu0 0
      %4364 = vmatmul.mubr.bf16.gmra.mrb[0].mxu0 %v4240
      %v4365 = vpop.f32.mrb[0].mxu0
      %v4366 = vadd.f32 0.0, %v4365
      %v4367 = vpop.f32.mrb[0].mxu0
      %v4368 = vpop.f32.mrb[0].mxu0
      %v4369 = vadd.f32 0.0, %v4368
      %v4370 = vpop.f32.mrb[0].mxu0
      %4371 = vmatprep.mubr.bf16.mxu0 0
      %4372 = vmatmul.mubr.bf16.gmra.mrb[0].mxu0 %v4243
      %v4373 = vpop.f32.mrb[0].mxu0
      %v4374 = vadd.f32 0.0, %v4373
      %v4375 = vpop.f32.mrb[0].mxu0
      %v4376 = vpop.f32.mrb[0].mxu0
      %v4377 = vadd.f32 0.0, %v4376
      %v4378 = vpop.f32.mrb[0].mxu0
      %4379 = vmatprep.mubr.bf16.mxu0 0
      %4380 = vmatmul.mubr.bf16.gmra.mrb[0].mxu0 %v4246
      %v4381 = vpop.f32.mrb[0].mxu0
      %v4382 = vadd.f32 0.0, %v4381
      %v4383 = vpop.f32.mrb[0].mxu0
      %v4384 = vpop.f32.mrb[0].mxu0
      %v4385 = vadd.f32 0.0, %v4384
      %v4386 = vpop.f32.mrb[0].mxu0
      %4387 = vmatprep.mubr.bf16.mxu0 0
      %4388 = vmatmul.mubr.bf16.gmra.mrb[0].mxu0 %v4249
      %v4389 = vpop.f32.mrb[0].mxu0
      %v4390 = vadd.f32 0.0, %v4389
      %v4391 = vpop.f32.mrb[0].mxu0
      %v4392 = vpop.f32.mrb[0].mxu0
      %v4393 = vadd.f32 0.0, %v4392
      %v4394 = vpop.f32.mrb[0].mxu0
      %4395 = vmatprep.mubr.bf16.mxu0 0
      %4396 = vmatmul.mubr.bf16.gmra.mrb[0].mxu0 %v4252
      %v4397 = vpop.f32.mrb[0].mxu0
      %v4398 = vadd.f32 0.0, %v4397
      %v4399 = vpop.f32.mrb[0].mxu0
      %v4400 = vpop.f32.mrb[0].mxu0
      %v4401 = vadd.f32 0.0, %v4400
      %v4402 = vpop.f32.mrb[0].mxu0
      %4403 = vmatprep.mubr.bf16.mxu0 0
      %4404 = vmatmul.mubr.bf16.gmra.mrb[0].mxu0 %v4255
      %v4405 = vpop.f32.mrb[0].mxu0
      %v4406 = vadd.f32 0.0, %v4405
      %v4407 = vpop.f32.mrb[0].mxu0
      %v4408 = vpop.f32.mrb[0].mxu0
      %v4409 = vadd.f32 0.0, %v4408
      %v4410 = vpop.f32.mrb[0].mxu0
      %4411 = vmatprep.mubr.bf16.mxu0 0
      %4412 = vmatmul.mubr.bf16.gmra.mrb[0].mxu0 %v4258
      %v4413 = vpop.f32.mrb[0].mxu0
      %v4414 = vadd.f32 0.0, %v4413
      %v4415 = vpop.f32.mrb[0].mxu0
      %v4416 = vpop.f32.mrb[0].mxu0
      %v4417 = vadd.f32 0.0, %v4416
      %v4418 = vpop.f32.mrb[0].mxu0
      %4419 = vmatprep.mubr.bf16.mxu0 0
      %4420 = vmatmul.mubr.bf16.gmra.mrb[0].mxu0 %v4261
      %v4421 = vpop.f32.mrb[0].mxu0
      %v4422 = vadd.f32 0.0, %v4421
      %v4423 = vpop.f32.mrb[0].mxu0
      %v4424 = vpop.f32.mrb[0].mxu0
      %v4425 = vadd.f32 0.0, %v4424
      %v4426 = vpop.f32.mrb[0].mxu0
      %4427 = vmatprep.mubr.bf16.mxu0 0
      %4428 = vmatmul.mubr.bf16.gmra.mrb[0].mxu0 %v4264
      %v4429 = vpop.f32.mrb[0].mxu0
      %v4430 = vadd.f32 0.0, %v4429
      %v4431 = vpop.f32.mrb[0].mxu0
      %v4432 = vpop.f32.mrb[0].mxu0
      %v4433 = vadd.f32 0.0, %v4432
      %v4434 = vpop.f32.mrb[0].mxu0
      %4435 = vmatprep.mubr.bf16.mxu0 0
      %4436 = vmatmul.mubr.bf16.gmra.mrb[0].mxu0 %v4267
      %v4437 = vpop.f32.mrb[0].mxu0
      %v4438 = vadd.f32 0.0, %v4437
      %v4439 = vpop.f32.mrb[0].mxu0
      %v4440 = vpop.f32.mrb[0].mxu0
      %v4441 = vadd.f32 0.0, %v4440
      %v4442 = vpop.f32.mrb[0].mxu0
      %4443 = vmatprep.mubr.bf16.mxu0 0
      %4444 = vmatmul.mubr.bf16.gmra.mrb[0].mxu0 %v4270
      %v4445 = vpop.f32.mrb[0].mxu0
      %v4446 = vadd.f32 0.0, %v4445
      %v4447 = vpop.f32.mrb[0].mxu0
      %v4448 = vpop.f32.mrb[0].mxu0
      %v4449 = vadd.f32 0.0, %v4448
      %v4450 = vpop.f32.mrb[0].mxu0
      %4451 = vdwg.mxu0
      %v4452 = vld [vmem:[%s195] sm:$0xff]
      %v4453 = vld [vmem:[%s195 + $0x8] sm:$0xff]
      %v4454 = vld [vmem:[%s195 + $0x10] sm:$0xff]
      %v4455 = vld [vmem:[%s195 + $0x18] sm:$0xff]
      %v4456 = vld [vmem:[%s195 + $0x20] sm:$0xff]
      %v4457 = vld [vmem:[%s195 + $0x28] sm:$0xff]
      %v4458 = vld [vmem:[%s195 + $0x30] sm:$0xff]
      %v4459 = vld [vmem:[%s195 + $0x38] sm:$0xff]
      %v4460 = vld [vmem:[%s195 + $0x40] sm:$0xff]
      %v4461 = vld [vmem:[%s195 + $0x48] sm:$0xff]
      %v4462 = vld [vmem:[%s195 + $0x50] sm:$0xff]
      %v4463 = vld [vmem:[%s195 + $0x58] sm:$0xff]
      %v4464 = vld [vmem:[%s195 + $0x60] sm:$0xff]
      %v4465 = vld [vmem:[%s195 + $0x68] sm:$0xff]
      %v4466 = vld [vmem:[%s195 + $0x70] sm:$0xff]
      %v4467 = vld [vmem:[%s195 + $0x78] sm:$0xff]
      %v4468 = vld [vmem:[%s195 + $0x80] sm:$0xff]
      %v4469 = vld [vmem:[%s195 + $0x88] sm:$0xff]
      %v4470 = vld [vmem:[%s195 + $0x90] sm:$0xff]
      %v4471 = vld [vmem:[%s195 + $0x98] sm:$0xff]
      %v4472 = vld [vmem:[%s195 + $0xa0] sm:$0xff]
      %v4473 = vld [vmem:[%s195 + $0xa8] sm:$0xff]
      %v4474 = vld [vmem:[%s195 + $0xb0] sm:$0xff]
      %v4475 = vld [vmem:[%s195 + $0xb8] sm:$0xff]
      %v4476 = vld [vmem:[%s195 + $0xc0] sm:$0xff]
      %v4477 = vld [vmem:[%s195 + $0xc8] sm:$0xff]
      %v4478 = vld [vmem:[%s195 + $0xd0] sm:$0xff]
      %v4479 = vld [vmem:[%s195 + $0xd8] sm:$0xff]
      %v4480 = vld [vmem:[%s195 + $0xe0] sm:$0xff]
      %v4481 = vld [vmem:[%s195 + $0xe8] sm:$0xff]
      %v4482 = vld [vmem:[%s195 + $0xf0] sm:$0xff]
      %v4483 = vld [vmem:[%s195 + $0xf8] sm:$0xff]
      %v4484 = vld [vmem:[%s195 + $0x100] sm:$0xff]
      %v4485 = vld [vmem:[%s195 + $0x108] sm:$0xff]
      %v4486 = vld [vmem:[%s195 + $0x110] sm:$0xff]
      %v4487 = vld [vmem:[%s195 + $0x118] sm:$0xff]
      %v4488 = vadd.f32 %v4452, %v4310
      %v4489 = vadd.f32 %v4453, %v4313
      %v4490 = vadd.f32 %v4454, %v4318
      %v4491 = vadd.f32 %v4455, %v4321
      %v4492 = vadd.f32 %v4456, %v4326
      %v4493 = vadd.f32 %v4457, %v4329
      %v4494 = vadd.f32 %v4458, %v4334
      %v4495 = vadd.f32 %v4459, %v4337
      %v4496 = vadd.f32 %v4460, %v4342
      %v4497 = vadd.f32 %v4461, %v4345
      %v4498 = vadd.f32 %v4462, %v4350
      %v4499 = vadd.f32 %v4463, %v4353
      %v4500 = vadd.f32 %v4464, %v4358
      %v4501 = vadd.f32 %v4465, %v4361
      %v4502 = vadd.f32 %v4466, %v4366
      %v4503 = vadd.f32 %v4467, %v4369
      %v4504 = vadd.f32 %v4468, %v4374
      %v4505 = vadd.f32 %v4469, %v4377
      %v4506 = vadd.f32 %v4470, %v4382
      %v4507 = vadd.f32 %v4471, %v4385
      %v4508 = vadd.f32 %v4472, %v4390
      %v4509 = vadd.f32 %v4473, %v4393
      %v4510 = vadd.f32 %v4474, %v4398
      %v4511 = vadd.f32 %v4475, %v4401
      %v4512 = vadd.f32 %v4476, %v4406
      %v4513 = vadd.f32 %v4477, %v4409
      %v4514 = vadd.f32 %v4478, %v4414
      %v4515 = vadd.f32 %v4479, %v4417
      %v4516 = vadd.f32 %v4480, %v4422
      %v4517 = vadd.f32 %v4481, %v4425
      %v4518 = vadd.f32 %v4482, %v4430
      %v4519 = vadd.f32 %v4483, %v4433
      %v4520 = vadd.f32 %v4484, %v4438
      %v4521 = vadd.f32 %v4485, %v4441
      %v4522 = vadd.f32 %v4486, %v4446
      %v4523 = vadd.f32 %v4487, %v4449
      %4524 = vst [vmem:[%s195] sm:$0xff] %v4488
      %4525 = vst [vmem:[%s195 + $0x8] sm:$0xff] %v4489
      %4526 = vst [vmem:[%s195 + $0x10] sm:$0xff] %v4490
      %4527 = vst [vmem:[%s195 + $0x18] sm:$0xff] %v4491
      %4528 = vst [vmem:[%s195 + $0x20] sm:$0xff] %v4492
      %4529 = vst [vmem:[%s195 + $0x28] sm:$0xff] %v4493
      %4530 = vst [vmem:[%s195 + $0x30] sm:$0xff] %v4494
      %4531 = vst [vmem:[%s195 + $0x38] sm:$0xff] %v4495
      %4532 = vst [vmem:[%s195 + $0x40] sm:$0xff] %v4496
      %4533 = vst [vmem:[%s195 + $0x48] sm:$0xff] %v4497
      %4534 = vst [vmem:[%s195 + $0x50] sm:$0xff] %v4498
      %4535 = vst [vmem:[%s195 + $0x58] sm:$0xff] %v4499
      %4536 = vst [vmem:[%s195 + $0x60] sm:$0xff] %v4500
      %4537 = vst [vmem:[%s195 + $0x68] sm:$0xff] %v4501
      %4538 = vst [vmem:[%s195 + $0x70] sm:$0xff] %v4502
      %4539 = vst [vmem:[%s195 + $0x78] sm:$0xff] %v4503
      %4540 = vst [vmem:[%s195 + $0x80] sm:$0xff] %v4504
      %4541 = vst [vmem:[%s195 + $0x88] sm:$0xff] %v4505
      %4542 = vst [vmem:[%s195 + $0x90] sm:$0xff] %v4506
      %4543 = vst [vmem:[%s195 + $0x98] sm:$0xff] %v4507
      %4544 = vst [vmem:[%s195 + $0xa0] sm:$0xff] %v4508
      %4545 = vst [vmem:[%s195 + $0xa8] sm:$0xff] %v4509
      %4546 = vst [vmem:[%s195 + $0xb0] sm:$0xff] %v4510
      %4547 = vst [vmem:[%s195 + $0xb8] sm:$0xff] %v4511
      %4548 = vst [vmem:[%s195 + $0xc0] sm:$0xff] %v4512
      %4549 = vst [vmem:[%s195 + $0xc8] sm:$0xff] %v4513
      %4550 = vst [vmem:[%s195 + $0xd0] sm:$0xff] %v4514
      %4551 = vst [vmem:[%s195 + $0xd8] sm:$0xff] %v4515
      %4552 = vst [vmem:[%s195 + $0xe0] sm:$0xff] %v4516
      %4553 = vst [vmem:[%s195 + $0xe8] sm:$0xff] %v4517
      %4554 = vst [vmem:[%s195 + $0xf0] sm:$0xff] %v4518
      %4555 = vst [vmem:[%s195 + $0xf8] sm:$0xff] %v4519
      %4556 = vst [vmem:[%s195 + $0x100] sm:$0xff] %v4520
      %4557 = vst [vmem:[%s195 + $0x108] sm:$0xff] %v4521
      %4558 = vst [vmem:[%s195 + $0x110] sm:$0xff] %v4522
      %4559 = vst [vmem:[%s195 + $0x118] sm:$0xff] %v4523
      %v4560 = vld [vmem:[%s190 + $0x10] sm:$0x8]
      %v4561 = vld [vmem:[%s190 + $0x14] sm:$0xf]
      %v4562 = vld [vmem:[%s190 + $0x18] sm:$0xf]
      %v4563 = vld [vmem:[%s190 + $0x1c] sm:$0xf]
      %v4564 = vld [vmem:[%s190 + $0x20] sm:$0xf]
      %v4565 = vld [vmem:[%s190 + $0x24] sm:$0xf]
      %v4566 = vld [vmem:[%s190 + $0x28] sm:$0xf]
      %v4567 = vld [vmem:[%s190 + $0x2c] sm:$0xf]
      %v4568 = vld [vmem:[%s190 + $0x30] sm:$0xf]
      %v4569 = vld [vmem:[%s190 + $0x34] sm:$0xf]
      %v4570 = vld [vmem:[%s190 + $0x38] sm:$0xf]
      %v4571 = vld [vmem:[%s190 + $0x3c] sm:$0xf]
      %v4572 = vld [vmem:[%s190 + $0x40] sm:$0xf]
      %v4573 = vld [vmem:[%s190 + $0x44] sm:$0xf]
      %v4574 = vld [vmem:[%s190 + $0x48] sm:$0xf]
      %v4575 = vld [vmem:[%s190 + $0x4c] sm:$0xf]
      %v4576 = vld [vmem:[%s190 + $0x50] sm:$0xf]
      %v4577 = vld [vmem:[%s190 + $0x54] sm:$0xf]
      %v4578 = vld [vmem:[%s190 + $0x58] sm:$0xf]
      %v4579 = vld [vmem:[%s190 + $0x5c] sm:$0xf]
      %v4580 = vld [vmem:[%s190 + $0x60] sm:$0xf]
      %v4581 = vld [vmem:[%s190 + $0x64] sm:$0xf]
      %v4582 = vld [vmem:[%s190 + $0x68] sm:$0xf]
      %v4583 = vld [vmem:[%s190 + $0x6c] sm:$0xf]
      %v4584 = vld [vmem:[%s190 + $0x70] sm:$0xf]
      %v4585 = vld [vmem:[%s190 + $0x74] sm:$0xf]
      %v4586 = vld [vmem:[%s190 + $0x78] sm:$0xf]
      %v4587 = vld [vmem:[%s190 + $0x7c] sm:$0xf]
      %v4588 = vld [vmem:[%s190 + $0x80] sm:$0xf]
      %v4589 = vld [vmem:[%s190 + $0x84] sm:$0xf]
      %v4590 = vld [vmem:[%s190 + $0x88] sm:$0xf]
      %v4591 = vld [vmem:[%s190 + $0x8c] sm:$0xf]
      %v4592 = vld [vmem:[%s190 + $0x90] sm:$0xf]
      %v4593 = vld [vmem:[%s190 + $0x94] sm:$0xf]
      %v4594 = vld [vmem:[%s190 + $0x98] sm:$0xf]
      %v4595 = vld [vmem:[%s190 + $0x9c] sm:$0xf]
      %v4596 = vld [vmem:[%s190 + $0xa0] sm:$0x7]
      %s4597 = scalar_lea.vmem %s1, 16
      %v4598 = vld [vmem:[%s4597] sm:$0x3]
      %v4636 = vunpack.c.l.b16 %v4560
      %v4637 = vunpack.c.l.b16 %v4561
      %v4638 = vunpack.c.l.b16 %v4562
      %v4639 = vunpack.c.l.b16 %v4563
      %v4640 = vunpack.c.l.b16 %v4564
      %v4641 = vunpack.c.l.b16 %v4565
      %v4642 = vunpack.c.l.b16 %v4566
      %v4643 = vunpack.c.l.b16 %v4567
      %v4644 = vunpack.c.l.b16 %v4568
      %v4645 = vunpack.c.l.b16 %v4569
      %v4646 = vunpack.c.l.b16 %v4570
      %v4647 = vunpack.c.l.b16 %v4571
      %v4648 = vunpack.c.l.b16 %v4572
      %v4649 = vunpack.c.l.b16 %v4573
      %v4650 = vunpack.c.l.b16 %v4574
      %v4651 = vunpack.c.l.b16 %v4575
      %v4652 = vunpack.c.l.b16 %v4576
      %v4653 = vunpack.c.l.b16 %v4577
      %v4654 = vunpack.c.l.b16 %v4578
      %v4655 = vunpack.c.l.b16 %v4579
      %v4656 = vunpack.c.l.b16 %v4580
      %v4657 = vunpack.c.l.b16 %v4581
      %v4658 = vunpack.c.l.b16 %v4582
      %v4659 = vunpack.c.l.b16 %v4583
      %v4660 = vunpack.c.l.b16 %v4584
      %v4661 = vunpack.c.l.b16 %v4585
      %v4662 = vunpack.c.l.b16 %v4586
      %v4663 = vunpack.c.l.b16 %v4587
      %v4664 = vunpack.c.l.b16 %v4588
      %v4665 = vunpack.c.l.b16 %v4589
      %v4666 = vunpack.c.l.b16 %v4590
      %v4667 = vunpack.c.l.b16 %v4591
      %v4668 = vunpack.c.l.b16 %v4592
      %v4669 = vunpack.c.l.b16 %v4593
      %v4670 = vunpack.c.l.b16 %v4594
      %v4671 = vunpack.c.l.b16 %v4595
      %v4672 = vunpack.c.l.b16 %v4596
      %v4673 = vpack.c.b16 %v4637, %v4636
      %v4674 = vpack.c.b16 %v4639, %v4638
      %v4675 = vpack.c.b16 %v4641, %v4640
      %v4676 = vpack.c.b16 %v4643, %v4642
      %v4677 = vpack.c.b16 %v4645, %v4644
      %v4678 = vpack.c.b16 %v4647, %v4646
      %v4679 = vpack.c.b16 %v4649, %v4648
      %v4680 = vpack.c.b16 %v4651, %v4650
      %v4681 = vpack.c.b16 %v4653, %v4652
      %v4682 = vpack.c.b16 %v4655, %v4654
      %v4683 = vpack.c.b16 %v4657, %v4656
      %v4684 = vpack.c.b16 %v4659, %v4658
      %v4685 = vpack.c.b16 %v4661, %v4660
      %v4686 = vpack.c.b16 %v4663, %v4662
      %v4687 = vpack.c.b16 %v4665, %v4664
      %v4688 = vpack.c.b16 %v4667, %v4666
      %v4689 = vpack.c.b16 %v4669, %v4668
      %v4690 = vpack.c.b16 %v4671, %v4670
      %v4691 = vpack.c.b16 %v4672, %v4672
      %vm4692 = vcmask 1044480
      %v4693 = vrot.slane %v4673, 3
      %v4694 = vrot.slane %v4674, 3
      %v4695 = vsel %vm4692, %v4693, %v4694
      %v4696 = vrot.slane %v4675, 3
      %v4697 = vsel %vm4692, %v4694, %v4696
      %v4698 = vrot.slane %v4676, 3
      %v4699 = vsel %vm4692, %v4696, %v4698
      %v4700 = vrot.slane %v4677, 3
      %v4701 = vsel %vm4692, %v4698, %v4700
      %v4702 = vrot.slane %v4678, 3
      %v4703 = vsel %vm4692, %v4700, %v4702
      %v4704 = vrot.slane %v4679, 3
      %v4705 = vsel %vm4692, %v4702, %v4704
      %v4706 = vrot.slane %v4680, 3
      %v4707 = vsel %vm4692, %v4704, %v4706
      %v4708 = vrot.slane %v4681, 3
      %v4709 = vsel %vm4692, %v4706, %v4708
      %v4710 = vrot.slane %v4682, 3
      %v4711 = vsel %vm4692, %v4708, %v4710
      %v4712 = vrot.slane %v4683, 3
      %v4713 = vsel %vm4692, %v4710, %v4712
      %v4714 = vrot.slane %v4684, 3
      %v4715 = vsel %vm4692, %v4712, %v4714
      %v4716 = vrot.slane %v4685, 3
      %v4717 = vsel %vm4692, %v4714, %v4716
      %v4718 = vrot.slane %v4686, 3
      %v4719 = vsel %vm4692, %v4716, %v4718
      %v4720 = vrot.slane %v4687, 3
      %v4721 = vsel %vm4692, %v4718, %v4720
      %v4722 = vrot.slane %v4688, 3
      %v4723 = vsel %vm4692, %v4720, %v4722
      %v4724 = vrot.slane %v4689, 3
      %v4725 = vsel %vm4692, %v4722, %v4724
      %v4726 = vrot.slane %v4690, 3
      %v4727 = vsel %vm4692, %v4724, %v4726
      %v4728 = vrot.slane %v4691, 3
      %v4729 = vsel %vm4692, %v4726, %v4728
      %v4731 = vsel %vm329, %v4695, 0
      %v4734 = vsel %vm329, %v4697, 0
      %v4737 = vsel %vm329, %v4699, 0
      %v4740 = vsel %vm329, %v4701, 0
      %v4743 = vsel %vm329, %v4703, 0
      %v4746 = vsel %vm329, %v4705, 0
      %v4749 = vsel %vm329, %v4707, 0
      %v4752 = vsel %vm329, %v4709, 0
      %v4755 = vsel %vm329, %v4711, 0
      %v4758 = vsel %vm329, %v4713, 0
      %v4761 = vsel %vm329, %v4715, 0
      %v4764 = vsel %vm329, %v4717, 0
      %v4767 = vsel %vm329, %v4719, 0
      %v4770 = vsel %vm329, %v4721, 0
      %v4773 = vsel %vm329, %v4723, 0
      %v4776 = vsel %vm329, %v4725, 0
      %v4779 = vsel %vm329, %v4727, 0
      %v4782 = vsel %vm329, %v4729, 0
      %v4785 = vsel %vm384, %v4598, 0
      %4787 = vmatprep.subr.bf16.mxu0 0
      %4788 = vmatpush1.bf16.msra.mxu0 %v4785
      %4789 = vmatprep.subr.bf16.mxu0 0
      %4790 = vmatpush1.bf16.msra.mxu0 0
      %4791 = vmatprep.subr.bf16.mxu0 0
      %4792 = vmatpush1.bf16.msra.mxu0 0
      %4793 = vmatprep.subr.bf16.mxu0 0
      %4794 = vmatpush1.bf16.msra.mxu0 0
      %4795 = vmatprep.subr.bf16.mxu0 0
      %4796 = vmatpush1.bf16.msra.mxu0 0
      %4797 = vmatprep.subr.bf16.mxu0 0
      %4798 = vmatpush1.bf16.msra.mxu0 0
      %4799 = vmatprep.subr.bf16.mxu0 0
      %4800 = vmatpush1.bf16.msra.mxu0 0
      %4801 = vmatprep.subr.bf16.mxu0 0
      %4802 = vmatpush1.bf16.msra.mxu0 0
      %4803 = vmatprep.subr.bf16.mxu0 0
      %4804 = vmatpush1.bf16.msra.mxu0 0
      %4805 = vmatprep.subr.bf16.mxu0 0
      %4806 = vmatpush1.bf16.msra.mxu0 0
      %4807 = vmatprep.subr.bf16.mxu0 0
      %4808 = vmatpush1.bf16.msra.mxu0 0
      %4809 = vmatprep.subr.bf16.mxu0 0
      %4810 = vmatpush1.bf16.msra.mxu0 0
      %4811 = vmatprep.subr.bf16.mxu0 0
      %4812 = vmatpush1.bf16.msra.mxu0 0
      %4813 = vmatprep.subr.bf16.mxu0 0
      %4814 = vmatpush1.bf16.msra.mxu0 0
      %4815 = vmatprep.subr.bf16.mxu0 0
      %4816 = vmatpush1.bf16.msra.mxu0 0
      %4817 = vmatprep.subr.bf16.mxu0 0
      %4818 = vmatpush1.bf16.msra.mxu0 0
      %4819 = vmatprep.mubr.bf16.mxu0 0
      %4820 = vmatmul.mubr.bf16.gmra.mrb[0].mxu0 %v4731
      %v4821 = vpop.f32.mrb[0].mxu0
      %v4822 = vadd.f32 0.0, %v4821
      %v4823 = vpop.f32.mrb[0].mxu0
      %v4824 = vpop.f32.mrb[0].mxu0
      %v4825 = vadd.f32 0.0, %v4824
      %v4826 = vpop.f32.mrb[0].mxu0
      %4827 = vmatprep.mubr.bf16.mxu0 0
      %4828 = vmatmul.mubr.bf16.gmra.mrb[0].mxu0 %v4734
      %v4829 = vpop.f32.mrb[0].mxu0
      %v4830 = vadd.f32 0.0, %v4829
      %v4831 = vpop.f32.mrb[0].mxu0
      %v4832 = vpop.f32.mrb[0].mxu0
      %v4833 = vadd.f32 0.0, %v4832
      %v4834 = vpop.f32.mrb[0].mxu0
      %4835 = vmatprep.mubr.bf16.mxu0 0
      %4836 = vmatmul.mubr.bf16.gmra.mrb[0].mxu0 %v4737
      %v4837 = vpop.f32.mrb[0].mxu0
      %v4838 = vadd.f32 0.0, %v4837
      %v4839 = vpop.f32.mrb[0].mxu0
      %v4840 = vpop.f32.mrb[0].mxu0
      %v4841 = vadd.f32 0.0, %v4840
      %v4842 = vpop.f32.mrb[0].mxu0
      %4843 = vmatprep.mubr.bf16.mxu0 0
      %4844 = vmatmul.mubr.bf16.gmra.mrb[0].mxu0 %v4740
      %v4845 = vpop.f32.mrb[0].mxu0
      %v4846 = vadd.f32 0.0, %v4845
      %v4847 = vpop.f32.mrb[0].mxu0
      %v4848 = vpop.f32.mrb[0].mxu0
      %v4849 = vadd.f32 0.0, %v4848
      %v4850 = vpop.f32.mrb[0].mxu0
      %4851 = vmatprep.mubr.bf16.mxu0 0
      %4852 = vmatmul.mubr.bf16.gmra.mrb[0].mxu0 %v4743
      %v4853 = vpop.f32.mrb[0].mxu0
      %v4854 = vadd.f32 0.0, %v4853
      %v4855 = vpop.f32.mrb[0].mxu0
      %v4856 = vpop.f32.mrb[0].mxu0
      %v4857 = vadd.f32 0.0, %v4856
      %v4858 = vpop.f32.mrb[0].mxu0
      %4859 = vmatprep.mubr.bf16.mxu0 0
      %4860 = vmatmul.mubr.bf16.gmra.mrb[0].mxu0 %v4746
      %v4861 = vpop.f32.mrb[0].mxu0
      %v4862 = vadd.f32 0.0, %v4861
      %v4863 = vpop.f32.mrb[0].mxu0
      %v4864 = vpop.f32.mrb[0].mxu0
      %v4865 = vadd.f32 0.0, %v4864
      %v4866 = vpop.f32.mrb[0].mxu0
      %4867 = vmatprep.mubr.bf16.mxu0 0
      %4868 = vmatmul.mubr.bf16.gmra.mrb[0].mxu0 %v4749
      %v4869 = vpop.f32.mrb[0].mxu0
      %v4870 = vadd.f32 0.0, %v4869
      %v4871 = vpop.f32.mrb[0].mxu0
      %v4872 = vpop.f32.mrb[0].mxu0
      %v4873 = vadd.f32 0.0, %v4872
      %v4874 = vpop.f32.mrb[0].mxu0
      %4875 = vmatprep.mubr.bf16.mxu0 0
      %4876 = vmatmul.mubr.bf16.gmra.mrb[0].mxu0 %v4752
      %v4877 = vpop.f32.mrb[0].mxu0
      %v4878 = vadd.f32 0.0, %v4877
      %v4879 = vpop.f32.mrb[0].mxu0
      %v4880 = vpop.f32.mrb[0].mxu0
      %v4881 = vadd.f32 0.0, %v4880
      %v4882 = vpop.f32.mrb[0].mxu0
      %4883 = vmatprep.mubr.bf16.mxu0 0
      %4884 = vmatmul.mubr.bf16.gmra.mrb[0].mxu0 %v4755
      %v4885 = vpop.f32.mrb[0].mxu0
      %v4886 = vadd.f32 0.0, %v4885
      %v4887 = vpop.f32.mrb[0].mxu0
      %v4888 = vpop.f32.mrb[0].mxu0
      %v4889 = vadd.f32 0.0, %v4888
      %v4890 = vpop.f32.mrb[0].mxu0
      %4891 = vmatprep.mubr.bf16.mxu0 0
      %4892 = vmatmul.mubr.bf16.gmra.mrb[0].mxu0 %v4758
      %v4893 = vpop.f32.mrb[0].mxu0
      %v4894 = vadd.f32 0.0, %v4893
      %v4895 = vpop.f32.mrb[0].mxu0
      %v4896 = vpop.f32.mrb[0].mxu0
      %v4897 = vadd.f32 0.0, %v4896
      %v4898 = vpop.f32.mrb[0].mxu0
      %4899 = vmatprep.mubr.bf16.mxu0 0
      %4900 = vmatmul.mubr.bf16.gmra.mrb[0].mxu0 %v4761
      %v4901 = vpop.f32.mrb[0].mxu0
      %v4902 = vadd.f32 0.0, %v4901
      %v4903 = vpop.f32.mrb[0].mxu0
      %v4904 = vpop.f32.mrb[0].mxu0
      %v4905 = vadd.f32 0.0, %v4904
      %v4906 = vpop.f32.mrb[0].mxu0
      %4907 = vmatprep.mubr.bf16.mxu0 0
      %4908 = vmatmul.mubr.bf16.gmra.mrb[0].mxu0 %v4764
      %v4909 = vpop.f32.mrb[0].mxu0
      %v4910 = vadd.f32 0.0, %v4909
      %v4911 = vpop.f32.mrb[0].mxu0
      %v4912 = vpop.f32.mrb[0].mxu0
      %v4913 = vadd.f32 0.0, %v4912
      %v4914 = vpop.f32.mrb[0].mxu0
      %4915 = vmatprep.mubr.bf16.mxu0 0
      %4916 = vmatmul.mubr.bf16.gmra.mrb[0].mxu0 %v4767
      %v4917 = vpop.f32.mrb[0].mxu0
      %v4918 = vadd.f32 0.0, %v4917
      %v4919 = vpop.f32.mrb[0].mxu0
      %v4920 = vpop.f32.mrb[0].mxu0
      %v4921 = vadd.f32 0.0, %v4920
      %v4922 = vpop.f32.mrb[0].mxu0
      %4923 = vmatprep.mubr.bf16.mxu0 0
      %4924 = vmatmul.mubr.bf16.gmra.mrb[0].mxu0 %v4770
      %v4925 = vpop.f32.mrb[0].mxu0
      %v4926 = vadd.f32 0.0, %v4925
      %v4927 = vpop.f32.mrb[0].mxu0
      %v4928 = vpop.f32.mrb[0].mxu0
      %v4929 = vadd.f32 0.0, %v4928
      %v4930 = vpop.f32.mrb[0].mxu0
      %4931 = vmatprep.mubr.bf16.mxu0 0
      %4932 = vmatmul.mubr.bf16.gmra.mrb[0].mxu0 %v4773
      %v4933 = vpop.f32.mrb[0].mxu0
      %v4934 = vadd.f32 0.0, %v4933
      %v4935 = vpop.f32.mrb[0].mxu0
      %v4936 = vpop.f32.mrb[0].mxu0
      %v4937 = vadd.f32 0.0, %v4936
      %v4938 = vpop.f32.mrb[0].mxu0
      %4939 = vmatprep.mubr.bf16.mxu0 0
      %4940 = vmatmul.mubr.bf16.gmra.mrb[0].mxu0 %v4776
      %v4941 = vpop.f32.mrb[0].mxu0
      %v4942 = vadd.f32 0.0, %v4941
      %v4943 = vpop.f32.mrb[0].mxu0
      %v4944 = vpop.f32.mrb[0].mxu0
      %v4945 = vadd.f32 0.0, %v4944
      %v4946 = vpop.f32.mrb[0].mxu0
      %4947 = vmatprep.mubr.bf16.mxu0 0
      %4948 = vmatmul.mubr.bf16.gmra.mrb[0].mxu0 %v4779
      %v4949 = vpop.f32.mrb[0].mxu0
      %v4950 = vadd.f32 0.0, %v4949
      %v4951 = vpop.f32.mrb[0].mxu0
      %v4952 = vpop.f32.mrb[0].mxu0
      %v4953 = vadd.f32 0.0, %v4952
      %v4954 = vpop.f32.mrb[0].mxu0
      %4955 = vmatprep.mubr.bf16.mxu0 0
      %4956 = vmatmul.mubr.bf16.gmra.mrb[0].mxu0 %v4782
      %v4957 = vpop.f32.mrb[0].mxu0
      %v4958 = vadd.f32 0.0, %v4957
      %v4959 = vpop.f32.mrb[0].mxu0
      %v4960 = vpop.f32.mrb[0].mxu0
      %v4961 = vadd.f32 0.0, %v4960
      %v4962 = vpop.f32.mrb[0].mxu0
      %4963 = vdwg.mxu0
      %v4964 = vld [vmem:[%s195] sm:$0xff]
      %v4965 = vld [vmem:[%s195 + $0x8] sm:$0xff]
      %v4966 = vld [vmem:[%s195 + $0x10] sm:$0xff]
      %v4967 = vld [vmem:[%s195 + $0x18] sm:$0xff]
      %v4968 = vld [vmem:[%s195 + $0x20] sm:$0xff]
      %v4969 = vld [vmem:[%s195 + $0x28] sm:$0xff]
      %v4970 = vld [vmem:[%s195 + $0x30] sm:$0xff]
      %v4971 = vld [vmem:[%s195 + $0x38] sm:$0xff]
      %v4972 = vld [vmem:[%s195 + $0x40] sm:$0xff]
      %v4973 = vld [vmem:[%s195 + $0x48] sm:$0xff]
      %v4974 = vld [vmem:[%s195 + $0x50] sm:$0xff]
      %v4975 = vld [vmem:[%s195 + $0x58] sm:$0xff]
      %v4976 = vld [vmem:[%s195 + $0x60] sm:$0xff]
      %v4977 = vld [vmem:[%s195 + $0x68] sm:$0xff]
      %v4978 = vld [vmem:[%s195 + $0x70] sm:$0xff]
      %v4979 = vld [vmem:[%s195 + $0x78] sm:$0xff]
      %v4980 = vld [vmem:[%s195 + $0x80] sm:$0xff]
      %v4981 = vld [vmem:[%s195 + $0x88] sm:$0xff]
      %v4982 = vld [vmem:[%s195 + $0x90] sm:$0xff]
      %v4983 = vld [vmem:[%s195 + $0x98] sm:$0xff]
      %v4984 = vld [vmem:[%s195 + $0xa0] sm:$0xff]
      %v4985 = vld [vmem:[%s195 + $0xa8] sm:$0xff]
      %v4986 = vld [vmem:[%s195 + $0xb0] sm:$0xff]
      %v4987 = vld [vmem:[%s195 + $0xb8] sm:$0xff]
      %v4988 = vld [vmem:[%s195 + $0xc0] sm:$0xff]
      %v4989 = vld [vmem:[%s195 + $0xc8] sm:$0xff]
      %v4990 = vld [vmem:[%s195 + $0xd0] sm:$0xff]
      %v4991 = vld [vmem:[%s195 + $0xd8] sm:$0xff]
      %v4992 = vld [vmem:[%s195 + $0xe0] sm:$0xff]
      %v4993 = vld [vmem:[%s195 + $0xe8] sm:$0xff]
      %v4994 = vld [vmem:[%s195 + $0xf0] sm:$0xff]
      %v4995 = vld [vmem:[%s195 + $0xf8] sm:$0xff]
      %v4996 = vld [vmem:[%s195 + $0x100] sm:$0xff]
      %v4997 = vld [vmem:[%s195 + $0x108] sm:$0xff]
      %v4998 = vld [vmem:[%s195 + $0x110] sm:$0xff]
      %v4999 = vld [vmem:[%s195 + $0x118] sm:$0xff]
      %v5000 = vadd.f32 %v4964, %v4822
      %v5001 = vadd.f32 %v4965, %v4825
      %v5002 = vadd.f32 %v4966, %v4830
      %v5003 = vadd.f32 %v4967, %v4833
      %v5004 = vadd.f32 %v4968, %v4838
      %v5005 = vadd.f32 %v4969, %v4841
      %v5006 = vadd.f32 %v4970, %v4846
      %v5007 = vadd.f32 %v4971, %v4849
      %v5008 = vadd.f32 %v4972, %v4854
      %v5009 = vadd.f32 %v4973, %v4857
      %v5010 = vadd.f32 %v4974, %v4862
      %v5011 = vadd.f32 %v4975, %v4865
      %v5012 = vadd.f32 %v4976, %v4870
      %v5013 = vadd.f32 %v4977, %v4873
      %v5014 = vadd.f32 %v4978, %v4878
      %v5015 = vadd.f32 %v4979, %v4881
      %v5016 = vadd.f32 %v4980, %v4886
      %v5017 = vadd.f32 %v4981, %v4889
      %v5018 = vadd.f32 %v4982, %v4894
      %v5019 = vadd.f32 %v4983, %v4897
      %v5020 = vadd.f32 %v4984, %v4902
      %v5021 = vadd.f32 %v4985, %v4905
      %v5022 = vadd.f32 %v4986, %v4910
      %v5023 = vadd.f32 %v4987, %v4913
      %v5024 = vadd.f32 %v4988, %v4918
      %v5025 = vadd.f32 %v4989, %v4921
      %v5026 = vadd.f32 %v4990, %v4926
      %v5027 = vadd.f32 %v4991, %v4929
      %v5028 = vadd.f32 %v4992, %v4934
      %v5029 = vadd.f32 %v4993, %v4937
      %v5030 = vadd.f32 %v4994, %v4942
      %v5031 = vadd.f32 %v4995, %v4945
      %v5032 = vadd.f32 %v4996, %v4950
      %v5033 = vadd.f32 %v4997, %v4953
      %v5034 = vadd.f32 %v4998, %v4958
      %v5035 = vadd.f32 %v4999, %v4961
      %5036 = vst [vmem:[%s195] sm:$0xff] %v5000
      %5037 = vst [vmem:[%s195 + $0x8] sm:$0xff] %v5001
      %5038 = vst [vmem:[%s195 + $0x10] sm:$0xff] %v5002
      %5039 = vst [vmem:[%s195 + $0x18] sm:$0xff] %v5003
      %5040 = vst [vmem:[%s195 + $0x20] sm:$0xff] %v5004
      %5041 = vst [vmem:[%s195 + $0x28] sm:$0xff] %v5005
      %5042 = vst [vmem:[%s195 + $0x30] sm:$0xff] %v5006
      %5043 = vst [vmem:[%s195 + $0x38] sm:$0xff] %v5007
      %5044 = vst [vmem:[%s195 + $0x40] sm:$0xff] %v5008
      %5045 = vst [vmem:[%s195 + $0x48] sm:$0xff] %v5009
      %5046 = vst [vmem:[%s195 + $0x50] sm:$0xff] %v5010
      %5047 = vst [vmem:[%s195 + $0x58] sm:$0xff] %v5011
      %5048 = vst [vmem:[%s195 + $0x60] sm:$0xff] %v5012
      %5049 = vst [vmem:[%s195 + $0x68] sm:$0xff] %v5013
      %5050 = vst [vmem:[%s195 + $0x70] sm:$0xff] %v5014
      %5051 = vst [vmem:[%s195 + $0x78] sm:$0xff] %v5015
      %5052 = vst [vmem:[%s195 + $0x80] sm:$0xff] %v5016
      %5053 = vst [vmem:[%s195 + $0x88] sm:$0xff] %v5017
      %5054 = vst [vmem:[%s195 + $0x90] sm:$0xff] %v5018
      %5055 = vst [vmem:[%s195 + $0x98] sm:$0xff] %v5019
      %5056 = vst [vmem:[%s195 + $0xa0] sm:$0xff] %v5020
      %5057 = vst [vmem:[%s195 + $0xa8] sm:$0xff] %v5021
      %5058 = vst [vmem:[%s195 + $0xb0] sm:$0xff] %v5022
      %5059 = vst [vmem:[%s195 + $0xb8] sm:$0xff] %v5023
      %5060 = vst [vmem:[%s195 + $0xc0] sm:$0xff] %v5024
      %5061 = vst [vmem:[%s195 + $0xc8] sm:$0xff] %v5025
      %5062 = vst [vmem:[%s195 + $0xd0] sm:$0xff] %v5026
      %5063 = vst [vmem:[%s195 + $0xd8] sm:$0xff] %v5027
      %5064 = vst [vmem:[%s195 + $0xe0] sm:$0xff] %v5028
      %5065 = vst [vmem:[%s195 + $0xe8] sm:$0xff] %v5029
      %5066 = vst [vmem:[%s195 + $0xf0] sm:$0xff] %v5030
      %5067 = vst [vmem:[%s195 + $0xf8] sm:$0xff] %v5031
      %5068 = vst [vmem:[%s195 + $0x100] sm:$0xff] %v5032
      %5069 = vst [vmem:[%s195 + $0x108] sm:$0xff] %v5033
      %5070 = vst [vmem:[%s195 + $0x110] sm:$0xff] %v5034
      %5071 = vst [vmem:[%s195 + $0x118] sm:$0xff] %v5035
      %v5072 = vld [vmem:[%s195] sm:$0xff]
      %v5073 = vld [vmem:[%s195 + $0x8] sm:$0xff]
      %v5074 = vld [vmem:[%s195 + $0x10] sm:$0xff]
      %v5075 = vld [vmem:[%s195 + $0x18] sm:$0xff]
      %v5076 = vld [vmem:[%s195 + $0x20] sm:$0xff]
      %v5077 = vld [vmem:[%s195 + $0x28] sm:$0xff]
      %v5078 = vld [vmem:[%s195 + $0x30] sm:$0xff]
      %v5079 = vld [vmem:[%s195 + $0x38] sm:$0xff]
      %v5080 = vld [vmem:[%s195 + $0x40] sm:$0xff]
      %v5081 = vld [vmem:[%s195 + $0x48] sm:$0xff]
      %v5082 = vld [vmem:[%s195 + $0x50] sm:$0xff]
      %v5083 = vld [vmem:[%s195 + $0x58] sm:$0xff]
      %v5084 = vld [vmem:[%s195 + $0x60] sm:$0xff]
      %v5085 = vld [vmem:[%s195 + $0x68] sm:$0xff]
      %v5086 = vld [vmem:[%s195 + $0x70] sm:$0xff]
      %v5087 = vld [vmem:[%s195 + $0x78] sm:$0xff]
      %v5088 = vld [vmem:[%s195 + $0x80] sm:$0xff]
      %v5089 = vld [vmem:[%s195 + $0x88] sm:$0xff]
      %v5090 = vld [vmem:[%s195 + $0x90] sm:$0xff]
      %v5091 = vld [vmem:[%s195 + $0x98] sm:$0xff]
      %v5092 = vld [vmem:[%s195 + $0xa0] sm:$0xff]
      %v5093 = vld [vmem:[%s195 + $0xa8] sm:$0xff]
      %v5094 = vld [vmem:[%s195 + $0xb0] sm:$0xff]
      %v5095 = vld [vmem:[%s195 + $0xb8] sm:$0xff]
      %v5096 = vld [vmem:[%s195 + $0xc0] sm:$0xff]
      %v5097 = vld [vmem:[%s195 + $0xc8] sm:$0xff]
      %v5098 = vld [vmem:[%s195 + $0xd0] sm:$0xff]
      %v5099 = vld [vmem:[%s195 + $0xd8] sm:$0xff]
      %v5100 = vld [vmem:[%s195 + $0xe0] sm:$0xff]
      %v5101 = vld [vmem:[%s195 + $0xe8] sm:$0xff]
      %v5102 = vld [vmem:[%s195 + $0xf0] sm:$0xff]
      %v5103 = vld [vmem:[%s195 + $0xf8] sm:$0xff]
      %v5104 = vld [vmem:[%s195 + $0x100] sm:$0xff]
      %v5105 = vld [vmem:[%s195 + $0x108] sm:$0xff]
      %v5106 = vld [vmem:[%s195 + $0x110] sm:$0xff]
      %v5107 = vld [vmem:[%s195 + $0x118] sm:$0xff]
      %v5108 = vld [vmem:[%s2] sm:$0xff]
      %v5109 = vld [vmem:[%s2 + $0x8] sm:$0xff]
      %v5110 = vld [vmem:[%s2 + $0x10] sm:$0xff]
      %v5111 = vld [vmem:[%s2 + $0x18] sm:$0xff]
      %v5112 = vld [vmem:[%s2 + $0x20] sm:$0xff]
      %v5113 = vld [vmem:[%s2 + $0x28] sm:$0xff]
      %v5114 = vld [vmem:[%s2 + $0x30] sm:$0xff]
      %v5115 = vld [vmem:[%s2 + $0x38] sm:$0xff]
      %v5116 = vld [vmem:[%s2 + $0x40] sm:$0xff]
      %v5117 = vld [vmem:[%s2 + $0x48] sm:$0xff]
      %v5118 = vld [vmem:[%s2 + $0x50] sm:$0xff]
      %v5119 = vld [vmem:[%s2 + $0x58] sm:$0xff]
      %v5120 = vld [vmem:[%s2 + $0x60] sm:$0xff]
      %v5121 = vld [vmem:[%s2 + $0x68] sm:$0xff]
      %v5122 = vld [vmem:[%s2 + $0x70] sm:$0xff]
      %v5123 = vld [vmem:[%s2 + $0x78] sm:$0xff]
      %v5124 = vld [vmem:[%s2 + $0x80] sm:$0xff]
      %v5125 = vld [vmem:[%s2 + $0x88] sm:$0xff]
      %v5126 = vld [vmem:[%s2 + $0x90] sm:$0xff]
      %v5127 = vld [vmem:[%s2 + $0x98] sm:$0xff]
      %v5128 = vld [vmem:[%s2 + $0xa0] sm:$0xff]
      %v5129 = vld [vmem:[%s2 + $0xa8] sm:$0xff]
      %v5130 = vld [vmem:[%s2 + $0xb0] sm:$0xff]
      %v5131 = vld [vmem:[%s2 + $0xb8] sm:$0xff]
      %v5132 = vld [vmem:[%s2 + $0xc0] sm:$0xff]
      %v5133 = vld [vmem:[%s2 + $0xc8] sm:$0xff]
      %v5134 = vld [vmem:[%s2 + $0xd0] sm:$0xff]
      %v5135 = vld [vmem:[%s2 + $0xd8] sm:$0xff]
      %v5136 = vld [vmem:[%s2 + $0xe0] sm:$0xff]
      %v5137 = vld [vmem:[%s2 + $0xe8] sm:$0xff]
      %v5138 = vld [vmem:[%s2 + $0xf0] sm:$0xff]
      %v5139 = vld [vmem:[%s2 + $0xf8] sm:$0xff]
      %v5140 = vld [vmem:[%s2 + $0x100] sm:$0xff]
      %v5141 = vld [vmem:[%s2 + $0x108] sm:$0xff]
      %v5142 = vld [vmem:[%s2 + $0x110] sm:$0xff]
      %v5143 = vld [vmem:[%s2 + $0x118] sm:$0xff]
      %5145 = vset.pattern.permute.xlu0 0
      %5146 = vperm.xlu0 %5145, %v5108
      %v5147 = vpop.permute.xlu0 %5146
      %5150 = vset.pattern.permute.xlu0 0
      %5151 = vperm.xlu0 %5150, %v5109
      %v5152 = vpop.permute.xlu0 %5151
      %5155 = vset.pattern.permute.xlu0 0
      %5156 = vperm.xlu0 %5155, %v5110
      %v5157 = vpop.permute.xlu0 %5156
      %5160 = vset.pattern.permute.xlu0 0
      %5161 = vperm.xlu0 %5160, %v5111
      %v5162 = vpop.permute.xlu0 %5161
      %5165 = vset.pattern.permute.xlu0 0
      %5166 = vperm.xlu0 %5165, %v5112
      %v5167 = vpop.permute.xlu0 %5166
      %5170 = vset.pattern.permute.xlu0 0
      %5171 = vperm.xlu0 %5170, %v5113
      %v5172 = vpop.permute.xlu0 %5171
      %5175 = vset.pattern.permute.xlu0 0
      %5176 = vperm.xlu0 %5175, %v5114
      %v5177 = vpop.permute.xlu0 %5176
      %5180 = vset.pattern.permute.xlu0 0
      %5181 = vperm.xlu0 %5180, %v5115
      %v5182 = vpop.permute.xlu0 %5181
      %5185 = vset.pattern.permute.xlu0 0
      %5186 = vperm.xlu0 %5185, %v5116
      %v5187 = vpop.permute.xlu0 %5186
      %5190 = vset.pattern.permute.xlu0 0
      %5191 = vperm.xlu0 %5190, %v5117
      %v5192 = vpop.permute.xlu0 %5191
      %5195 = vset.pattern.permute.xlu0 0
      %5196 = vperm.xlu0 %5195, %v5118
      %v5197 = vpop.permute.xlu0 %5196
      %5200 = vset.pattern.permute.xlu0 0
      %5201 = vperm.xlu0 %5200, %v5119
      %v5202 = vpop.permute.xlu0 %5201
      %5205 = vset.pattern.permute.xlu0 0
      %5206 = vperm.xlu0 %5205, %v5120
      %v5207 = vpop.permute.xlu0 %5206
      %5210 = vset.pattern.permute.xlu0 0
      %5211 = vperm.xlu0 %5210, %v5121
      %v5212 = vpop.permute.xlu0 %5211
      %5215 = vset.pattern.permute.xlu0 0
      %5216 = vperm.xlu0 %5215, %v5122
      %v5217 = vpop.permute.xlu0 %5216
      %5220 = vset.pattern.permute.xlu0 0
      %5221 = vperm.xlu0 %5220, %v5123
      %v5222 = vpop.permute.xlu0 %5221
      %5225 = vset.pattern.permute.xlu0 0
      %5226 = vperm.xlu0 %5225, %v5124
      %v5227 = vpop.permute.xlu0 %5226
      %5230 = vset.pattern.permute.xlu0 0
      %5231 = vperm.xlu0 %5230, %v5125
      %v5232 = vpop.permute.xlu0 %5231
      %5235 = vset.pattern.permute.xlu0 0
      %5236 = vperm.xlu0 %5235, %v5126
      %v5237 = vpop.permute.xlu0 %5236
      %5240 = vset.pattern.permute.xlu0 0
      %5241 = vperm.xlu0 %5240, %v5127
      %v5242 = vpop.permute.xlu0 %5241
      %5245 = vset.pattern.permute.xlu0 0
      %5246 = vperm.xlu0 %5245, %v5128
      %v5247 = vpop.permute.xlu0 %5246
      %5250 = vset.pattern.permute.xlu0 0
      %5251 = vperm.xlu0 %5250, %v5129
      %v5252 = vpop.permute.xlu0 %5251
      %5255 = vset.pattern.permute.xlu0 0
      %5256 = vperm.xlu0 %5255, %v5130
      %v5257 = vpop.permute.xlu0 %5256
      %5260 = vset.pattern.permute.xlu0 0
      %5261 = vperm.xlu0 %5260, %v5131
      %v5262 = vpop.permute.xlu0 %5261
      %5265 = vset.pattern.permute.xlu0 0
      %5266 = vperm.xlu0 %5265, %v5132
      %v5267 = vpop.permute.xlu0 %5266
      %5270 = vset.pattern.permute.xlu0 0
      %5271 = vperm.xlu0 %5270, %v5133
      %v5272 = vpop.permute.xlu0 %5271
      %5275 = vset.pattern.permute.xlu0 0
      %5276 = vperm.xlu0 %5275, %v5134
      %v5277 = vpop.permute.xlu0 %5276
      %5280 = vset.pattern.permute.xlu0 0
      %5281 = vperm.xlu0 %5280, %v5135
      %v5282 = vpop.permute.xlu0 %5281
      %5285 = vset.pattern.permute.xlu0 0
      %5286 = vperm.xlu0 %5285, %v5136
      %v5287 = vpop.permute.xlu0 %5286
      %5290 = vset.pattern.permute.xlu0 0
      %5291 = vperm.xlu0 %5290, %v5137
      %v5292 = vpop.permute.xlu0 %5291
      %5295 = vset.pattern.permute.xlu0 0
      %5296 = vperm.xlu0 %5295, %v5138
      %v5297 = vpop.permute.xlu0 %5296
      %5300 = vset.pattern.permute.xlu0 0
      %5301 = vperm.xlu0 %5300, %v5139
      %v5302 = vpop.permute.xlu0 %5301
      %5305 = vset.pattern.permute.xlu0 0
      %5306 = vperm.xlu0 %5305, %v5140
      %v5307 = vpop.permute.xlu0 %5306
      %5310 = vset.pattern.permute.xlu0 0
      %5311 = vperm.xlu0 %5310, %v5141
      %v5312 = vpop.permute.xlu0 %5311
      %5315 = vset.pattern.permute.xlu0 0
      %5316 = vperm.xlu0 %5315, %v5142
      %v5317 = vpop.permute.xlu0 %5316
      %5320 = vset.pattern.permute.xlu0 0
      %5321 = vperm.xlu0 %5320, %v5143
      %v5322 = vpop.permute.xlu0 %5321
      %v5324 = vmul.f32 %v5072, %v5147
      %v5325 = vmul.f32 %v5073, %v5152
      %v5326 = vmul.f32 %v5074, %v5157
      %v5327 = vmul.f32 %v5075, %v5162
      %v5328 = vmul.f32 %v5076, %v5167
      %v5329 = vmul.f32 %v5077, %v5172
      %v5330 = vmul.f32 %v5078, %v5177
      %v5331 = vmul.f32 %v5079, %v5182
      %v5332 = vmul.f32 %v5080, %v5187
      %v5333 = vmul.f32 %v5081, %v5192
      %v5334 = vmul.f32 %v5082, %v5197
      %v5335 = vmul.f32 %v5083, %v5202
      %v5336 = vmul.f32 %v5084, %v5207
      %v5337 = vmul.f32 %v5085, %v5212
      %v5338 = vmul.f32 %v5086, %v5217
      %v5339 = vmul.f32 %v5087, %v5222
      %v5340 = vmul.f32 %v5088, %v5227
      %v5341 = vmul.f32 %v5089, %v5232
      %v5342 = vmul.f32 %v5090, %v5237
      %v5343 = vmul.f32 %v5091, %v5242
      %v5344 = vmul.f32 %v5092, %v5247
      %v5345 = vmul.f32 %v5093, %v5252
      %v5346 = vmul.f32 %v5094, %v5257
      %v5347 = vmul.f32 %v5095, %v5262
      %v5348 = vmul.f32 %v5096, %v5267
      %v5349 = vmul.f32 %v5097, %v5272
      %v5350 = vmul.f32 %v5098, %v5277
      %v5351 = vmul.f32 %v5099, %v5282
      %v5352 = vmul.f32 %v5100, %v5287
      %v5353 = vmul.f32 %v5101, %v5292
      %v5354 = vmul.f32 %v5102, %v5297
      %v5355 = vmul.f32 %v5103, %v5302
      %v5356 = vmul.f32 %v5104, %v5307
      %v5357 = vmul.f32 %v5105, %v5312
      %v5358 = vmul.f32 %v5106, %v5317
      %v5359 = vmul.f32 %v5107, %v5322
      %v5360 = vld [vmem:[%s4] sm:$0x1]
      %v5361 = vadd.f32 %v5324, %v5325
      %v5362 = vadd.f32 %v5361, %v5326
      %v5363 = vadd.f32 %v5362, %v5327
      %v5364 = vadd.f32 %v5363, %v5328
      %v5365 = vadd.f32 %v5364, %v5329
      %v5366 = vadd.f32 %v5365, %v5330
      %v5367 = vadd.f32 %v5366, %v5331
      %v5368 = vadd.f32 %v5367, %v5332
      %v5369 = vadd.f32 %v5368, %v5333
      %v5370 = vadd.f32 %v5369, %v5334
      %v5371 = vadd.f32 %v5370, %v5335
      %v5372 = vadd.f32 %v5371, %v5336
      %v5373 = vadd.f32 %v5372, %v5337
      %v5374 = vadd.f32 %v5373, %v5338
      %v5375 = vadd.f32 %v5374, %v5339
      %v5376 = vadd.f32 %v5375, %v5340
      %v5377 = vadd.f32 %v5376, %v5341
      %v5378 = vadd.f32 %v5377, %v5342
      %v5379 = vadd.f32 %v5378, %v5343
      %v5380 = vadd.f32 %v5379, %v5344
      %v5381 = vadd.f32 %v5380, %v5345
      %v5382 = vadd.f32 %v5381, %v5346
      %v5383 = vadd.f32 %v5382, %v5347
      %v5384 = vadd.f32 %v5383, %v5348
      %v5385 = vadd.f32 %v5384, %v5349
      %v5386 = vadd.f32 %v5385, %v5350
      %v5387 = vadd.f32 %v5386, %v5351
      %v5388 = vadd.f32 %v5387, %v5352
      %v5389 = vadd.f32 %v5388, %v5353
      %v5390 = vadd.f32 %v5389, %v5354
      %v5391 = vadd.f32 %v5390, %v5355
      %v5392 = vadd.f32 %v5391, %v5356
      %v5393 = vadd.f32 %v5392, %v5357
      %v5394 = vadd.f32 %v5393, %v5358
      %v5395 = vadd.f32 %v5394, %v5359
      %v5396 = vrot.slane %v5395, 4
      %v5397 = vadd.f32 %v5395, %v5396
      %v5398 = vrot.slane %v5397, 2
      %v5399 = vadd.f32 %v5397, %v5398
      %v5400 = vrot.slane %v5399, 1
      %v5401 = vadd.f32 %v5399, %v5400
      %v5402 = vadd.f32 %v5360, %v5401
      %5403 = vst [vmem:[%s4] sm:$0x1] %v5402
      %v5404 = vld [vmem:[%s4 + $0x1] sm:$0x1]
      %v5405 = vmul.f32 %v5324, %v5324
      %v5406 = vmul.f32 %v5325, %v5325
      %v5407 = vmul.f32 %v5326, %v5326
      %v5408 = vmul.f32 %v5327, %v5327
      %v5409 = vmul.f32 %v5328, %v5328
      %v5410 = vmul.f32 %v5329, %v5329
      %v5411 = vmul.f32 %v5330, %v5330
      %v5412 = vmul.f32 %v5331, %v5331
      %v5413 = vmul.f32 %v5332, %v5332
      %v5414 = vmul.f32 %v5333, %v5333
      %v5415 = vmul.f32 %v5334, %v5334
      %v5416 = vmul.f32 %v5335, %v5335
      %v5417 = vmul.f32 %v5336, %v5336
      %v5418 = vmul.f32 %v5337, %v5337
      %v5419 = vmul.f32 %v5338, %v5338
      %v5420 = vmul.f32 %v5339, %v5339
      %v5421 = vmul.f32 %v5340, %v5340
      %v5422 = vmul.f32 %v5341, %v5341
      %v5423 = vmul.f32 %v5342, %v5342
      %v5424 = vmul.f32 %v5343, %v5343
      %v5425 = vmul.f32 %v5344, %v5344
      %v5426 = vmul.f32 %v5345, %v5345
      %v5427 = vmul.f32 %v5346, %v5346
      %v5428 = vmul.f32 %v5347, %v5347
      %v5429 = vmul.f32 %v5348, %v5348
      %v5430 = vmul.f32 %v5349, %v5349
      %v5431 = vmul.f32 %v5350, %v5350
      %v5432 = vmul.f32 %v5351, %v5351
      %v5433 = vmul.f32 %v5352, %v5352
      %v5434 = vmul.f32 %v5353, %v5353
      %v5435 = vmul.f32 %v5354, %v5354
      %v5436 = vmul.f32 %v5355, %v5355
      %v5437 = vmul.f32 %v5356, %v5356
      %v5438 = vmul.f32 %v5357, %v5357
      %v5439 = vmul.f32 %v5358, %v5358
      %v5440 = vmul.f32 %v5359, %v5359
      %v5441 = vadd.f32 %v5405, %v5406
      %v5442 = vadd.f32 %v5441, %v5407
      %v5443 = vadd.f32 %v5442, %v5408
      %v5444 = vadd.f32 %v5443, %v5409
      %v5445 = vadd.f32 %v5444, %v5410
      %v5446 = vadd.f32 %v5445, %v5411
      %v5447 = vadd.f32 %v5446, %v5412
      %v5448 = vadd.f32 %v5447, %v5413
      %v5449 = vadd.f32 %v5448, %v5414
      %v5450 = vadd.f32 %v5449, %v5415
      %v5451 = vadd.f32 %v5450, %v5416
      %v5452 = vadd.f32 %v5451, %v5417
      %v5453 = vadd.f32 %v5452, %v5418
      %v5454 = vadd.f32 %v5453, %v5419
      %v5455 = vadd.f32 %v5454, %v5420
      %v5456 = vadd.f32 %v5455, %v5421
      %v5457 = vadd.f32 %v5456, %v5422
      %v5458 = vadd.f32 %v5457, %v5423
      %v5459 = vadd.f32 %v5458, %v5424
      %v5460 = vadd.f32 %v5459, %v5425
      %v5461 = vadd.f32 %v5460, %v5426
      %v5462 = vadd.f32 %v5461, %v5427
      %v5463 = vadd.f32 %v5462, %v5428
      %v5464 = vadd.f32 %v5463, %v5429
      %v5465 = vadd.f32 %v5464, %v5430
      %v5466 = vadd.f32 %v5465, %v5431
      %v5467 = vadd.f32 %v5466, %v5432
      %v5468 = vadd.f32 %v5467, %v5433
      %v5469 = vadd.f32 %v5468, %v5434
      %v5470 = vadd.f32 %v5469, %v5435
      %v5471 = vadd.f32 %v5470, %v5436
      %v5472 = vadd.f32 %v5471, %v5437
      %v5473 = vadd.f32 %v5472, %v5438
      %v5474 = vadd.f32 %v5473, %v5439
      %v5475 = vadd.f32 %v5474, %v5440
      %v5476 = vrot.slane %v5475, 4
      %v5477 = vadd.f32 %v5475, %v5476
      %v5478 = vrot.slane %v5477, 2
      %v5479 = vadd.f32 %v5477, %v5478
      %v5480 = vrot.slane %v5479, 1
      %v5481 = vadd.f32 %v5479, %v5480
      %v5482 = vadd.f32 %v5404, %v5481
      %5483 = vst [vmem:[%s4 + $0x1] sm:$0x1] %v5482
      %p5484 = scmp.lt.s32.totalorder %s16, 1
      %s5485 = scalar_select %p5484, %s16, 1
      %s5486 = smul.addr %s5485, 36
      %s5487 = smul.addr %s5486, 8
      %s5488 = scalar_lea.vmem %s3, %s5487
      // Predicated region
      $region37: #{_lambda_.2} parent=31 // pred_check
        %p5489 = pneg %p102
      $region38: #{_lambda_.2} parent=31 // pred_check_branch
        %5491 = sbr.rel (%p5489) target = $region40
      $region39: #{_lambda_.2} parent=31 // pred_region
        _
      $region40: #{_lambda_.2} parent=31 // pred_fallthru
        _
      // Predicated region
      $region41: #{_lambda_.2} parent=31 // pred_check
        %p5492 = pneg %p123
      $region42: #{_lambda_.2} parent=31 // pred_check_branch
        %5494 = sbr.rel (%p5492) target = $region44
      $region43: #{_lambda_.2} parent=31 // pred_region
        _
      $region44: #{_lambda_.2} parent=31 // pred_fallthru
        _
      // Predicated region
      $region45: #{_lambda_.2} parent=31 // pred_check
        %p5495 = pneg %p123
      $region46: #{_lambda_.2} parent=31 // pred_check_branch
        %5497 = sbr.rel (%p5495) target = $region48
      $region47: #{_lambda_.2} parent=31 // pred_region
        _
      $region48: #{_lambda_.2} parent=31 // pred_fallthru
        _
    $region32: #{_lambda_.2} parent=5 // pred_fallthru
      _
    %p5498 = scmp.le.s32.totalorder 2, %s11
    // Predicated region
    $region49: #{_lambda_.2} parent=5 // pred_check
      %p5499 = pneg %p5498
    $region50: #{_lambda_.2} parent=5 // pred_check_branch
      %5501 = sbr.rel (%p5499) target = $region52
    $region51: #{_lambda_.2} parent=5 // pred_region
      %s5502 = ssub.s32 %s11, 2
      // Predicated region
      $region53: #{_lambda_.2} parent=51 // pred_check
        %p5503 = pneg %p108
      $region54: #{_lambda_.2} parent=51 // pred_check_branch
        %5505 = sbr.rel (%p5503) target = $region56
      $region55: #{_lambda_.2} parent=51 // pred_region
        %p5506 = scmp.lt.s32.totalorder %s17, 1
        %s5507 = scalar_select %p5506, %s17, 1
        %s5508 = smul.addr %s5507, 36
        %s5509 = smul.addr %s5508, 8
        %s5510 = scalar_lea.vmem %s3, %s5509
      $region56: #{_lambda_.2} parent=51 // pred_fallthru
        _
    $region52: #{_lambda_.2} parent=5 // pred_fallthru
      _
  $region6: #{_lambda_.2} parent=0 // loop_footer
    %s15 = sadd.s32 1, %s11
  $region7: #{_lambda_.2} parent=0 // loop_footer_branch
    %10 = sbr.rel target = $region3
  $region8: #{_lambda_.2} parent=0 // loop_exit
    _

</llo_original>
